<compile_context>
chip_gen: v6e
topology: v6e:2x2x1
jax: 0.10.0
libtpu: 0.0.40
codegen_flags: <defaults>
</compile_context>

<pallas_src>
import jax
import jax.numpy as jnp
from jax import lax
from jax.experimental import pallas as pl
from jax.experimental.pallas import tpu as pltpu

# ----------------------------------------------------------------------------
# Model hyper-parameters (small, consistent with the module's __init__)
# ----------------------------------------------------------------------------
VOCAB_SIZE = 16
PAD_IDX = 0
HIDDEN_DIM = 32
N_CLASSES = 5
N_LAYERS = 2
# TODO(synk): bidirectional=True branch not implemented (module default is False).


# ----------------------------------------------------------------------------
# Kernel: multi-layer LSTM (length-masked) + final classifier, one call
# ----------------------------------------------------------------------------
def lstm_kernel(x_ref, len_ref, w_ih_ref, w_hh_ref, b_ref, w_out_ref, b_out_ref,
                logits_ref, xbuf_ref):
    """
    x_ref:     (S, B, H)  embedded inputs (seq-first)
    len_ref:   (B, 1)     int32 valid lengths (packed-sequence masking)
    w_ih_ref:  (L, H, 4H) input->gates weights, pre-transposed, gate order i|f|g|o
    w_hh_ref:  (L, H, 4H) hidden->gates weights, pre-transposed
    b_ref:     (L, 1, 4H) combined bias (b_ih + b_hh)
    w_out_ref: (L, H, C)  classifier weight split per layer (== concat along H)
    b_out_ref: (1, C)     classifier bias
    logits_ref:(B, C)     output
    xbuf_ref:  (S, B, H)  VMEM scratch: current layer's input / output (in place)
    """
    S, B, H = x_ref.shape
    L = w_ih_ref.shape[0]
    lens = len_ref[...]                                   # (B, 1) int32

    # layer-0 input
    xbuf_ref[...] = x_ref[...]

    acc = jnp.broadcast_to(b_out_ref[...], logits_ref.shape).astype(jnp.float32)

    for l in range(L):                                    # L is small & static
        w_ih = w_ih_ref[l]                                # (H, 4H)
        w_hh = w_hh_ref[l]                                # (H, 4H)
        bias = b_ref[l]                                   # (1, 4H)

        def step(t, carry):
            h, c = carry
            x_t = xbuf_ref[t]                             # (B, H)
            gates = (jnp.dot(x_t, w_ih, preferred_element_type=jnp.float32)
                     + jnp.dot(h, w_hh, preferred_element_type=jnp.float32)
                     + bias)                              # (B, 4H)
            i_g = jax.nn.sigmoid(gates[:, 0 * H:1 * H])
            f_g = jax.nn.sigmoid(gates[:, 1 * H:2 * H])
            g_g = jnp.tanh(gates[:, 2 * H:3 * H])
            o_g = jax.nn.sigmoid(gates[:, 3 * H:4 * H])
            c_new = f_g * c + i_g * g_g
            h_new = o_g * jnp.tanh(c_new)
            # packed-sequence semantics: freeze state past each sequence's length
            valid = t < lens                              # (B, 1) bool
            h = jnp.where(valid, h_new, h)
            c = jnp.where(valid, c_new, c)
            xbuf_ref[t] = h                               # becomes next layer's input
            return h, c

        h0 = jnp.zeros((B, H), jnp.float32)
        c0 = jnp.zeros((B, H), jnp.float32)
        h_fin, _ = lax.fori_loop(0, S, step, (h0, c0), unroll=True)

        # hx.transpose(0,1).view(B, L*H) @ W_out  ==  sum_l h_fin[l] @ W_out[l]
        acc = acc + jnp.dot(h_fin, w_out_ref[l], preferred_element_type=jnp.float32)

    logits_ref[...] = acc.astype(logits_ref.dtype)


# ----------------------------------------------------------------------------
# Pallas wrapper / JAX glue
# ----------------------------------------------------------------------------
def _vmem():
    return pl.BlockSpec(memory_space=pltpu.MemorySpace.VMEM)


def lstm_forward(params, src, src_lengths):
    """src: (S, B) int32 token ids (seq-first); src_lengths: (B,) valid lengths."""
    S, B = src.shape
    # Embedding lookup (padding_idx row is zero) — plain XLA gather.
    x = jnp.take(params['emb'], src, axis=0).astype(jnp.float32)      # (S, B, H)
    lens = src_lengths.astype(jnp.int32).reshape(B, 1)

    logits = pl.pallas_call(
        lstm_kernel,
        out_shape=jax.ShapeDtypeStruct((B, N_CLASSES), jnp.float32),
        in_specs=[_vmem()] * 7,
        out_specs=_vmem(),
        scratch_shapes=[pltpu.VMEM((S, B, HIDDEN_DIM), jnp.float32)],
    )(x, lens, params['w_ih'], params['w_hh'], params['b'],
      params['w_out'], params['b_out'])

    attns = []                                    # PyTorch module returns []
    return logits, attns


# ----------------------------------------------------------------------------
# Deterministic parameter init (synthetic — shapes follow the module __init__)
# ----------------------------------------------------------------------------
def init_params(key):
    def nxt():
        nonlocal key
        key, sub = jax.random.split(key)
        return sub

    def randn(shape, scale=0.1):
        return scale * jax.random.normal(nxt(), shape, jnp.float32)

    emb = randn((VOCAB_SIZE, HIDDEN_DIM))
    emb = emb.at[PAD_IDX].set(0.0)                # padding_idx row is zero

    # nn.LSTM weights: gate order i|f|g|o, pre-transposed to (in, 4H), stacked by layer
    w_ih = randn((N_LAYERS, HIDDEN_DIM, 4 * HIDDEN_DIM))
    w_hh = randn((N_LAYERS, HIDDEN_DIM, 4 * HIDDEN_DIM))
    b = randn((N_LAYERS, 1, 4 * HIDDEN_DIM))      # b_ih + b_hh combined

    # Linear(repr_dim = L*H -> C), split per layer to avoid in-kernel concat
    w_out = randn((N_LAYERS, HIDDEN_DIM, N_CLASSES))
    b_out = randn((1, N_CLASSES))
    return dict(emb=emb, w_ih=w_ih, w_hh=w_hh, b=b, w_out=w_out, b_out=b_out)


# ----------------------------------------------------------------------------
if __name__ == "__main__":
    key = jax.random.PRNGKey(0)
    params = init_params(key)

    # src: (S=8, B=2) token ids in [2, VOCAB_SIZE); second sequence is shorter
    S, B = 8, 2
    k_tok, _ = jax.random.split(jax.random.PRNGKey(0))
    src = jax.random.randint(k_tok, (S, B), 2, VOCAB_SIZE, dtype=jnp.int32)
    src_lengths = jnp.array([S, S - 2], dtype=jnp.int32)
    src = src.at[S - 2:, 1].set(PAD_IDX)          # pad the tail of sequence 1

    logits, attns = lstm_forward(params, src, src_lengths)
    logits = jax.block_until_ready(logits)
    assert logits.shape == (B, N_CLASSES)
    assert bool(jnp.all(jnp.isfinite(logits)))
    assert attns == []
    print("KERNEL_OK")
</pallas_src>

<mosaic_0001>
module attributes {stable_mosaic.version = 11 : i64} {
  func.func @lstm_kernel(%arg0: memref<8x2x32xf32, #tpu.memory_space<vmem>>, %arg1: memref<2x1xi32, #tpu.memory_space<vmem>>, %arg2: memref<2x32x128xf32, #tpu.memory_space<vmem>>, %arg3: memref<2x32x128xf32, #tpu.memory_space<vmem>>, %arg4: memref<2x1x128xf32, #tpu.memory_space<vmem>>, %arg5: memref<2x32x5xf32, #tpu.memory_space<vmem>>, %arg6: memref<1x5xf32, #tpu.memory_space<vmem>>, %arg7: memref<2x5xf32, #tpu.memory_space<vmem>>, %arg8: memref<8x2x32xf32, #tpu.memory_space<vmem>>) attributes {dimension_semantics = [], scalar_prefetch = 0 : i64, scratch_operands = 1 : i64, tpu.core_type = #tpu.core_type<tc>} {
    %c0 = arith.constant 0 : index
    %c0_0 = arith.constant 0 : index
    %0 = vector.load %arg1[%c0, %c0_0] : memref<2x1xi32, #tpu.memory_space<vmem>>, vector<2x1xi32>
    %c0_1 = arith.constant 0 : index
    %c0_2 = arith.constant 0 : index
    %c0_3 = arith.constant 0 : index
    %1 = vector.load %arg0[%c0_1, %c0_2, %c0_3] : memref<8x2x32xf32, #tpu.memory_space<vmem>>, vector<8x2x32xf32>
    %c0_4 = arith.constant 0 : index
    %c0_5 = arith.constant 0 : index
    %c0_6 = arith.constant 0 : index
    %2 = vector.load %arg8[%c0_4, %c0_5, %c0_6] : memref<8x2x32xf32, #tpu.memory_space<vmem>>, vector<8x2x32xf32>
    tpu.vector_store %arg8[%c0_4, %c0_5, %c0_6], %1 {strides = array<i32>} : memref<8x2x32xf32, #tpu.memory_space<vmem>>, vector<8x2x32xf32>,
    %c0_7 = arith.constant 0 : index
    %c0_8 = arith.constant 0 : index
    %3 = vector.load %arg6[%c0_7, %c0_8] : memref<1x5xf32, #tpu.memory_space<vmem>>, vector<1x5xf32>
    %4 = vector.shape_cast %3 : vector<1x5xf32> to vector<1x5xf32>
    %5 = vector.broadcast %4 : vector<1x5xf32> to vector<2x5xf32>
    %c0_9 = arith.constant 0 : index
    %c0_10 = arith.constant 0 : index
    %c0_11 = arith.constant 0 : index
    %6 = vector.load %arg2[%c0_9, %c0_10, %c0_11] : memref<2x32x128xf32, #tpu.memory_space<vmem>>, vector<1x32x128xf32>
    %7 = vector.shape_cast %6 : vector<1x32x128xf32> to vector<32x128xf32>
    %c0_12 = arith.constant 0 : index
    %c0_13 = arith.constant 0 : index
    %c0_14 = arith.constant 0 : index
    %8 = vector.load %arg3[%c0_12, %c0_13, %c0_14] : memref<2x32x128xf32, #tpu.memory_space<vmem>>, vector<1x32x128xf32>
    %9 = vector.shape_cast %8 : vector<1x32x128xf32> to vector<32x128xf32>
    %c0_15 = arith.constant 0 : index
    %c0_16 = arith.constant 0 : index
    %c0_17 = arith.constant 0 : index
    %10 = vector.load %arg4[%c0_15, %c0_16, %c0_17] : memref<2x1x128xf32, #tpu.memory_space<vmem>>, vector<1x1x128xf32>
    %11 = vector.shape_cast %10 : vector<1x1x128xf32> to vector<1x128xf32>
    %cst = arith.constant 0.000000e+00 : f32
    %12 = vector.broadcast %cst : f32 to vector<2x32xf32>
    %cst_18 = arith.constant 0.000000e+00 : f32
    %13 = vector.broadcast %cst_18 : f32 to vector<2x32xf32>
    %c0_i32 = arith.constant 0 : i32
    %14 = arith.index_cast %c0_i32 : i32 to index
    %c0_19 = arith.constant 0 : index
    %c0_20 = arith.constant 0 : index
    %15 = vector.load %arg8[%14, %c0_19, %c0_20] : memref<8x2x32xf32, #tpu.memory_space<vmem>>, vector<1x2x32xf32>
    %16 = vector.shape_cast %15 : vector<1x2x32xf32> to vector<2x32xf32>
    %cst_21 = arith.constant dense<0.000000e+00> : vector<2x128xf32>
    %17 = tpu.matmul %16, %7, %cst_21 {dimension_numbers = #tpu.dot_dimension_numbers<[1], [0], [0], [1], [0, 0, 1, 1], [], []>} : vector<2x32xf32>, vector<32x128xf32>, vector<2x128xf32> -> vector<2x128xf32>
    %cst_22 = arith.constant dense<0.000000e+00> : vector<2x128xf32>
    %18 = tpu.matmul %12, %9, %cst_22 {dimension_numbers = #tpu.dot_dimension_numbers<[1], [0], [0], [1], [0, 0, 1, 1], [], []>} : vector<2x32xf32>, vector<32x128xf32>, vector<2x128xf32> -> vector<2x128xf32>
    %19 = arith.addf %17, %18 : vector<2x128xf32>
    %20 = vector.broadcast %11 : vector<1x128xf32> to vector<2x128xf32>
    %21 = arith.addf %19, %20 : vector<2x128xf32>
    %22 = vector.extract_strided_slice %21 {offsets = [0, 0], sizes = [2, 32], strides = [1, 1]} : vector<2x128xf32> to vector<2x32xf32>
    %23 = arith.negf %22 : vector<2x32xf32>
    %24 = math.exp %23 : vector<2x32xf32>
    %cst_23 = arith.constant 1.000000e+00 : f32
    %25 = vector.broadcast %cst_23 : f32 to vector<2x32xf32>
    %26 = arith.addf %25, %24 : vector<2x32xf32>
    %27 = arith.divf %25, %26 : vector<2x32xf32>
    %28 = vector.extract_strided_slice %21 {offsets = [0, 32], sizes = [2, 32], strides = [1, 1]} : vector<2x128xf32> to vector<2x32xf32>
    %29 = arith.negf %28 : vector<2x32xf32>
    %30 = math.exp %29 : vector<2x32xf32>
    %cst_24 = arith.constant 1.000000e+00 : f32
    %31 = vector.broadcast %cst_24 : f32 to vector<2x32xf32>
    %32 = arith.addf %31, %30 : vector<2x32xf32>
    %33 = arith.divf %31, %32 : vector<2x32xf32>
    %34 = vector.extract_strided_slice %21 {offsets = [0, 64], sizes = [2, 32], strides = [1, 1]} : vector<2x128xf32> to vector<2x32xf32>
    %35 = math.tanh %34 : vector<2x32xf32>
    %36 = vector.extract_strided_slice %21 {offsets = [0, 96], sizes = [2, 32], strides = [1, 1]} : vector<2x128xf32> to vector<2x32xf32>
    %37 = arith.negf %36 : vector<2x32xf32>
    %38 = math.exp %37 : vector<2x32xf32>
    %cst_25 = arith.constant 1.000000e+00 : f32
    %39 = vector.broadcast %cst_25 : f32 to vector<2x32xf32>
    %40 = arith.addf %39, %38 : vector<2x32xf32>
    %41 = arith.divf %39, %40 : vector<2x32xf32>
    %42 = arith.mulf %33, %13 : vector<2x32xf32>
    %43 = arith.mulf %27, %35 : vector<2x32xf32>
    %44 = arith.addf %42, %43 : vector<2x32xf32>
    %45 = math.tanh %44 : vector<2x32xf32>
    %46 = arith.mulf %41, %45 : vector<2x32xf32>
    %47 = vector.broadcast %c0_i32 : i32 to vector<2x1xi32>
    %48 = arith.cmpi slt, %47, %0 : vector<2x1xi32>
    %49 = vector.shape_cast %48 : vector<2x1xi1> to vector<2x1xi1>
    %50 = vector.broadcast %49 : vector<2x1xi1> to vector<2x32xi1>
    %51 = arith.select %50, %46, %12 : vector<2x32xi1>, vector<2x32xf32>
    %52 = vector.shape_cast %48 : vector<2x1xi1> to vector<2x1xi1>
    %53 = vector.broadcast %52 : vector<2x1xi1> to vector<2x32xi1>
    %54 = arith.select %53, %44, %13 : vector<2x32xi1>, vector<2x32xf32>
    %55 = arith.index_cast %c0_i32 : i32 to index
    %c0_26 = arith.constant 0 : index
    %c0_27 = arith.constant 0 : index
    %56 = vector.load %arg8[%55, %c0_26, %c0_27] : memref<8x2x32xf32, #tpu.memory_space<vmem>>, vector<1x2x32xf32>
    %57 = vector.shape_cast %56 : vector<1x2x32xf32> to vector<2x32xf32>
    %58 = vector.shape_cast %51 : vector<2x32xf32> to vector<1x2x32xf32>
    tpu.vector_store %arg8[%55, %c0_26, %c0_27], %58 {strides = array<i32>} : memref<8x2x32xf32, #tpu.memory_space<vmem>>, vector<1x2x32xf32>,
    %c1_i32 = arith.constant 1 : i32
    %59 = arith.index_cast %c1_i32 : i32 to index
    %c0_28 = arith.constant 0 : index
    %c0_29 = arith.constant 0 : index
    %60 = vector.load %arg8[%59, %c0_28, %c0_29] : memref<8x2x32xf32, #tpu.memory_space<vmem>>, vector<1x2x32xf32>
    %61 = vector.shape_cast %60 : vector<1x2x32xf32> to vector<2x32xf32>
    %cst_30 = arith.constant dense<0.000000e+00> : vector<2x128xf32>
    %62 = tpu.matmul %61, %7, %cst_30 {dimension_numbers = #tpu.dot_dimension_numbers<[1], [0], [0], [1], [0, 0, 1, 1], [], []>} : vector<2x32xf32>, vector<32x128xf32>, vector<2x128xf32> -> vector<2x128xf32>
    %cst_31 = arith.constant dense<0.000000e+00> : vector<2x128xf32>
    %63 = tpu.matmul %51, %9, %cst_31 {dimension_numbers = #tpu.dot_dimension_numbers<[1], [0], [0], [1], [0, 0, 1, 1], [], []>} : vector<2x32xf32>, vector<32x128xf32>, vector<2x128xf32> -> vector<2x128xf32>
    %64 = arith.addf %62, %63 : vector<2x128xf32>
    %65 = vector.broadcast %11 : vector<1x128xf32> to vector<2x128xf32>
    %66 = arith.addf %64, %65 : vector<2x128xf32>
    %67 = vector.extract_strided_slice %66 {offsets = [0, 0], sizes = [2, 32], strides = [1, 1]} : vector<2x128xf32> to vector<2x32xf32>
    %68 = arith.negf %67 : vector<2x32xf32>
    %69 = math.exp %68 : vector<2x32xf32>
    %cst_32 = arith.constant 1.000000e+00 : f32
    %70 = vector.broadcast %cst_32 : f32 to vector<2x32xf32>
    %71 = arith.addf %70, %69 : vector<2x32xf32>
    %72 = arith.divf %70, %71 : vector<2x32xf32>
    %73 = vector.extract_strided_slice %66 {offsets = [0, 32], sizes = [2, 32], strides = [1, 1]} : vector<2x128xf32> to vector<2x32xf32>
    %74 = arith.negf %73 : vector<2x32xf32>
    %75 = math.exp %74 : vector<2x32xf32>
    %cst_33 = arith.constant 1.000000e+00 : f32
    %76 = vector.broadcast %cst_33 : f32 to vector<2x32xf32>
    %77 = arith.addf %76, %75 : vector<2x32xf32>
    %78 = arith.divf %76, %77 : vector<2x32xf32>
    %79 = vector.extract_strided_slice %66 {offsets = [0, 64], sizes = [2, 32], strides = [1, 1]} : vector<2x128xf32> to vector<2x32xf32>
    %80 = math.tanh %79 : vector<2x32xf32>
    %81 = vector.extract_strided_slice %66 {offsets = [0, 96], sizes = [2, 32], strides = [1, 1]} : vector<2x128xf32> to vector<2x32xf32>
    %82 = arith.negf %81 : vector<2x32xf32>
    %83 = math.exp %82 : vector<2x32xf32>
    %cst_34 = arith.constant 1.000000e+00 : f32
    %84 = vector.broadcast %cst_34 : f32 to vector<2x32xf32>
    %85 = arith.addf %84, %83 : vector<2x32xf32>
    %86 = arith.divf %84, %85 : vector<2x32xf32>
    %87 = arith.mulf %78, %54 : vector<2x32xf32>
    %88 = arith.mulf %72, %80 : vector<2x32xf32>
    %89 = arith.addf %87, %88 : vector<2x32xf32>
    %90 = math.tanh %89 : vector<2x32xf32>
    %91 = arith.mulf %86, %90 : vector<2x32xf32>
    %92 = vector.broadcast %c1_i32 : i32 to vector<2x1xi32>
    %93 = arith.cmpi slt, %92, %0 : vector<2x1xi32>
    %94 = vector.shape_cast %93 : vector<2x1xi1> to vector<2x1xi1>
    %95 = vector.broadcast %94 : vector<2x1xi1> to vector<2x32xi1>
    %96 = arith.select %95, %91, %51 : vector<2x32xi1>, vector<2x32xf32>
    %97 = vector.shape_cast %93 : vector<2x1xi1> to vector<2x1xi1>
    %98 = vector.broadcast %97 : vector<2x1xi1> to vector<2x32xi1>
    %99 = arith.select %98, %89, %54 : vector<2x32xi1>, vector<2x32xf32>
    %100 = arith.index_cast %c1_i32 : i32 to index
    %c0_35 = arith.constant 0 : index
    %c0_36 = arith.constant 0 : index
    %101 = vector.load %arg8[%100, %c0_35, %c0_36] : memref<8x2x32xf32, #tpu.memory_space<vmem>>, vector<1x2x32xf32>
    %102 = vector.shape_cast %101 : vector<1x2x32xf32> to vector<2x32xf32>
    %103 = vector.shape_cast %96 : vector<2x32xf32> to vector<1x2x32xf32>
    tpu.vector_store %arg8[%100, %c0_35, %c0_36], %103 {strides = array<i32>} : memref<8x2x32xf32, #tpu.memory_space<vmem>>, vector<1x2x32xf32>,
    %c2_i32 = arith.constant 2 : i32
    %104 = arith.index_cast %c2_i32 : i32 to index
    %c0_37 = arith.constant 0 : index
    %c0_38 = arith.constant 0 : index
    %105 = vector.load %arg8[%104, %c0_37, %c0_38] : memref<8x2x32xf32, #tpu.memory_space<vmem>>, vector<1x2x32xf32>
    %106 = vector.shape_cast %105 : vector<1x2x32xf32> to vector<2x32xf32>
    %cst_39 = arith.constant dense<0.000000e+00> : vector<2x128xf32>
    %107 = tpu.matmul %106, %7, %cst_39 {dimension_numbers = #tpu.dot_dimension_numbers<[1], [0], [0], [1], [0, 0, 1, 1], [], []>} : vector<2x32xf32>, vector<32x128xf32>, vector<2x128xf32> -> vector<2x128xf32>
    %cst_40 = arith.constant dense<0.000000e+00> : vector<2x128xf32>
    %108 = tpu.matmul %96, %9, %cst_40 {dimension_numbers = #tpu.dot_dimension_numbers<[1], [0], [0], [1], [0, 0, 1, 1], [], []>} : vector<2x32xf32>, vector<32x128xf32>, vector<2x128xf32> -> vector<2x128xf32>
    %109 = arith.addf %107, %108 : vector<2x128xf32>
    %110 = vector.broadcast %11 : vector<1x128xf32> to vector<2x128xf32>
    %111 = arith.addf %109, %110 : vector<2x128xf32>
    %112 = vector.extract_strided_slice %111 {offsets = [0, 0], sizes = [2, 32], strides = [1, 1]} : vector<2x128xf32> to vector<2x32xf32>
    %113 = arith.negf %112 : vector<2x32xf32>
    %114 = math.exp %113 : vector<2x32xf32>
    %cst_41 = arith.constant 1.000000e+00 : f32
    %115 = vector.broadcast %cst_41 : f32 to vector<2x32xf32>
    %116 = arith.addf %115, %114 : vector<2x32xf32>
    %117 = arith.divf %115, %116 : vector<2x32xf32>
    %118 = vector.extract_strided_slice %111 {offsets = [0, 32], sizes = [2, 32], strides = [1, 1]} : vector<2x128xf32> to vector<2x32xf32>
    %119 = arith.negf %118 : vector<2x32xf32>
    %120 = math.exp %119 : vector<2x32xf32>
    %cst_42 = arith.constant 1.000000e+00 : f32
    %121 = vector.broadcast %cst_42 : f32 to vector<2x32xf32>
    %122 = arith.addf %121, %120 : vector<2x32xf32>
    %123 = arith.divf %121, %122 : vector<2x32xf32>
    %124 = vector.extract_strided_slice %111 {offsets = [0, 64], sizes = [2, 32], strides = [1, 1]} : vector<2x128xf32> to vector<2x32xf32>
    %125 = math.tanh %124 : vector<2x32xf32>
    %126 = vector.extract_strided_slice %111 {offsets = [0, 96], sizes = [2, 32], strides = [1, 1]} : vector<2x128xf32> to vector<2x32xf32>
    %127 = arith.negf %126 : vector<2x32xf32>
    %128 = math.exp %127 : vector<2x32xf32>
    %cst_43 = arith.constant 1.000000e+00 : f32
    %129 = vector.broadcast %cst_43 : f32 to vector<2x32xf32>
    %130 = arith.addf %129, %128 : vector<2x32xf32>
    %131 = arith.divf %129, %130 : vector<2x32xf32>
    %132 = arith.mulf %123, %99 : vector<2x32xf32>
    %133 = arith.mulf %117, %125 : vector<2x32xf32>
    %134 = arith.addf %132, %133 : vector<2x32xf32>
    %135 = math.tanh %134 : vector<2x32xf32>
    %136 = arith.mulf %131, %135 : vector<2x32xf32>
    %137 = vector.broadcast %c2_i32 : i32 to vector<2x1xi32>
    %138 = arith.cmpi slt, %137, %0 : vector<2x1xi32>
    %139 = vector.shape_cast %138 : vector<2x1xi1> to vector<2x1xi1>
    %140 = vector.broadcast %139 : vector<2x1xi1> to vector<2x32xi1>
    %141 = arith.select %140, %136, %96 : vector<2x32xi1>, vector<2x32xf32>
    %142 = vector.shape_cast %138 : vector<2x1xi1> to vector<2x1xi1>
    %143 = vector.broadcast %142 : vector<2x1xi1> to vector<2x32xi1>
    %144 = arith.select %143, %134, %99 : vector<2x32xi1>, vector<2x32xf32>
    %145 = arith.index_cast %c2_i32 : i32 to index
    %c0_44 = arith.constant 0 : index
    %c0_45 = arith.constant 0 : index
    %146 = vector.load %arg8[%145, %c0_44, %c0_45] : memref<8x2x32xf32, #tpu.memory_space<vmem>>, vector<1x2x32xf32>
    %147 = vector.shape_cast %146 : vector<1x2x32xf32> to vector<2x32xf32>
    %148 = vector.shape_cast %141 : vector<2x32xf32> to vector<1x2x32xf32>
    tpu.vector_store %arg8[%145, %c0_44, %c0_45], %148 {strides = array<i32>} : memref<8x2x32xf32, #tpu.memory_space<vmem>>, vector<1x2x32xf32>,
    %c3_i32 = arith.constant 3 : i32
    %149 = arith.index_cast %c3_i32 : i32 to index
    %c0_46 = arith.constant 0 : index
    %c0_47 = arith.constant 0 : index
    %150 = vector.load %arg8[%149, %c0_46, %c0_47] : memref<8x2x32xf32, #tpu.memory_space<vmem>>, vector<1x2x32xf32>
    %151 = vector.shape_cast %150 : vector<1x2x32xf32> to vector<2x32xf32>
    %cst_48 = arith.constant dense<0.000000e+00> : vector<2x128xf32>
    %152 = tpu.matmul %151, %7, %cst_48 {dimension_numbers = #tpu.dot_dimension_numbers<[1], [0], [0], [1], [0, 0, 1, 1], [], []>} : vector<2x32xf32>, vector<32x128xf32>, vector<2x128xf32> -> vector<2x128xf32>
    %cst_49 = arith.constant dense<0.000000e+00> : vector<2x128xf32>
    %153 = tpu.matmul %141, %9, %cst_49 {dimension_numbers = #tpu.dot_dimension_numbers<[1], [0], [0], [1], [0, 0, 1, 1], [], []>} : vector<2x32xf32>, vector<32x128xf32>, vector<2x128xf32> -> vector<2x128xf32>
    %154 = arith.addf %152, %153 : vector<2x128xf32>
    %155 = vector.broadcast %11 : vector<1x128xf32> to vector<2x128xf32>
    %156 = arith.addf %154, %155 : vector<2x128xf32>
    %157 = vector.extract_strided_slice %156 {offsets = [0, 0], sizes = [2, 32], strides = [1, 1]} : vector<2x128xf32> to vector<2x32xf32>
    %158 = arith.negf %157 : vector<2x32xf32>
    %159 = math.exp %158 : vector<2x32xf32>
    %cst_50 = arith.constant 1.000000e+00 : f32
    %160 = vector.broadcast %cst_50 : f32 to vector<2x32xf32>
    %161 = arith.addf %160, %159 : vector<2x32xf32>
    %162 = arith.divf %160, %161 : vector<2x32xf32>
    %163 = vector.extract_strided_slice %156 {offsets = [0, 32], sizes = [2, 32], strides = [1, 1]} : vector<2x128xf32> to vector<2x32xf32>
    %164 = arith.negf %163 : vector<2x32xf32>
    %165 = math.exp %164 : vector<2x32xf32>
    %cst_51 = arith.constant 1.000000e+00 : f32
    %166 = vector.broadcast %cst_51 : f32 to vector<2x32xf32>
    %167 = arith.addf %166, %165 : vector<2x32xf32>
    %168 = arith.divf %166, %167 : vector<2x32xf32>
    %169 = vector.extract_strided_slice %156 {offsets = [0, 64], sizes = [2, 32], strides = [1, 1]} : vector<2x128xf32> to vector<2x32xf32>
    %170 = math.tanh %169 : vector<2x32xf32>
    %171 = vector.extract_strided_slice %156 {offsets = [0, 96], sizes = [2, 32], strides = [1, 1]} : vector<2x128xf32> to vector<2x32xf32>
    %172 = arith.negf %171 : vector<2x32xf32>
    %173 = math.exp %172 : vector<2x32xf32>
    %cst_52 = arith.constant 1.000000e+00 : f32
    %174 = vector.broadcast %cst_52 : f32 to vector<2x32xf32>
    %175 = arith.addf %174, %173 : vector<2x32xf32>
    %176 = arith.divf %174, %175 : vector<2x32xf32>
    %177 = arith.mulf %168, %144 : vector<2x32xf32>
    %178 = arith.mulf %162, %170 : vector<2x32xf32>
    %179 = arith.addf %177, %178 : vector<2x32xf32>
    %180 = math.tanh %179 : vector<2x32xf32>
    %181 = arith.mulf %176, %180 : vector<2x32xf32>
    %182 = vector.broadcast %c3_i32 : i32 to vector<2x1xi32>
    %183 = arith.cmpi slt, %182, %0 : vector<2x1xi32>
    %184 = vector.shape_cast %183 : vector<2x1xi1> to vector<2x1xi1>
    %185 = vector.broadcast %184 : vector<2x1xi1> to vector<2x32xi1>
    %186 = arith.select %185, %181, %141 : vector<2x32xi1>, vector<2x32xf32>
    %187 = vector.shape_cast %183 : vector<2x1xi1> to vector<2x1xi1>
    %188 = vector.broadcast %187 : vector<2x1xi1> to vector<2x32xi1>
    %189 = arith.select %188, %179, %144 : vector<2x32xi1>, vector<2x32xf32>
    %190 = arith.index_cast %c3_i32 : i32 to index
    %c0_53 = arith.constant 0 : index
    %c0_54 = arith.constant 0 : index
    %191 = vector.load %arg8[%190, %c0_53, %c0_54] : memref<8x2x32xf32, #tpu.memory_space<vmem>>, vector<1x2x32xf32>
    %192 = vector.shape_cast %191 : vector<1x2x32xf32> to vector<2x32xf32>
    %193 = vector.shape_cast %186 : vector<2x32xf32> to vector<1x2x32xf32>
    tpu.vector_store %arg8[%190, %c0_53, %c0_54], %193 {strides = array<i32>} : memref<8x2x32xf32, #tpu.memory_space<vmem>>, vector<1x2x32xf32>,
    %c4_i32 = arith.constant 4 : i32
    %194 = arith.index_cast %c4_i32 : i32 to index
    %c0_55 = arith.constant 0 : index
    %c0_56 = arith.constant 0 : index
    %195 = vector.load %arg8[%194, %c0_55, %c0_56] : memref<8x2x32xf32, #tpu.memory_space<vmem>>, vector<1x2x32xf32>
    %196 = vector.shape_cast %195 : vector<1x2x32xf32> to vector<2x32xf32>
    %cst_57 = arith.constant dense<0.000000e+00> : vector<2x128xf32>
    %197 = tpu.matmul %196, %7, %cst_57 {dimension_numbers = #tpu.dot_dimension_numbers<[1], [0], [0], [1], [0, 0, 1, 1], [], []>} : vector<2x32xf32>, vector<32x128xf32>, vector<2x128xf32> -> vector<2x128xf32>
    %cst_58 = arith.constant dense<0.000000e+00> : vector<2x128xf32>
    %198 = tpu.matmul %186, %9, %cst_58 {dimension_numbers = #tpu.dot_dimension_numbers<[1], [0], [0], [1], [0, 0, 1, 1], [], []>} : vector<2x32xf32>, vector<32x128xf32>, vector<2x128xf32> -> vector<2x128xf32>
    %199 = arith.addf %197, %198 : vector<2x128xf32>
    %200 = vector.broadcast %11 : vector<1x128xf32> to vector<2x128xf32>
    %201 = arith.addf %199, %200 : vector<2x128xf32>
    %202 = vector.extract_strided_slice %201 {offsets = [0, 0], sizes = [2, 32], strides = [1, 1]} : vector<2x128xf32> to vector<2x32xf32>
    %203 = arith.negf %202 : vector<2x32xf32>
    %204 = math.exp %203 : vector<2x32xf32>
    %cst_59 = arith.constant 1.000000e+00 : f32
    %205 = vector.broadcast %cst_59 : f32 to vector<2x32xf32>
    %206 = arith.addf %205, %204 : vector<2x32xf32>
    %207 = arith.divf %205, %206 : vector<2x32xf32>
    %208 = vector.extract_strided_slice %201 {offsets = [0, 32], sizes = [2, 32], strides = [1, 1]} : vector<2x128xf32> to vector<2x32xf32>
    %209 = arith.negf %208 : vector<2x32xf32>
    %210 = math.exp %209 : vector<2x32xf32>
    %cst_60 = arith.constant 1.000000e+00 : f32
    %211 = vector.broadcast %cst_60 : f32 to vector<2x32xf32>
    %212 = arith.addf %211, %210 : vector<2x32xf32>
    %213 = arith.divf %211, %212 : vector<2x32xf32>
    %214 = vector.extract_strided_slice %201 {offsets = [0, 64], sizes = [2, 32], strides = [1, 1]} : vector<2x128xf32> to vector<2x32xf32>
    %215 = math.tanh %214 : vector<2x32xf32>
    %216 = vector.extract_strided_slice %201 {offsets = [0, 96], sizes = [2, 32], strides = [1, 1]} : vector<2x128xf32> to vector<2x32xf32>
    %217 = arith.negf %216 : vector<2x32xf32>
    %218 = math.exp %217 : vector<2x32xf32>
    %cst_61 = arith.constant 1.000000e+00 : f32
    %219 = vector.broadcast %cst_61 : f32 to vector<2x32xf32>
    %220 = arith.addf %219, %218 : vector<2x32xf32>
    %221 = arith.divf %219, %220 : vector<2x32xf32>
    %222 = arith.mulf %213, %189 : vector<2x32xf32>
    %223 = arith.mulf %207, %215 : vector<2x32xf32>
    %224 = arith.addf %222, %223 : vector<2x32xf32>
    %225 = math.tanh %224 : vector<2x32xf32>
    %226 = arith.mulf %221, %225 : vector<2x32xf32>
    %227 = vector.broadcast %c4_i32 : i32 to vector<2x1xi32>
    %228 = arith.cmpi slt, %227, %0 : vector<2x1xi32>
    %229 = vector.shape_cast %228 : vector<2x1xi1> to vector<2x1xi1>
    %230 = vector.broadcast %229 : vector<2x1xi1> to vector<2x32xi1>
    %231 = arith.select %230, %226, %186 : vector<2x32xi1>, vector<2x32xf32>
    %232 = vector.shape_cast %228 : vector<2x1xi1> to vector<2x1xi1>
    %233 = vector.broadcast %232 : vector<2x1xi1> to vector<2x32xi1>
    %234 = arith.select %233, %224, %189 : vector<2x32xi1>, vector<2x32xf32>
    %235 = arith.index_cast %c4_i32 : i32 to index
    %c0_62 = arith.constant 0 : index
    %c0_63 = arith.constant 0 : index
    %236 = vector.load %arg8[%235, %c0_62, %c0_63] : memref<8x2x32xf32, #tpu.memory_space<vmem>>, vector<1x2x32xf32>
    %237 = vector.shape_cast %236 : vector<1x2x32xf32> to vector<2x32xf32>
    %238 = vector.shape_cast %231 : vector<2x32xf32> to vector<1x2x32xf32>
    tpu.vector_store %arg8[%235, %c0_62, %c0_63], %238 {strides = array<i32>} : memref<8x2x32xf32, #tpu.memory_space<vmem>>, vector<1x2x32xf32>,
    %c5_i32 = arith.constant 5 : i32
    %239 = arith.index_cast %c5_i32 : i32 to index
    %c0_64 = arith.constant 0 : index
    %c0_65 = arith.constant 0 : index
    %240 = vector.load %arg8[%239, %c0_64, %c0_65] : memref<8x2x32xf32, #tpu.memory_space<vmem>>, vector<1x2x32xf32>
    %241 = vector.shape_cast %240 : vector<1x2x32xf32> to vector<2x32xf32>
    %cst_66 = arith.constant dense<0.000000e+00> : vector<2x128xf32>
    %242 = tpu.matmul %241, %7, %cst_66 {dimension_numbers = #tpu.dot_dimension_numbers<[1], [0], [0], [1], [0, 0, 1, 1], [], []>} : vector<2x32xf32>, vector<32x128xf32>, vector<2x128xf32> -> vector<2x128xf32>
    %cst_67 = arith.constant dense<0.000000e+00> : vector<2x128xf32>
    %243 = tpu.matmul %231, %9, %cst_67 {dimension_numbers = #tpu.dot_dimension_numbers<[1], [0], [0], [1], [0, 0, 1, 1], [], []>} : vector<2x32xf32>, vector<32x128xf32>, vector<2x128xf32> -> vector<2x128xf32>
    %244 = arith.addf %242, %243 : vector<2x128xf32>
    %245 = vector.broadcast %11 : vector<1x128xf32> to vector<2x128xf32>
    %246 = arith.addf %244, %245 : vector<2x128xf32>
    %247 = vector.extract_strided_slice %246 {offsets = [0, 0], sizes = [2, 32], strides = [1, 1]} : vector<2x128xf32> to vector<2x32xf32>
    %248 = arith.negf %247 : vector<2x32xf32>
    %249 = math.exp %248 : vector<2x32xf32>
    %cst_68 = arith.constant 1.000000e+00 : f32
    %250 = vector.broadcast %cst_68 : f32 to vector<2x32xf32>
    %251 = arith.addf %250, %249 : vector<2x32xf32>
    %252 = arith.divf %250, %251 : vector<2x32xf32>
    %253 = vector.extract_strided_slice %246 {offsets = [0, 32], sizes = [2, 32], strides = [1, 1]} : vector<2x128xf32> to vector<2x32xf32>
    %254 = arith.negf %253 : vector<2x32xf32>
    %255 = math.exp %254 : vector<2x32xf32>
    %cst_69 = arith.constant 1.000000e+00 : f32
    %256 = vector.broadcast %cst_69 : f32 to vector<2x32xf32>
    %257 = arith.addf %256, %255 : vector<2x32xf32>
    %258 = arith.divf %256, %257 : vector<2x32xf32>
    %259 = vector.extract_strided_slice %246 {offsets = [0, 64], sizes = [2, 32], strides = [1, 1]} : vector<2x128xf32> to vector<2x32xf32>
    %260 = math.tanh %259 : vector<2x32xf32>
    %261 = vector.extract_strided_slice %246 {offsets = [0, 96], sizes = [2, 32], strides = [1, 1]} : vector<2x128xf32> to vector<2x32xf32>
    %262 = arith.negf %261 : vector<2x32xf32>
    %263 = math.exp %262 : vector<2x32xf32>
    %cst_70 = arith.constant 1.000000e+00 : f32
    %264 = vector.broadcast %cst_70 : f32 to vector<2x32xf32>
    %265 = arith.addf %264, %263 : vector<2x32xf32>
    %266 = arith.divf %264, %265 : vector<2x32xf32>
    %267 = arith.mulf %258, %234 : vector<2x32xf32>
    %268 = arith.mulf %252, %260 : vector<2x32xf32>
    %269 = arith.addf %267, %268 : vector<2x32xf32>
    %270 = math.tanh %269 : vector<2x32xf32>
    %271 = arith.mulf %266, %270 : vector<2x32xf32>
    %272 = vector.broadcast %c5_i32 : i32 to vector<2x1xi32>
    %273 = arith.cmpi slt, %272, %0 : vector<2x1xi32>
    %274 = vector.shape_cast %273 : vector<2x1xi1> to vector<2x1xi1>
    %275 = vector.broadcast %274 : vector<2x1xi1> to vector<2x32xi1>
    %276 = arith.select %275, %271, %231 : vector<2x32xi1>, vector<2x32xf32>
    %277 = vector.shape_cast %273 : vector<2x1xi1> to vector<2x1xi1>
    %278 = vector.broadcast %277 : vector<2x1xi1> to vector<2x32xi1>
    %279 = arith.select %278, %269, %234 : vector<2x32xi1>, vector<2x32xf32>
    %280 = arith.index_cast %c5_i32 : i32 to index
    %c0_71 = arith.constant 0 : index
    %c0_72 = arith.constant 0 : index
    %281 = vector.load %arg8[%280, %c0_71, %c0_72] : memref<8x2x32xf32, #tpu.memory_space<vmem>>, vector<1x2x32xf32>
    %282 = vector.shape_cast %281 : vector<1x2x32xf32> to vector<2x32xf32>
    %283 = vector.shape_cast %276 : vector<2x32xf32> to vector<1x2x32xf32>
    tpu.vector_store %arg8[%280, %c0_71, %c0_72], %283 {strides = array<i32>} : memref<8x2x32xf32, #tpu.memory_space<vmem>>, vector<1x2x32xf32>,
    %c6_i32 = arith.constant 6 : i32
    %284 = arith.index_cast %c6_i32 : i32 to index
    %c0_73 = arith.constant 0 : index
    %c0_74 = arith.constant 0 : index
    %285 = vector.load %arg8[%284, %c0_73, %c0_74] : memref<8x2x32xf32, #tpu.memory_space<vmem>>, vector<1x2x32xf32>
    %286 = vector.shape_cast %285 : vector<1x2x32xf32> to vector<2x32xf32>
    %cst_75 = arith.constant dense<0.000000e+00> : vector<2x128xf32>
    %287 = tpu.matmul %286, %7, %cst_75 {dimension_numbers = #tpu.dot_dimension_numbers<[1], [0], [0], [1], [0, 0, 1, 1], [], []>} : vector<2x32xf32>, vector<32x128xf32>, vector<2x128xf32> -> vector<2x128xf32>
    %cst_76 = arith.constant dense<0.000000e+00> : vector<2x128xf32>
    %288 = tpu.matmul %276, %9, %cst_76 {dimension_numbers = #tpu.dot_dimension_numbers<[1], [0], [0], [1], [0, 0, 1, 1], [], []>} : vector<2x32xf32>, vector<32x128xf32>, vector<2x128xf32> -> vector<2x128xf32>
    %289 = arith.addf %287, %288 : vector<2x128xf32>
    %290 = vector.broadcast %11 : vector<1x128xf32> to vector<2x128xf32>
    %291 = arith.addf %289, %290 : vector<2x128xf32>
    %292 = vector.extract_strided_slice %291 {offsets = [0, 0], sizes = [2, 32], strides = [1, 1]} : vector<2x128xf32> to vector<2x32xf32>
    %293 = arith.negf %292 : vector<2x32xf32>
    %294 = math.exp %293 : vector<2x32xf32>
    %cst_77 = arith.constant 1.000000e+00 : f32
    %295 = vector.broadcast %cst_77 : f32 to vector<2x32xf32>
    %296 = arith.addf %295, %294 : vector<2x32xf32>
    %297 = arith.divf %295, %296 : vector<2x32xf32>
    %298 = vector.extract_strided_slice %291 {offsets = [0, 32], sizes = [2, 32], strides = [1, 1]} : vector<2x128xf32> to vector<2x32xf32>
    %299 = arith.negf %298 : vector<2x32xf32>
    %300 = math.exp %299 : vector<2x32xf32>
    %cst_78 = arith.constant 1.000000e+00 : f32
    %301 = vector.broadcast %cst_78 : f32 to vector<2x32xf32>
    %302 = arith.addf %301, %300 : vector<2x32xf32>
    %303 = arith.divf %301, %302 : vector<2x32xf32>
    %304 = vector.extract_strided_slice %291 {offsets = [0, 64], sizes = [2, 32], strides = [1, 1]} : vector<2x128xf32> to vector<2x32xf32>
    %305 = math.tanh %304 : vector<2x32xf32>
    %306 = vector.extract_strided_slice %291 {offsets = [0, 96], sizes = [2, 32], strides = [1, 1]} : vector<2x128xf32> to vector<2x32xf32>
    %307 = arith.negf %306 : vector<2x32xf32>
    %308 = math.exp %307 : vector<2x32xf32>
    %cst_79 = arith.constant 1.000000e+00 : f32
    %309 = vector.broadcast %cst_79 : f32 to vector<2x32xf32>
    %310 = arith.addf %309, %308 : vector<2x32xf32>
    %311 = arith.divf %309, %310 : vector<2x32xf32>
    %312 = arith.mulf %303, %279 : vector<2x32xf32>
    %313 = arith.mulf %297, %305 : vector<2x32xf32>
    %314 = arith.addf %312, %313 : vector<2x32xf32>
    %315 = math.tanh %314 : vector<2x32xf32>
    %316 = arith.mulf %311, %315 : vector<2x32xf32>
    %317 = vector.broadcast %c6_i32 : i32 to vector<2x1xi32>
    %318 = arith.cmpi slt, %317, %0 : vector<2x1xi32>
    %319 = vector.shape_cast %318 : vector<2x1xi1> to vector<2x1xi1>
    %320 = vector.broadcast %319 : vector<2x1xi1> to vector<2x32xi1>
    %321 = arith.select %320, %316, %276 : vector<2x32xi1>, vector<2x32xf32>
    %322 = vector.shape_cast %318 : vector<2x1xi1> to vector<2x1xi1>
    %323 = vector.broadcast %322 : vector<2x1xi1> to vector<2x32xi1>
    %324 = arith.select %323, %314, %279 : vector<2x32xi1>, vector<2x32xf32>
    %325 = arith.index_cast %c6_i32 : i32 to index
    %c0_80 = arith.constant 0 : index
    %c0_81 = arith.constant 0 : index
    %326 = vector.load %arg8[%325, %c0_80, %c0_81] : memref<8x2x32xf32, #tpu.memory_space<vmem>>, vector<1x2x32xf32>
    %327 = vector.shape_cast %326 : vector<1x2x32xf32> to vector<2x32xf32>
    %328 = vector.shape_cast %321 : vector<2x32xf32> to vector<1x2x32xf32>
    tpu.vector_store %arg8[%325, %c0_80, %c0_81], %328 {strides = array<i32>} : memref<8x2x32xf32, #tpu.memory_space<vmem>>, vector<1x2x32xf32>,
    %c7_i32 = arith.constant 7 : i32
    %329 = arith.index_cast %c7_i32 : i32 to index
    %c0_82 = arith.constant 0 : index
    %c0_83 = arith.constant 0 : index
    %330 = vector.load %arg8[%329, %c0_82, %c0_83] : memref<8x2x32xf32, #tpu.memory_space<vmem>>, vector<1x2x32xf32>
    %331 = vector.shape_cast %330 : vector<1x2x32xf32> to vector<2x32xf32>
    %cst_84 = arith.constant dense<0.000000e+00> : vector<2x128xf32>
    %332 = tpu.matmul %331, %7, %cst_84 {dimension_numbers = #tpu.dot_dimension_numbers<[1], [0], [0], [1], [0, 0, 1, 1], [], []>} : vector<2x32xf32>, vector<32x128xf32>, vector<2x128xf32> -> vector<2x128xf32>
    %cst_85 = arith.constant dense<0.000000e+00> : vector<2x128xf32>
    %333 = tpu.matmul %321, %9, %cst_85 {dimension_numbers = #tpu.dot_dimension_numbers<[1], [0], [0], [1], [0, 0, 1, 1], [], []>} : vector<2x32xf32>, vector<32x128xf32>, vector<2x128xf32> -> vector<2x128xf32>
    %334 = arith.addf %332, %333 : vector<2x128xf32>
    %335 = vector.broadcast %11 : vector<1x128xf32> to vector<2x128xf32>
    %336 = arith.addf %334, %335 : vector<2x128xf32>
    %337 = vector.extract_strided_slice %336 {offsets = [0, 0], sizes = [2, 32], strides = [1, 1]} : vector<2x128xf32> to vector<2x32xf32>
    %338 = arith.negf %337 : vector<2x32xf32>
    %339 = math.exp %338 : vector<2x32xf32>
    %cst_86 = arith.constant 1.000000e+00 : f32
    %340 = vector.broadcast %cst_86 : f32 to vector<2x32xf32>
    %341 = arith.addf %340, %339 : vector<2x32xf32>
    %342 = arith.divf %340, %341 : vector<2x32xf32>
    %343 = vector.extract_strided_slice %336 {offsets = [0, 32], sizes = [2, 32], strides = [1, 1]} : vector<2x128xf32> to vector<2x32xf32>
    %344 = arith.negf %343 : vector<2x32xf32>
    %345 = math.exp %344 : vector<2x32xf32>
    %cst_87 = arith.constant 1.000000e+00 : f32
    %346 = vector.broadcast %cst_87 : f32 to vector<2x32xf32>
    %347 = arith.addf %346, %345 : vector<2x32xf32>
    %348 = arith.divf %346, %347 : vector<2x32xf32>
    %349 = vector.extract_strided_slice %336 {offsets = [0, 64], sizes = [2, 32], strides = [1, 1]} : vector<2x128xf32> to vector<2x32xf32>
    %350 = math.tanh %349 : vector<2x32xf32>
    %351 = vector.extract_strided_slice %336 {offsets = [0, 96], sizes = [2, 32], strides = [1, 1]} : vector<2x128xf32> to vector<2x32xf32>
    %352 = arith.negf %351 : vector<2x32xf32>
    %353 = math.exp %352 : vector<2x32xf32>
    %cst_88 = arith.constant 1.000000e+00 : f32
    %354 = vector.broadcast %cst_88 : f32 to vector<2x32xf32>
    %355 = arith.addf %354, %353 : vector<2x32xf32>
    %356 = arith.divf %354, %355 : vector<2x32xf32>
    %357 = arith.mulf %348, %324 : vector<2x32xf32>
    %358 = arith.mulf %342, %350 : vector<2x32xf32>
    %359 = arith.addf %357, %358 : vector<2x32xf32>
    %360 = math.tanh %359 : vector<2x32xf32>
    %361 = arith.mulf %356, %360 : vector<2x32xf32>
    %362 = vector.broadcast %c7_i32 : i32 to vector<2x1xi32>
    %363 = arith.cmpi slt, %362, %0 : vector<2x1xi32>
    %364 = vector.shape_cast %363 : vector<2x1xi1> to vector<2x1xi1>
    %365 = vector.broadcast %364 : vector<2x1xi1> to vector<2x32xi1>
    %366 = arith.select %365, %361, %321 : vector<2x32xi1>, vector<2x32xf32>
    %367 = vector.shape_cast %363 : vector<2x1xi1> to vector<2x1xi1>
    %368 = vector.broadcast %367 : vector<2x1xi1> to vector<2x32xi1>
    %369 = arith.select %368, %359, %324 : vector<2x32xi1>, vector<2x32xf32>
    %370 = arith.index_cast %c7_i32 : i32 to index
    %c0_89 = arith.constant 0 : index
    %c0_90 = arith.constant 0 : index
    %371 = vector.load %arg8[%370, %c0_89, %c0_90] : memref<8x2x32xf32, #tpu.memory_space<vmem>>, vector<1x2x32xf32>
    %372 = vector.shape_cast %371 : vector<1x2x32xf32> to vector<2x32xf32>
    %373 = vector.shape_cast %366 : vector<2x32xf32> to vector<1x2x32xf32>
    tpu.vector_store %arg8[%370, %c0_89, %c0_90], %373 {strides = array<i32>} : memref<8x2x32xf32, #tpu.memory_space<vmem>>, vector<1x2x32xf32>,
    %c8_i32 = arith.constant 8 : i32
    %c0_91 = arith.constant 0 : index
    %c0_92 = arith.constant 0 : index
    %c0_93 = arith.constant 0 : index
    %374 = vector.load %arg5[%c0_91, %c0_92, %c0_93] : memref<2x32x5xf32, #tpu.memory_space<vmem>>, vector<1x32x5xf32>
    %375 = vector.shape_cast %374 : vector<1x32x5xf32> to vector<32x5xf32>
    %cst_94 = arith.constant dense<0.000000e+00> : vector<2x5xf32>
    %376 = tpu.matmul %366, %375, %cst_94 {dimension_numbers = #tpu.dot_dimension_numbers<[1], [0], [0], [1], [0, 0, 1, 1], [], []>} : vector<2x32xf32>, vector<32x5xf32>, vector<2x5xf32> -> vector<2x5xf32>
    %377 = arith.addf %5, %376 : vector<2x5xf32>
    %c1 = arith.constant 1 : index
    %c0_95 = arith.constant 0 : index
    %c0_96 = arith.constant 0 : index
    %378 = vector.load %arg2[%c1, %c0_95, %c0_96] : memref<2x32x128xf32, #tpu.memory_space<vmem>>, vector<1x32x128xf32>
    %379 = vector.shape_cast %378 : vector<1x32x128xf32> to vector<32x128xf32>
    %c1_97 = arith.constant 1 : index
    %c0_98 = arith.constant 0 : index
    %c0_99 = arith.constant 0 : index
    %380 = vector.load %arg3[%c1_97, %c0_98, %c0_99] : memref<2x32x128xf32, #tpu.memory_space<vmem>>, vector<1x32x128xf32>
    %381 = vector.shape_cast %380 : vector<1x32x128xf32> to vector<32x128xf32>
    %c1_100 = arith.constant 1 : index
    %c0_101 = arith.constant 0 : index
    %c0_102 = arith.constant 0 : index
    %382 = vector.load %arg4[%c1_100, %c0_101, %c0_102] : memref<2x1x128xf32, #tpu.memory_space<vmem>>, vector<1x1x128xf32>
    %383 = vector.shape_cast %382 : vector<1x1x128xf32> to vector<1x128xf32>
    %cst_103 = arith.constant 0.000000e+00 : f32
    %384 = vector.broadcast %cst_103 : f32 to vector<2x32xf32>
    %cst_104 = arith.constant 0.000000e+00 : f32
    %385 = vector.broadcast %cst_104 : f32 to vector<2x32xf32>
    %c0_i32_105 = arith.constant 0 : i32
    %386 = arith.index_cast %c0_i32_105 : i32 to index
    %c0_106 = arith.constant 0 : index
    %c0_107 = arith.constant 0 : index
    %387 = vector.load %arg8[%386, %c0_106, %c0_107] : memref<8x2x32xf32, #tpu.memory_space<vmem>>, vector<1x2x32xf32>
    %388 = vector.shape_cast %387 : vector<1x2x32xf32> to vector<2x32xf32>
    %cst_108 = arith.constant dense<0.000000e+00> : vector<2x128xf32>
    %389 = tpu.matmul %388, %379, %cst_108 {dimension_numbers = #tpu.dot_dimension_numbers<[1], [0], [0], [1], [0, 0, 1, 1], [], []>} : vector<2x32xf32>, vector<32x128xf32>, vector<2x128xf32> -> vector<2x128xf32>
    %cst_109 = arith.constant dense<0.000000e+00> : vector<2x128xf32>
    %390 = tpu.matmul %384, %381, %cst_109 {dimension_numbers = #tpu.dot_dimension_numbers<[1], [0], [0], [1], [0, 0, 1, 1], [], []>} : vector<2x32xf32>, vector<32x128xf32>, vector<2x128xf32> -> vector<2x128xf32>
    %391 = arith.addf %389, %390 : vector<2x128xf32>
    %392 = vector.broadcast %383 : vector<1x128xf32> to vector<2x128xf32>
    %393 = arith.addf %391, %392 : vector<2x128xf32>
    %394 = vector.extract_strided_slice %393 {offsets = [0, 0], sizes = [2, 32], strides = [1, 1]} : vector<2x128xf32> to vector<2x32xf32>
    %395 = arith.negf %394 : vector<2x32xf32>
    %396 = math.exp %395 : vector<2x32xf32>
    %cst_110 = arith.constant 1.000000e+00 : f32
    %397 = vector.broadcast %cst_110 : f32 to vector<2x32xf32>
    %398 = arith.addf %397, %396 : vector<2x32xf32>
    %399 = arith.divf %397, %398 : vector<2x32xf32>
    %400 = vector.extract_strided_slice %393 {offsets = [0, 32], sizes = [2, 32], strides = [1, 1]} : vector<2x128xf32> to vector<2x32xf32>
    %401 = arith.negf %400 : vector<2x32xf32>
    %402 = math.exp %401 : vector<2x32xf32>
    %cst_111 = arith.constant 1.000000e+00 : f32
    %403 = vector.broadcast %cst_111 : f32 to vector<2x32xf32>
    %404 = arith.addf %403, %402 : vector<2x32xf32>
    %405 = arith.divf %403, %404 : vector<2x32xf32>
    %406 = vector.extract_strided_slice %393 {offsets = [0, 64], sizes = [2, 32], strides = [1, 1]} : vector<2x128xf32> to vector<2x32xf32>
    %407 = math.tanh %406 : vector<2x32xf32>
    %408 = vector.extract_strided_slice %393 {offsets = [0, 96], sizes = [2, 32], strides = [1, 1]} : vector<2x128xf32> to vector<2x32xf32>
    %409 = arith.negf %408 : vector<2x32xf32>
    %410 = math.exp %409 : vector<2x32xf32>
    %cst_112 = arith.constant 1.000000e+00 : f32
    %411 = vector.broadcast %cst_112 : f32 to vector<2x32xf32>
    %412 = arith.addf %411, %410 : vector<2x32xf32>
    %413 = arith.divf %411, %412 : vector<2x32xf32>
    %414 = arith.mulf %405, %385 : vector<2x32xf32>
    %415 = arith.mulf %399, %407 : vector<2x32xf32>
    %416 = arith.addf %414, %415 : vector<2x32xf32>
    %417 = math.tanh %416 : vector<2x32xf32>
    %418 = arith.mulf %413, %417 : vector<2x32xf32>
    %419 = vector.broadcast %c0_i32_105 : i32 to vector<2x1xi32>
    %420 = arith.cmpi slt, %419, %0 : vector<2x1xi32>
    %421 = vector.shape_cast %420 : vector<2x1xi1> to vector<2x1xi1>
    %422 = vector.broadcast %421 : vector<2x1xi1> to vector<2x32xi1>
    %423 = arith.select %422, %418, %384 : vector<2x32xi1>, vector<2x32xf32>
    %424 = vector.shape_cast %420 : vector<2x1xi1> to vector<2x1xi1>
    %425 = vector.broadcast %424 : vector<2x1xi1> to vector<2x32xi1>
    %426 = arith.select %425, %416, %385 : vector<2x32xi1>, vector<2x32xf32>
    %427 = arith.index_cast %c0_i32_105 : i32 to index
    %c0_113 = arith.constant 0 : index
    %c0_114 = arith.constant 0 : index
    %428 = vector.load %arg8[%427, %c0_113, %c0_114] : memref<8x2x32xf32, #tpu.memory_space<vmem>>, vector<1x2x32xf32>
    %429 = vector.shape_cast %428 : vector<1x2x32xf32> to vector<2x32xf32>
    %430 = vector.shape_cast %423 : vector<2x32xf32> to vector<1x2x32xf32>
    tpu.vector_store %arg8[%427, %c0_113, %c0_114], %430 {strides = array<i32>} : memref<8x2x32xf32, #tpu.memory_space<vmem>>, vector<1x2x32xf32>,
    %c1_i32_115 = arith.constant 1 : i32
    %431 = arith.index_cast %c1_i32_115 : i32 to index
    %c0_116 = arith.constant 0 : index
    %c0_117 = arith.constant 0 : index
    %432 = vector.load %arg8[%431, %c0_116, %c0_117] : memref<8x2x32xf32, #tpu.memory_space<vmem>>, vector<1x2x32xf32>
    %433 = vector.shape_cast %432 : vector<1x2x32xf32> to vector<2x32xf32>
    %cst_118 = arith.constant dense<0.000000e+00> : vector<2x128xf32>
    %434 = tpu.matmul %433, %379, %cst_118 {dimension_numbers = #tpu.dot_dimension_numbers<[1], [0], [0], [1], [0, 0, 1, 1], [], []>} : vector<2x32xf32>, vector<32x128xf32>, vector<2x128xf32> -> vector<2x128xf32>
    %cst_119 = arith.constant dense<0.000000e+00> : vector<2x128xf32>
    %435 = tpu.matmul %423, %381, %cst_119 {dimension_numbers = #tpu.dot_dimension_numbers<[1], [0], [0], [1], [0, 0, 1, 1], [], []>} : vector<2x32xf32>, vector<32x128xf32>, vector<2x128xf32> -> vector<2x128xf32>
    %436 = arith.addf %434, %435 : vector<2x128xf32>
    %437 = vector.broadcast %383 : vector<1x128xf32> to vector<2x128xf32>
    %438 = arith.addf %436, %437 : vector<2x128xf32>
    %439 = vector.extract_strided_slice %438 {offsets = [0, 0], sizes = [2, 32], strides = [1, 1]} : vector<2x128xf32> to vector<2x32xf32>
    %440 = arith.negf %439 : vector<2x32xf32>
    %441 = math.exp %440 : vector<2x32xf32>
    %cst_120 = arith.constant 1.000000e+00 : f32
    %442 = vector.broadcast %cst_120 : f32 to vector<2x32xf32>
    %443 = arith.addf %442, %441 : vector<2x32xf32>
    %444 = arith.divf %442, %443 : vector<2x32xf32>
    %445 = vector.extract_strided_slice %438 {offsets = [0, 32], sizes = [2, 32], strides = [1, 1]} : vector<2x128xf32> to vector<2x32xf32>
    %446 = arith.negf %445 : vector<2x32xf32>
    %447 = math.exp %446 : vector<2x32xf32>
    %cst_121 = arith.constant 1.000000e+00 : f32
    %448 = vector.broadcast %cst_121 : f32 to vector<2x32xf32>
    %449 = arith.addf %448, %447 : vector<2x32xf32>
    %450 = arith.divf %448, %449 : vector<2x32xf32>
    %451 = vector.extract_strided_slice %438 {offsets = [0, 64], sizes = [2, 32], strides = [1, 1]} : vector<2x128xf32> to vector<2x32xf32>
    %452 = math.tanh %451 : vector<2x32xf32>
    %453 = vector.extract_strided_slice %438 {offsets = [0, 96], sizes = [2, 32], strides = [1, 1]} : vector<2x128xf32> to vector<2x32xf32>
    %454 = arith.negf %453 : vector<2x32xf32>
    %455 = math.exp %454 : vector<2x32xf32>
    %cst_122 = arith.constant 1.000000e+00 : f32
    %456 = vector.broadcast %cst_122 : f32 to vector<2x32xf32>
    %457 = arith.addf %456, %455 : vector<2x32xf32>
    %458 = arith.divf %456, %457 : vector<2x32xf32>
    %459 = arith.mulf %450, %426 : vector<2x32xf32>
    %460 = arith.mulf %444, %452 : vector<2x32xf32>
    %461 = arith.addf %459, %460 : vector<2x32xf32>
    %462 = math.tanh %461 : vector<2x32xf32>
    %463 = arith.mulf %458, %462 : vector<2x32xf32>
    %464 = vector.broadcast %c1_i32_115 : i32 to vector<2x1xi32>
    %465 = arith.cmpi slt, %464, %0 : vector<2x1xi32>
    %466 = vector.shape_cast %465 : vector<2x1xi1> to vector<2x1xi1>
    %467 = vector.broadcast %466 : vector<2x1xi1> to vector<2x32xi1>
    %468 = arith.select %467, %463, %423 : vector<2x32xi1>, vector<2x32xf32>
    %469 = vector.shape_cast %465 : vector<2x1xi1> to vector<2x1xi1>
    %470 = vector.broadcast %469 : vector<2x1xi1> to vector<2x32xi1>
    %471 = arith.select %470, %461, %426 : vector<2x32xi1>, vector<2x32xf32>
    %472 = arith.index_cast %c1_i32_115 : i32 to index
    %c0_123 = arith.constant 0 : index
    %c0_124 = arith.constant 0 : index
    %473 = vector.load %arg8[%472, %c0_123, %c0_124] : memref<8x2x32xf32, #tpu.memory_space<vmem>>, vector<1x2x32xf32>
    %474 = vector.shape_cast %473 : vector<1x2x32xf32> to vector<2x32xf32>
    %475 = vector.shape_cast %468 : vector<2x32xf32> to vector<1x2x32xf32>
    tpu.vector_store %arg8[%472, %c0_123, %c0_124], %475 {strides = array<i32>} : memref<8x2x32xf32, #tpu.memory_space<vmem>>, vector<1x2x32xf32>,
    %c2_i32_125 = arith.constant 2 : i32
    %476 = arith.index_cast %c2_i32_125 : i32 to index
    %c0_126 = arith.constant 0 : index
    %c0_127 = arith.constant 0 : index
    %477 = vector.load %arg8[%476, %c0_126, %c0_127] : memref<8x2x32xf32, #tpu.memory_space<vmem>>, vector<1x2x32xf32>
    %478 = vector.shape_cast %477 : vector<1x2x32xf32> to vector<2x32xf32>
    %cst_128 = arith.constant dense<0.000000e+00> : vector<2x128xf32>
    %479 = tpu.matmul %478, %379, %cst_128 {dimension_numbers = #tpu.dot_dimension_numbers<[1], [0], [0], [1], [0, 0, 1, 1], [], []>} : vector<2x32xf32>, vector<32x128xf32>, vector<2x128xf32> -> vector<2x128xf32>
    %cst_129 = arith.constant dense<0.000000e+00> : vector<2x128xf32>
    %480 = tpu.matmul %468, %381, %cst_129 {dimension_numbers = #tpu.dot_dimension_numbers<[1], [0], [0], [1], [0, 0, 1, 1], [], []>} : vector<2x32xf32>, vector<32x128xf32>, vector<2x128xf32> -> vector<2x128xf32>
    %481 = arith.addf %479, %480 : vector<2x128xf32>
    %482 = vector.broadcast %383 : vector<1x128xf32> to vector<2x128xf32>
    %483 = arith.addf %481, %482 : vector<2x128xf32>
    %484 = vector.extract_strided_slice %483 {offsets = [0, 0], sizes = [2, 32], strides = [1, 1]} : vector<2x128xf32> to vector<2x32xf32>
    %485 = arith.negf %484 : vector<2x32xf32>
    %486 = math.exp %485 : vector<2x32xf32>
    %cst_130 = arith.constant 1.000000e+00 : f32
    %487 = vector.broadcast %cst_130 : f32 to vector<2x32xf32>
    %488 = arith.addf %487, %486 : vector<2x32xf32>
    %489 = arith.divf %487, %488 : vector<2x32xf32>
    %490 = vector.extract_strided_slice %483 {offsets = [0, 32], sizes = [2, 32], strides = [1, 1]} : vector<2x128xf32> to vector<2x32xf32>
    %491 = arith.negf %490 : vector<2x32xf32>
    %492 = math.exp %491 : vector<2x32xf32>
    %cst_131 = arith.constant 1.000000e+00 : f32
    %493 = vector.broadcast %cst_131 : f32 to vector<2x32xf32>
    %494 = arith.addf %493, %492 : vector<2x32xf32>
    %495 = arith.divf %493, %494 : vector<2x32xf32>
    %496 = vector.extract_strided_slice %483 {offsets = [0, 64], sizes = [2, 32], strides = [1, 1]} : vector<2x128xf32> to vector<2x32xf32>
    %497 = math.tanh %496 : vector<2x32xf32>
    %498 = vector.extract_strided_slice %483 {offsets = [0, 96], sizes = [2, 32], strides = [1, 1]} : vector<2x128xf32> to vector<2x32xf32>
    %499 = arith.negf %498 : vector<2x32xf32>
    %500 = math.exp %499 : vector<2x32xf32>
    %cst_132 = arith.constant 1.000000e+00 : f32
    %501 = vector.broadcast %cst_132 : f32 to vector<2x32xf32>
    %502 = arith.addf %501, %500 : vector<2x32xf32>
    %503 = arith.divf %501, %502 : vector<2x32xf32>
    %504 = arith.mulf %495, %471 : vector<2x32xf32>
    %505 = arith.mulf %489, %497 : vector<2x32xf32>
    %506 = arith.addf %504, %505 : vector<2x32xf32>
    %507 = math.tanh %506 : vector<2x32xf32>
    %508 = arith.mulf %503, %507 : vector<2x32xf32>
    %509 = vector.broadcast %c2_i32_125 : i32 to vector<2x1xi32>
    %510 = arith.cmpi slt, %509, %0 : vector<2x1xi32>
    %511 = vector.shape_cast %510 : vector<2x1xi1> to vector<2x1xi1>
    %512 = vector.broadcast %511 : vector<2x1xi1> to vector<2x32xi1>
    %513 = arith.select %512, %508, %468 : vector<2x32xi1>, vector<2x32xf32>
    %514 = vector.shape_cast %510 : vector<2x1xi1> to vector<2x1xi1>
    %515 = vector.broadcast %514 : vector<2x1xi1> to vector<2x32xi1>
    %516 = arith.select %515, %506, %471 : vector<2x32xi1>, vector<2x32xf32>
    %517 = arith.index_cast %c2_i32_125 : i32 to index
    %c0_133 = arith.constant 0 : index
    %c0_134 = arith.constant 0 : index
    %518 = vector.load %arg8[%517, %c0_133, %c0_134] : memref<8x2x32xf32, #tpu.memory_space<vmem>>, vector<1x2x32xf32>
    %519 = vector.shape_cast %518 : vector<1x2x32xf32> to vector<2x32xf32>
    %520 = vector.shape_cast %513 : vector<2x32xf32> to vector<1x2x32xf32>
    tpu.vector_store %arg8[%517, %c0_133, %c0_134], %520 {strides = array<i32>} : memref<8x2x32xf32, #tpu.memory_space<vmem>>, vector<1x2x32xf32>,
    %c3_i32_135 = arith.constant 3 : i32
    %521 = arith.index_cast %c3_i32_135 : i32 to index
    %c0_136 = arith.constant 0 : index
    %c0_137 = arith.constant 0 : index
    %522 = vector.load %arg8[%521, %c0_136, %c0_137] : memref<8x2x32xf32, #tpu.memory_space<vmem>>, vector<1x2x32xf32>
    %523 = vector.shape_cast %522 : vector<1x2x32xf32> to vector<2x32xf32>
    %cst_138 = arith.constant dense<0.000000e+00> : vector<2x128xf32>
    %524 = tpu.matmul %523, %379, %cst_138 {dimension_numbers = #tpu.dot_dimension_numbers<[1], [0], [0], [1], [0, 0, 1, 1], [], []>} : vector<2x32xf32>, vector<32x128xf32>, vector<2x128xf32> -> vector<2x128xf32>
    %cst_139 = arith.constant dense<0.000000e+00> : vector<2x128xf32>
    %525 = tpu.matmul %513, %381, %cst_139 {dimension_numbers = #tpu.dot_dimension_numbers<[1], [0], [0], [1], [0, 0, 1, 1], [], []>} : vector<2x32xf32>, vector<32x128xf32>, vector<2x128xf32> -> vector<2x128xf32>
    %526 = arith.addf %524, %525 : vector<2x128xf32>
    %527 = vector.broadcast %383 : vector<1x128xf32> to vector<2x128xf32>
    %528 = arith.addf %526, %527 : vector<2x128xf32>
    %529 = vector.extract_strided_slice %528 {offsets = [0, 0], sizes = [2, 32], strides = [1, 1]} : vector<2x128xf32> to vector<2x32xf32>
    %530 = arith.negf %529 : vector<2x32xf32>
    %531 = math.exp %530 : vector<2x32xf32>
    %cst_140 = arith.constant 1.000000e+00 : f32
    %532 = vector.broadcast %cst_140 : f32 to vector<2x32xf32>
    %533 = arith.addf %532, %531 : vector<2x32xf32>
    %534 = arith.divf %532, %533 : vector<2x32xf32>
    %535 = vector.extract_strided_slice %528 {offsets = [0, 32], sizes = [2, 32], strides = [1, 1]} : vector<2x128xf32> to vector<2x32xf32>
    %536 = arith.negf %535 : vector<2x32xf32>
    %537 = math.exp %536 : vector<2x32xf32>
    %cst_141 = arith.constant 1.000000e+00 : f32
    %538 = vector.broadcast %cst_141 : f32 to vector<2x32xf32>
    %539 = arith.addf %538, %537 : vector<2x32xf32>
    %540 = arith.divf %538, %539 : vector<2x32xf32>
    %541 = vector.extract_strided_slice %528 {offsets = [0, 64], sizes = [2, 32], strides = [1, 1]} : vector<2x128xf32> to vector<2x32xf32>
    %542 = math.tanh %541 : vector<2x32xf32>
    %543 = vector.extract_strided_slice %528 {offsets = [0, 96], sizes = [2, 32], strides = [1, 1]} : vector<2x128xf32> to vector<2x32xf32>
    %544 = arith.negf %543 : vector<2x32xf32>
    %545 = math.exp %544 : vector<2x32xf32>
    %cst_142 = arith.constant 1.000000e+00 : f32
    %546 = vector.broadcast %cst_142 : f32 to vector<2x32xf32>
    %547 = arith.addf %546, %545 : vector<2x32xf32>
    %548 = arith.divf %546, %547 : vector<2x32xf32>
    %549 = arith.mulf %540, %516 : vector<2x32xf32>
    %550 = arith.mulf %534, %542 : vector<2x32xf32>
    %551 = arith.addf %549, %550 : vector<2x32xf32>
    %552 = math.tanh %551 : vector<2x32xf32>
    %553 = arith.mulf %548, %552 : vector<2x32xf32>
    %554 = vector.broadcast %c3_i32_135 : i32 to vector<2x1xi32>
    %555 = arith.cmpi slt, %554, %0 : vector<2x1xi32>
    %556 = vector.shape_cast %555 : vector<2x1xi1> to vector<2x1xi1>
    %557 = vector.broadcast %556 : vector<2x1xi1> to vector<2x32xi1>
    %558 = arith.select %557, %553, %513 : vector<2x32xi1>, vector<2x32xf32>
    %559 = vector.shape_cast %555 : vector<2x1xi1> to vector<2x1xi1>
    %560 = vector.broadcast %559 : vector<2x1xi1> to vector<2x32xi1>
    %561 = arith.select %560, %551, %516 : vector<2x32xi1>, vector<2x32xf32>
    %562 = arith.index_cast %c3_i32_135 : i32 to index
    %c0_143 = arith.constant 0 : index
    %c0_144 = arith.constant 0 : index
    %563 = vector.load %arg8[%562, %c0_143, %c0_144] : memref<8x2x32xf32, #tpu.memory_space<vmem>>, vector<1x2x32xf32>
    %564 = vector.shape_cast %563 : vector<1x2x32xf32> to vector<2x32xf32>
    %565 = vector.shape_cast %558 : vector<2x32xf32> to vector<1x2x32xf32>
    tpu.vector_store %arg8[%562, %c0_143, %c0_144], %565 {strides = array<i32>} : memref<8x2x32xf32, #tpu.memory_space<vmem>>, vector<1x2x32xf32>,
    %c4_i32_145 = arith.constant 4 : i32
    %566 = arith.index_cast %c4_i32_145 : i32 to index
    %c0_146 = arith.constant 0 : index
    %c0_147 = arith.constant 0 : index
    %567 = vector.load %arg8[%566, %c0_146, %c0_147] : memref<8x2x32xf32, #tpu.memory_space<vmem>>, vector<1x2x32xf32>
    %568 = vector.shape_cast %567 : vector<1x2x32xf32> to vector<2x32xf32>
    %cst_148 = arith.constant dense<0.000000e+00> : vector<2x128xf32>
    %569 = tpu.matmul %568, %379, %cst_148 {dimension_numbers = #tpu.dot_dimension_numbers<[1], [0], [0], [1], [0, 0, 1, 1], [], []>} : vector<2x32xf32>, vector<32x128xf32>, vector<2x128xf32> -> vector<2x128xf32>
    %cst_149 = arith.constant dense<0.000000e+00> : vector<2x128xf32>
    %570 = tpu.matmul %558, %381, %cst_149 {dimension_numbers = #tpu.dot_dimension_numbers<[1], [0], [0], [1], [0, 0, 1, 1], [], []>} : vector<2x32xf32>, vector<32x128xf32>, vector<2x128xf32> -> vector<2x128xf32>
    %571 = arith.addf %569, %570 : vector<2x128xf32>
    %572 = vector.broadcast %383 : vector<1x128xf32> to vector<2x128xf32>
    %573 = arith.addf %571, %572 : vector<2x128xf32>
    %574 = vector.extract_strided_slice %573 {offsets = [0, 0], sizes = [2, 32], strides = [1, 1]} : vector<2x128xf32> to vector<2x32xf32>
    %575 = arith.negf %574 : vector<2x32xf32>
    %576 = math.exp %575 : vector<2x32xf32>
    %cst_150 = arith.constant 1.000000e+00 : f32
    %577 = vector.broadcast %cst_150 : f32 to vector<2x32xf32>
    %578 = arith.addf %577, %576 : vector<2x32xf32>
    %579 = arith.divf %577, %578 : vector<2x32xf32>
    %580 = vector.extract_strided_slice %573 {offsets = [0, 32], sizes = [2, 32], strides = [1, 1]} : vector<2x128xf32> to vector<2x32xf32>
    %581 = arith.negf %580 : vector<2x32xf32>
    %582 = math.exp %581 : vector<2x32xf32>
    %cst_151 = arith.constant 1.000000e+00 : f32
    %583 = vector.broadcast %cst_151 : f32 to vector<2x32xf32>
    %584 = arith.addf %583, %582 : vector<2x32xf32>
    %585 = arith.divf %583, %584 : vector<2x32xf32>
    %586 = vector.extract_strided_slice %573 {offsets = [0, 64], sizes = [2, 32], strides = [1, 1]} : vector<2x128xf32> to vector<2x32xf32>
    %587 = math.tanh %586 : vector<2x32xf32>
    %588 = vector.extract_strided_slice %573 {offsets = [0, 96], sizes = [2, 32], strides = [1, 1]} : vector<2x128xf32> to vector<2x32xf32>
    %589 = arith.negf %588 : vector<2x32xf32>
    %590 = math.exp %589 : vector<2x32xf32>
    %cst_152 = arith.constant 1.000000e+00 : f32
    %591 = vector.broadcast %cst_152 : f32 to vector<2x32xf32>
    %592 = arith.addf %591, %590 : vector<2x32xf32>
    %593 = arith.divf %591, %592 : vector<2x32xf32>
    %594 = arith.mulf %585, %561 : vector<2x32xf32>
    %595 = arith.mulf %579, %587 : vector<2x32xf32>
    %596 = arith.addf %594, %595 : vector<2x32xf32>
    %597 = math.tanh %596 : vector<2x32xf32>
    %598 = arith.mulf %593, %597 : vector<2x32xf32>
    %599 = vector.broadcast %c4_i32_145 : i32 to vector<2x1xi32>
    %600 = arith.cmpi slt, %599, %0 : vector<2x1xi32>
    %601 = vector.shape_cast %600 : vector<2x1xi1> to vector<2x1xi1>
    %602 = vector.broadcast %601 : vector<2x1xi1> to vector<2x32xi1>
    %603 = arith.select %602, %598, %558 : vector<2x32xi1>, vector<2x32xf32>
    %604 = vector.shape_cast %600 : vector<2x1xi1> to vector<2x1xi1>
    %605 = vector.broadcast %604 : vector<2x1xi1> to vector<2x32xi1>
    %606 = arith.select %605, %596, %561 : vector<2x32xi1>, vector<2x32xf32>
    %607 = arith.index_cast %c4_i32_145 : i32 to index
    %c0_153 = arith.constant 0 : index
    %c0_154 = arith.constant 0 : index
    %608 = vector.load %arg8[%607, %c0_153, %c0_154] : memref<8x2x32xf32, #tpu.memory_space<vmem>>, vector<1x2x32xf32>
    %609 = vector.shape_cast %608 : vector<1x2x32xf32> to vector<2x32xf32>
    %610 = vector.shape_cast %603 : vector<2x32xf32> to vector<1x2x32xf32>
    tpu.vector_store %arg8[%607, %c0_153, %c0_154], %610 {strides = array<i32>} : memref<8x2x32xf32, #tpu.memory_space<vmem>>, vector<1x2x32xf32>,
    %c5_i32_155 = arith.constant 5 : i32
    %611 = arith.index_cast %c5_i32_155 : i32 to index
    %c0_156 = arith.constant 0 : index
    %c0_157 = arith.constant 0 : index
    %612 = vector.load %arg8[%611, %c0_156, %c0_157] : memref<8x2x32xf32, #tpu.memory_space<vmem>>, vector<1x2x32xf32>
    %613 = vector.shape_cast %612 : vector<1x2x32xf32> to vector<2x32xf32>
    %cst_158 = arith.constant dense<0.000000e+00> : vector<2x128xf32>
    %614 = tpu.matmul %613, %379, %cst_158 {dimension_numbers = #tpu.dot_dimension_numbers<[1], [0], [0], [1], [0, 0, 1, 1], [], []>} : vector<2x32xf32>, vector<32x128xf32>, vector<2x128xf32> -> vector<2x128xf32>
    %cst_159 = arith.constant dense<0.000000e+00> : vector<2x128xf32>
    %615 = tpu.matmul %603, %381, %cst_159 {dimension_numbers = #tpu.dot_dimension_numbers<[1], [0], [0], [1], [0, 0, 1, 1], [], []>} : vector<2x32xf32>, vector<32x128xf32>, vector<2x128xf32> -> vector<2x128xf32>
    %616 = arith.addf %614, %615 : vector<2x128xf32>
    %617 = vector.broadcast %383 : vector<1x128xf32> to vector<2x128xf32>
    %618 = arith.addf %616, %617 : vector<2x128xf32>
    %619 = vector.extract_strided_slice %618 {offsets = [0, 0], sizes = [2, 32], strides = [1, 1]} : vector<2x128xf32> to vector<2x32xf32>
    %620 = arith.negf %619 : vector<2x32xf32>
    %621 = math.exp %620 : vector<2x32xf32>
    %cst_160 = arith.constant 1.000000e+00 : f32
    %622 = vector.broadcast %cst_160 : f32 to vector<2x32xf32>
    %623 = arith.addf %622, %621 : vector<2x32xf32>
    %624 = arith.divf %622, %623 : vector<2x32xf32>
    %625 = vector.extract_strided_slice %618 {offsets = [0, 32], sizes = [2, 32], strides = [1, 1]} : vector<2x128xf32> to vector<2x32xf32>
    %626 = arith.negf %625 : vector<2x32xf32>
    %627 = math.exp %626 : vector<2x32xf32>
    %cst_161 = arith.constant 1.000000e+00 : f32
    %628 = vector.broadcast %cst_161 : f32 to vector<2x32xf32>
    %629 = arith.addf %628, %627 : vector<2x32xf32>
    %630 = arith.divf %628, %629 : vector<2x32xf32>
    %631 = vector.extract_strided_slice %618 {offsets = [0, 64], sizes = [2, 32], strides = [1, 1]} : vector<2x128xf32> to vector<2x32xf32>
    %632 = math.tanh %631 : vector<2x32xf32>
    %633 = vector.extract_strided_slice %618 {offsets = [0, 96], sizes = [2, 32], strides = [1, 1]} : vector<2x128xf32> to vector<2x32xf32>
    %634 = arith.negf %633 : vector<2x32xf32>
    %635 = math.exp %634 : vector<2x32xf32>
    %cst_162 = arith.constant 1.000000e+00 : f32
    %636 = vector.broadcast %cst_162 : f32 to vector<2x32xf32>
    %637 = arith.addf %636, %635 : vector<2x32xf32>
    %638 = arith.divf %636, %637 : vector<2x32xf32>
    %639 = arith.mulf %630, %606 : vector<2x32xf32>
    %640 = arith.mulf %624, %632 : vector<2x32xf32>
    %641 = arith.addf %639, %640 : vector<2x32xf32>
    %642 = math.tanh %641 : vector<2x32xf32>
    %643 = arith.mulf %638, %642 : vector<2x32xf32>
    %644 = vector.broadcast %c5_i32_155 : i32 to vector<2x1xi32>
    %645 = arith.cmpi slt, %644, %0 : vector<2x1xi32>
    %646 = vector.shape_cast %645 : vector<2x1xi1> to vector<2x1xi1>
    %647 = vector.broadcast %646 : vector<2x1xi1> to vector<2x32xi1>
    %648 = arith.select %647, %643, %603 : vector<2x32xi1>, vector<2x32xf32>
    %649 = vector.shape_cast %645 : vector<2x1xi1> to vector<2x1xi1>
    %650 = vector.broadcast %649 : vector<2x1xi1> to vector<2x32xi1>
    %651 = arith.select %650, %641, %606 : vector<2x32xi1>, vector<2x32xf32>
    %652 = arith.index_cast %c5_i32_155 : i32 to index
    %c0_163 = arith.constant 0 : index
    %c0_164 = arith.constant 0 : index
    %653 = vector.load %arg8[%652, %c0_163, %c0_164] : memref<8x2x32xf32, #tpu.memory_space<vmem>>, vector<1x2x32xf32>
    %654 = vector.shape_cast %653 : vector<1x2x32xf32> to vector<2x32xf32>
    %655 = vector.shape_cast %648 : vector<2x32xf32> to vector<1x2x32xf32>
    tpu.vector_store %arg8[%652, %c0_163, %c0_164], %655 {strides = array<i32>} : memref<8x2x32xf32, #tpu.memory_space<vmem>>, vector<1x2x32xf32>,
    %c6_i32_165 = arith.constant 6 : i32
    %656 = arith.index_cast %c6_i32_165 : i32 to index
    %c0_166 = arith.constant 0 : index
    %c0_167 = arith.constant 0 : index
    %657 = vector.load %arg8[%656, %c0_166, %c0_167] : memref<8x2x32xf32, #tpu.memory_space<vmem>>, vector<1x2x32xf32>
    %658 = vector.shape_cast %657 : vector<1x2x32xf32> to vector<2x32xf32>
    %cst_168 = arith.constant dense<0.000000e+00> : vector<2x128xf32>
    %659 = tpu.matmul %658, %379, %cst_168 {dimension_numbers = #tpu.dot_dimension_numbers<[1], [0], [0], [1], [0, 0, 1, 1], [], []>} : vector<2x32xf32>, vector<32x128xf32>, vector<2x128xf32> -> vector<2x128xf32>
    %cst_169 = arith.constant dense<0.000000e+00> : vector<2x128xf32>
    %660 = tpu.matmul %648, %381, %cst_169 {dimension_numbers = #tpu.dot_dimension_numbers<[1], [0], [0], [1], [0, 0, 1, 1], [], []>} : vector<2x32xf32>, vector<32x128xf32>, vector<2x128xf32> -> vector<2x128xf32>
    %661 = arith.addf %659, %660 : vector<2x128xf32>
    %662 = vector.broadcast %383 : vector<1x128xf32> to vector<2x128xf32>
    %663 = arith.addf %661, %662 : vector<2x128xf32>
    %664 = vector.extract_strided_slice %663 {offsets = [0, 0], sizes = [2, 32], strides = [1, 1]} : vector<2x128xf32> to vector<2x32xf32>
    %665 = arith.negf %664 : vector<2x32xf32>
    %666 = math.exp %665 : vector<2x32xf32>
    %cst_170 = arith.constant 1.000000e+00 : f32
    %667 = vector.broadcast %cst_170 : f32 to vector<2x32xf32>
    %668 = arith.addf %667, %666 : vector<2x32xf32>
    %669 = arith.divf %667, %668 : vector<2x32xf32>
    %670 = vector.extract_strided_slice %663 {offsets = [0, 32], sizes = [2, 32], strides = [1, 1]} : vector<2x128xf32> to vector<2x32xf32>
    %671 = arith.negf %670 : vector<2x32xf32>
    %672 = math.exp %671 : vector<2x32xf32>
    %cst_171 = arith.constant 1.000000e+00 : f32
    %673 = vector.broadcast %cst_171 : f32 to vector<2x32xf32>
    %674 = arith.addf %673, %672 : vector<2x32xf32>
    %675 = arith.divf %673, %674 : vector<2x32xf32>
    %676 = vector.extract_strided_slice %663 {offsets = [0, 64], sizes = [2, 32], strides = [1, 1]} : vector<2x128xf32> to vector<2x32xf32>
    %677 = math.tanh %676 : vector<2x32xf32>
    %678 = vector.extract_strided_slice %663 {offsets = [0, 96], sizes = [2, 32], strides = [1, 1]} : vector<2x128xf32> to vector<2x32xf32>
    %679 = arith.negf %678 : vector<2x32xf32>
    %680 = math.exp %679 : vector<2x32xf32>
    %cst_172 = arith.constant 1.000000e+00 : f32
    %681 = vector.broadcast %cst_172 : f32 to vector<2x32xf32>
    %682 = arith.addf %681, %680 : vector<2x32xf32>
    %683 = arith.divf %681, %682 : vector<2x32xf32>
    %684 = arith.mulf %675, %651 : vector<2x32xf32>
    %685 = arith.mulf %669, %677 : vector<2x32xf32>
    %686 = arith.addf %684, %685 : vector<2x32xf32>
    %687 = math.tanh %686 : vector<2x32xf32>
    %688 = arith.mulf %683, %687 : vector<2x32xf32>
    %689 = vector.broadcast %c6_i32_165 : i32 to vector<2x1xi32>
    %690 = arith.cmpi slt, %689, %0 : vector<2x1xi32>
    %691 = vector.shape_cast %690 : vector<2x1xi1> to vector<2x1xi1>
    %692 = vector.broadcast %691 : vector<2x1xi1> to vector<2x32xi1>
    %693 = arith.select %692, %688, %648 : vector<2x32xi1>, vector<2x32xf32>
    %694 = vector.shape_cast %690 : vector<2x1xi1> to vector<2x1xi1>
    %695 = vector.broadcast %694 : vector<2x1xi1> to vector<2x32xi1>
    %696 = arith.select %695, %686, %651 : vector<2x32xi1>, vector<2x32xf32>
    %697 = arith.index_cast %c6_i32_165 : i32 to index
    %c0_173 = arith.constant 0 : index
    %c0_174 = arith.constant 0 : index
    %698 = vector.load %arg8[%697, %c0_173, %c0_174] : memref<8x2x32xf32, #tpu.memory_space<vmem>>, vector<1x2x32xf32>
    %699 = vector.shape_cast %698 : vector<1x2x32xf32> to vector<2x32xf32>
    %700 = vector.shape_cast %693 : vector<2x32xf32> to vector<1x2x32xf32>
    tpu.vector_store %arg8[%697, %c0_173, %c0_174], %700 {strides = array<i32>} : memref<8x2x32xf32, #tpu.memory_space<vmem>>, vector<1x2x32xf32>,
    %c7_i32_175 = arith.constant 7 : i32
    %701 = arith.index_cast %c7_i32_175 : i32 to index
    %c0_176 = arith.constant 0 : index
    %c0_177 = arith.constant 0 : index
    %702 = vector.load %arg8[%701, %c0_176, %c0_177] : memref<8x2x32xf32, #tpu.memory_space<vmem>>, vector<1x2x32xf32>
    %703 = vector.shape_cast %702 : vector<1x2x32xf32> to vector<2x32xf32>
    %cst_178 = arith.constant dense<0.000000e+00> : vector<2x128xf32>
    %704 = tpu.matmul %703, %379, %cst_178 {dimension_numbers = #tpu.dot_dimension_numbers<[1], [0], [0], [1], [0, 0, 1, 1], [], []>} : vector<2x32xf32>, vector<32x128xf32>, vector<2x128xf32> -> vector<2x128xf32>
    %cst_179 = arith.constant dense<0.000000e+00> : vector<2x128xf32>
    %705 = tpu.matmul %693, %381, %cst_179 {dimension_numbers = #tpu.dot_dimension_numbers<[1], [0], [0], [1], [0, 0, 1, 1], [], []>} : vector<2x32xf32>, vector<32x128xf32>, vector<2x128xf32> -> vector<2x128xf32>
    %706 = arith.addf %704, %705 : vector<2x128xf32>
    %707 = vector.broadcast %383 : vector<1x128xf32> to vector<2x128xf32>
    %708 = arith.addf %706, %707 : vector<2x128xf32>
    %709 = vector.extract_strided_slice %708 {offsets = [0, 0], sizes = [2, 32], strides = [1, 1]} : vector<2x128xf32> to vector<2x32xf32>
    %710 = arith.negf %709 : vector<2x32xf32>
    %711 = math.exp %710 : vector<2x32xf32>
    %cst_180 = arith.constant 1.000000e+00 : f32
    %712 = vector.broadcast %cst_180 : f32 to vector<2x32xf32>
    %713 = arith.addf %712, %711 : vector<2x32xf32>
    %714 = arith.divf %712, %713 : vector<2x32xf32>
    %715 = vector.extract_strided_slice %708 {offsets = [0, 32], sizes = [2, 32], strides = [1, 1]} : vector<2x128xf32> to vector<2x32xf32>
    %716 = arith.negf %715 : vector<2x32xf32>
    %717 = math.exp %716 : vector<2x32xf32>
    %cst_181 = arith.constant 1.000000e+00 : f32
    %718 = vector.broadcast %cst_181 : f32 to vector<2x32xf32>
    %719 = arith.addf %718, %717 : vector<2x32xf32>
    %720 = arith.divf %718, %719 : vector<2x32xf32>
    %721 = vector.extract_strided_slice %708 {offsets = [0, 64], sizes = [2, 32], strides = [1, 1]} : vector<2x128xf32> to vector<2x32xf32>
    %722 = math.tanh %721 : vector<2x32xf32>
    %723 = vector.extract_strided_slice %708 {offsets = [0, 96], sizes = [2, 32], strides = [1, 1]} : vector<2x128xf32> to vector<2x32xf32>
    %724 = arith.negf %723 : vector<2x32xf32>
    %725 = math.exp %724 : vector<2x32xf32>
    %cst_182 = arith.constant 1.000000e+00 : f32
    %726 = vector.broadcast %cst_182 : f32 to vector<2x32xf32>
    %727 = arith.addf %726, %725 : vector<2x32xf32>
    %728 = arith.divf %726, %727 : vector<2x32xf32>
    %729 = arith.mulf %720, %696 : vector<2x32xf32>
    %730 = arith.mulf %714, %722 : vector<2x32xf32>
    %731 = arith.addf %729, %730 : vector<2x32xf32>
    %732 = math.tanh %731 : vector<2x32xf32>
    %733 = arith.mulf %728, %732 : vector<2x32xf32>
    %734 = vector.broadcast %c7_i32_175 : i32 to vector<2x1xi32>
    %735 = arith.cmpi slt, %734, %0 : vector<2x1xi32>
    %736 = vector.shape_cast %735 : vector<2x1xi1> to vector<2x1xi1>
    %737 = vector.broadcast %736 : vector<2x1xi1> to vector<2x32xi1>
    %738 = arith.select %737, %733, %693 : vector<2x32xi1>, vector<2x32xf32>
    %739 = vector.shape_cast %735 : vector<2x1xi1> to vector<2x1xi1>
    %740 = vector.broadcast %739 : vector<2x1xi1> to vector<2x32xi1>
    %741 = arith.select %740, %731, %696 : vector<2x32xi1>, vector<2x32xf32>
    %742 = arith.index_cast %c7_i32_175 : i32 to index
    %c0_183 = arith.constant 0 : index
    %c0_184 = arith.constant 0 : index
    %743 = vector.load %arg8[%742, %c0_183, %c0_184] : memref<8x2x32xf32, #tpu.memory_space<vmem>>, vector<1x2x32xf32>
    %744 = vector.shape_cast %743 : vector<1x2x32xf32> to vector<2x32xf32>
    %745 = vector.shape_cast %738 : vector<2x32xf32> to vector<1x2x32xf32>
    tpu.vector_store %arg8[%742, %c0_183, %c0_184], %745 {strides = array<i32>} : memref<8x2x32xf32, #tpu.memory_space<vmem>>, vector<1x2x32xf32>,
    %c8_i32_185 = arith.constant 8 : i32
    %c1_186 = arith.constant 1 : index
    %c0_187 = arith.constant 0 : index
    %c0_188 = arith.constant 0 : index
    %746 = vector.load %arg5[%c1_186, %c0_187, %c0_188] : memref<2x32x5xf32, #tpu.memory_space<vmem>>, vector<1x32x5xf32>
    %747 = vector.shape_cast %746 : vector<1x32x5xf32> to vector<32x5xf32>
    %cst_189 = arith.constant dense<0.000000e+00> : vector<2x5xf32>
    %748 = tpu.matmul %738, %747, %cst_189 {dimension_numbers = #tpu.dot_dimension_numbers<[1], [0], [0], [1], [0, 0, 1, 1], [], []>} : vector<2x32xf32>, vector<32x5xf32>, vector<2x5xf32> -> vector<2x5xf32>
    %749 = arith.addf %377, %748 : vector<2x5xf32>
    %c0_190 = arith.constant 0 : index
    %c0_191 = arith.constant 0 : index
    %750 = vector.load %arg7[%c0_190, %c0_191] : memref<2x5xf32, #tpu.memory_space<vmem>>, vector<2x5xf32>
    tpu.vector_store %arg7[%c0_190, %c0_191], %749 {strides = array<i32>} : memref<2x5xf32, #tpu.memory_space<vmem>>, vector<2x5xf32>,
    return
  }
}

</mosaic_0001>

<llo_original>
// kernel: tpu_custom_call.1
$region0: #{tpu_custom_call.1}
  #allocation0 [shape = 'u32[]', space=smem, size = 0x4, offset = 0x4, fixed_abs, tag = 'smem constant byte address 0x4 - core index']
  #allocation1 [shape = 'u32[144,128]{1,0:T(1,128)}', space=vmem, size = 0x12000, scoped, tag = 'internal scratch']
  #allocation2 [shape = 'f32[8,2,32]{2,1,0:T(2,128)}', space=vmem, size = 0x2000, scoped, tag = 'scratch operand']
  %s0 = inlined_call_operand.vmem [shape: f32[8,2,32], index: 0, kind: input, shape index: {}]
  %s1 = inlined_call_operand.vmem [shape: s32[2,1], index: 1, kind: input, shape index: {}]
  %s2 = inlined_call_operand.vmem [shape: f32[2,32,128], index: 2, kind: input, shape index: {}]
  %s3 = inlined_call_operand.hbm [shape: f32[2,32,128], index: 3, kind: input, shape index: {}]
  %s4 = inlined_call_operand.vmem [shape: f32[2,1,128], index: 4, kind: input, shape index: {}]
  %s5 = inlined_call_operand.vmem [shape: f32[2,32,5], index: 5, kind: input, shape index: {}]
  %s6 = inlined_call_operand.vmem [shape: f32[1,5], index: 6, kind: input, shape index: {}]
  %s7 = inlined_call_operand.hbm [shape: f32[2,5], index: 7, kind: output, shape index: {}]
  %s8 = sld [smem:[#allocation0]]
  $region42: #{tpu_custom_call.1} parent=0
    _
  %s10 = ssub.s32 1, %s8
  %s11 = scalar_select 0, %s10, %s8
  $region1: #{tpu_custom_call.1} parent=0
    #allocation3 [shape = 'u8[32768]{0}', space=vmem, size = 0x8000, scoped, tag = 'input window, operand 3, single buffered']
    #allocation4 [shape = 's32[1]{0}', space=sflag, size = 0x4, scoped, tag = 'scoped memory for tpu_custom_call.1']
    #allocation5 [shape = 's32[1]{0}', space=sflag, size = 0x4, scoped, tag = 'scoped memory for tpu_custom_call.1']
    #allocation6 [shape = 'u8[1024]{0}', space=vmem, size = 0x400, scoped, tag = 'output window, operand 0, single buffered']
    %12 = vsyncpa [#allocation4], 0
    %13 = vsyncpa [#allocation5], 0
    // Predicated region
    $region2: #{tpu_custom_call.1} parent=1 // pred_check
      _
    $region3: #{tpu_custom_call.1} parent=1 // pred_check_branch
      %15 = sbr.rel (0) target = $region5
    $region4: #{tpu_custom_call.1} parent=1 // pred_region
      _
    $region5: #{tpu_custom_call.1} parent=1 // pred_fallthru
      _
    // Predicated region
    $region6: #{tpu_custom_call.1} parent=1 // pred_check
      _
    $region7: #{tpu_custom_call.1} parent=1 // pred_check_branch
      %17 = sbr.rel (0) target = $region9
    $region8: #{tpu_custom_call.1} parent=1 // pred_region
      _
    $region9: #{tpu_custom_call.1} parent=1 // pred_fallthru
      _
    // Predicated region
    $region10: #{tpu_custom_call.1} parent=1 // pred_check
      _
    $region11: #{tpu_custom_call.1} parent=1 // pred_check_branch
      %19 = sbr.rel (0) target = $region13
    $region12: #{tpu_custom_call.1} parent=1 // pred_region
      _
    $region13: #{tpu_custom_call.1} parent=1 // pred_fallthru
      _
    // Predicated region
    $region14: #{tpu_custom_call.1} parent=1 // pred_check
      _
    $region15: #{tpu_custom_call.1} parent=1 // pred_check_branch
      %21 = sbr.rel (0) target = $region17
    $region16: #{tpu_custom_call.1} parent=1 // pred_region
      %s23 = ssub.s32 1024, 1024
      %24 = vsyncadd [#allocation4], %s23
      %s25 = sshll.u32 [#allocation3], 4
      %s26 = int_to_ptr.vmem [resolvable:$true] %s25
      %31 = dma.hbm_to_vmem [thread:$0]  %s3, 1024, %s26, [#allocation4], 128, 128, 8
    $region17: #{tpu_custom_call.1} parent=1 // pred_fallthru
      _
    // Predicated region
    $region18: #{tpu_custom_call.1} parent=1 // pred_check
      _
    $region19: #{tpu_custom_call.1} parent=1 // pred_check_branch
      %33 = sbr.rel (0) target = $region21
    $region20: #{tpu_custom_call.1} parent=1 // pred_region
      _
    $region21: #{tpu_custom_call.1} parent=1 // pred_fallthru
      _
    // Predicated region
    $region22: #{tpu_custom_call.1} parent=1 // pred_check
      _
    $region23: #{tpu_custom_call.1} parent=1 // pred_check_branch
      %35 = sbr.rel (0) target = $region25
    $region24: #{tpu_custom_call.1} parent=1 // pred_region
      _
    $region25: #{tpu_custom_call.1} parent=1 // pred_fallthru
      _
    // Predicated region
    $region26: #{tpu_custom_call.1} parent=1 // pred_check
      _
    $region27: #{tpu_custom_call.1} parent=1 // pred_check_branch
      %37 = sbr.rel (0) target = $region29
    $region28: #{tpu_custom_call.1} parent=1 // pred_region
      _
    $region29: #{tpu_custom_call.1} parent=1 // pred_fallthru
      _
    // Predicated region
    $region30: #{tpu_custom_call.1} parent=1 // pred_check
      _
    $region31: #{tpu_custom_call.1} parent=1 // pred_check_branch
      %39 = sbr.rel (0) target = $region33
    $region32: #{tpu_custom_call.1} parent=1 // pred_region
      %40 = dma.done [#allocation4], 1024
    $region33: #{tpu_custom_call.1} parent=1 // pred_fallthru
      _
    %v41 = vld [vmem:[%s1] sm:$0x3]
    %v42 = vld [vmem:[%s0] sm:$0x3]
    %v43 = vld [vmem:[%s0 + $0x2] sm:$0x3]
    %v44 = vld [vmem:[%s0 + $0x4] sm:$0x3]
    %v45 = vld [vmem:[%s0 + $0x6] sm:$0x3]
    %v46 = vld [vmem:[%s0 + $0x8] sm:$0x3]
    %v47 = vld [vmem:[%s0 + $0xa] sm:$0x3]
    %v48 = vld [vmem:[%s0 + $0xc] sm:$0x3]
    %v49 = vld [vmem:[%s0 + $0xe] sm:$0x3]
    %vm50 = vcmask 254976
    %51 = vst.msk [vmem:[#allocation2] sm:$0x3] %vm50, %v42
    %52 = vst.msk [vmem:[#allocation2 + $0x2] sm:$0x3] %vm50, %v43
    %53 = vst.msk [vmem:[#allocation2 + $0x4] sm:$0x3] %vm50, %v44
    %54 = vst.msk [vmem:[#allocation2 + $0x6] sm:$0x3] %vm50, %v45
    %55 = vst.msk [vmem:[#allocation2 + $0x8] sm:$0x3] %vm50, %v46
    %56 = vst.msk [vmem:[#allocation2 + $0xa] sm:$0x3] %vm50, %v47
    %57 = vst.msk [vmem:[#allocation2 + $0xc] sm:$0x3] %vm50, %v48
    %58 = vst.msk [vmem:[#allocation2 + $0xe] sm:$0x3] %vm50, %v49
    %v59 = vld [vmem:[%s6] sm:$0x1]
    %v61 = vlaneseq
    %v62 = vshrl.u32 %v61, 7
    %v63 = vsub.s32 0, %v62
    %v64 = vrot.slane %v59, %v63
    %v66 = vld [vmem:[%s2] sm:$0xff]
    %v67 = vld [vmem:[%s2 + $0x8] sm:$0xff]
    %v68 = vld [vmem:[%s2 + $0x10] sm:$0xff]
    %v69 = vld [vmem:[%s2 + $0x18] sm:$0xff]
    %v70 = vld [vmem:[#allocation3] sm:$0xff]
    %v71 = vld [vmem:[#allocation3 + $0x8] sm:$0xff]
    %v72 = vld [vmem:[#allocation3 + $0x10] sm:$0xff]
    %v73 = vld [vmem:[#allocation3 + $0x18] sm:$0xff]
    %v74 = vld [vmem:[%s4] sm:$0x1]
    %v75 = vld [vmem:[#allocation2] sm:$0x3]
    %vm76 = vcmask 261120
    %v78 = vsel %vm76, 0.0, 0
    %80 = vmatprep.subr.mxu0 0.0
    %81 = vmatpush1.msra.mxu0 0.0
    %82 = vmatprep.subr.mxu0 0.0
    %83 = vmatpush1.msra.mxu0 0.0
    %84 = vmatprep.subr.mxu0 0.0
    %85 = vmatpush1.msra.mxu0 0.0
    %86 = vmatprep.subr.mxu0 0.0
    %87 = vmatpush1.msra.mxu0 0.0
    %88 = vmatprep.subr.mxu0 0.0
    %89 = vmatpush1.msra.mxu0 0.0
    %90 = vmatprep.subr.mxu0 0.0
    %91 = vmatpush1.msra.mxu0 0.0
    %92 = vmatprep.subr.mxu0 0.0
    %93 = vmatpush1.msra.mxu0 0.0
    %94 = vmatprep.subr.mxu0 0.0
    %95 = vmatpush1.msra.mxu0 0.0
    %96 = vmatprep.subr.mxu0 0.0
    %97 = vmatpush1.msra.mxu0 0.0
    %98 = vmatprep.subr.mxu0 0.0
    %99 = vmatpush1.msra.mxu0 0.0
    %100 = vmatprep.subr.mxu0 0.0
    %101 = vmatpush1.msra.mxu0 0.0
    %102 = vmatprep.subr.mxu0 0.0
    %103 = vmatpush1.msra.mxu0 0.0
    %104 = vmatprep.subr.mxu0 0.0
    %105 = vmatpush1.msra.mxu0 %v73
    %106 = vmatprep.subr.mxu0 0.0
    %107 = vmatpush1.msra.mxu0 %v72
    %108 = vmatprep.subr.mxu0 0.0
    %109 = vmatpush1.msra.mxu0 %v71
    %110 = vmatprep.subr.mxu0 0.0
    %111 = vmatpush1.msra.mxu0 %v70
    %112 = vmatprep.subr.mxu0 0.0
    %113 = vmatpush2.msra.mxu0 0.0
    %114 = vmatprep.subr.mxu0 0.0
    %115 = vmatpush2.msra.mxu0 0.0
    %116 = vmatprep.subr.mxu0 0.0
    %117 = vmatpush2.msra.mxu0 0.0
    %118 = vmatprep.subr.mxu0 0.0
    %119 = vmatpush2.msra.mxu0 0.0
    %120 = vmatprep.subr.mxu0 0.0
    %121 = vmatpush2.msra.mxu0 0.0
    %122 = vmatprep.subr.mxu0 0.0
    %123 = vmatpush2.msra.mxu0 0.0
    %124 = vmatprep.subr.mxu0 0.0
    %125 = vmatpush2.msra.mxu0 0.0
    %126 = vmatprep.subr.mxu0 0.0
    %127 = vmatpush2.msra.mxu0 0.0
    %128 = vmatprep.subr.mxu0 0.0
    %129 = vmatpush2.msra.mxu0 0.0
    %130 = vmatprep.subr.mxu0 0.0
    %131 = vmatpush2.msra.mxu0 0.0
    %132 = vmatprep.subr.mxu0 0.0
    %133 = vmatpush2.msra.mxu0 0.0
    %134 = vmatprep.subr.mxu0 0.0
    %135 = vmatpush2.msra.mxu0 0.0
    %136 = vmatprep.subr.mxu0 0.0
    %137 = vmatpush2.msra.mxu0 0.0
    %138 = vmatprep.subr.mxu0 0.0
    %139 = vmatpush2.msra.mxu0 0.0
    %140 = vmatprep.subr.mxu0 0.0
    %141 = vmatpush2.msra.mxu0 0.0
    %142 = vmatprep.subr.mxu0 0.0
    %143 = vmatpush2.msra.mxu0 0.0
    %144 = vmatprep.mubr.f32.mxu0 0.0
    %145 = vmatmul.mubr.f32.gmra.mxu0 %v78
    %v146 = vpop.f32.mrf.mxu0
    %v147 = vadd.f32 0.0, %v146
    %v148 = vpop.f32.mrf.mxu0
    %149 = vdwg.mxu0
    %v151 = vsel %vm76, %v75, 0
    %153 = vmatprep.subr.mxu0 0.0
    %154 = vmatpush1.msra.mxu0 0.0
    %155 = vmatprep.subr.mxu0 0.0
    %156 = vmatpush1.msra.mxu0 0.0
    %157 = vmatprep.subr.mxu0 0.0
    %158 = vmatpush1.msra.mxu0 0.0
    %159 = vmatprep.subr.mxu0 0.0
    %160 = vmatpush1.msra.mxu0 0.0
    %161 = vmatprep.subr.mxu0 0.0
    %162 = vmatpush1.msra.mxu0 0.0
    %163 = vmatprep.subr.mxu0 0.0
    %164 = vmatpush1.msra.mxu0 0.0
    %165 = vmatprep.subr.mxu0 0.0
    %166 = vmatpush1.msra.mxu0 0.0
    %167 = vmatprep.subr.mxu0 0.0
    %168 = vmatpush1.msra.mxu0 0.0
    %169 = vmatprep.subr.mxu0 0.0
    %170 = vmatpush1.msra.mxu0 0.0
    %171 = vmatprep.subr.mxu0 0.0
    %172 = vmatpush1.msra.mxu0 0.0
    %173 = vmatprep.subr.mxu0 0.0
    %174 = vmatpush1.msra.mxu0 0.0
    %175 = vmatprep.subr.mxu0 0.0
    %176 = vmatpush1.msra.mxu0 0.0
    %177 = vmatprep.subr.mxu0 0.0
    %178 = vmatpush1.msra.mxu0 %v69
    %179 = vmatprep.subr.mxu0 0.0
    %180 = vmatpush1.msra.mxu0 %v68
    %181 = vmatprep.subr.mxu0 0.0
    %182 = vmatpush1.msra.mxu0 %v67
    %183 = vmatprep.subr.mxu0 0.0
    %184 = vmatpush1.msra.mxu0 %v66
    %185 = vmatprep.subr.mxu0 0.0
    %186 = vmatpush2.msra.mxu0 0.0
    %187 = vmatprep.subr.mxu0 0.0
    %188 = vmatpush2.msra.mxu0 0.0
    %189 = vmatprep.subr.mxu0 0.0
    %190 = vmatpush2.msra.mxu0 0.0
    %191 = vmatprep.subr.mxu0 0.0
    %192 = vmatpush2.msra.mxu0 0.0
    %193 = vmatprep.subr.mxu0 0.0
    %194 = vmatpush2.msra.mxu0 0.0
    %195 = vmatprep.subr.mxu0 0.0
    %196 = vmatpush2.msra.mxu0 0.0
    %197 = vmatprep.subr.mxu0 0.0
    %198 = vmatpush2.msra.mxu0 0.0
    %199 = vmatprep.subr.mxu0 0.0
    %200 = vmatpush2.msra.mxu0 0.0
    %201 = vmatprep.subr.mxu0 0.0
    %202 = vmatpush2.msra.mxu0 0.0
    %203 = vmatprep.subr.mxu0 0.0
    %204 = vmatpush2.msra.mxu0 0.0
    %205 = vmatprep.subr.mxu0 0.0
    %206 = vmatpush2.msra.mxu0 0.0
    %207 = vmatprep.subr.mxu0 0.0
    %208 = vmatpush2.msra.mxu0 0.0
    %209 = vmatprep.subr.mxu0 0.0
    %210 = vmatpush2.msra.mxu0 0.0
    %211 = vmatprep.subr.mxu0 0.0
    %212 = vmatpush2.msra.mxu0 0.0
    %213 = vmatprep.subr.mxu0 0.0
    %214 = vmatpush2.msra.mxu0 0.0
    %215 = vmatprep.subr.mxu0 0.0
    %216 = vmatpush2.msra.mxu0 0.0
    %217 = vmatprep.mubr.f32.mxu0 0.0
    %218 = vmatmul.mubr.f32.gmra.mxu0 %v151
    %v219 = vpop.f32.mrf.mxu0
    %v220 = vadd.f32 %v147, %v219
    %v221 = vpop.f32.mrf.mxu0
    %222 = vdwg.mxu0
    %v224 = vlaneseq
    %v225 = vshrl.u32 %v224, 7
    %v226 = vsub.s32 0, %v225
    %v227 = vrot.slane %v74, %v226
    %v229 = vadd.f32 %v220, %v227
    %v230 = vxor.u32 %v229, 2147483648
    %v231 = vmul.f32 %v230, 1.442695
    %v232 = vpow.pop %v231
    %v233 = vadd.f32 %v232, 1.0
    %v234 = vrcp.pop %v233
    %v235 = vmul.f32 1.0, %v234
    %v236 = vtanh.pop %v229
    %v237 = vmul.f32 %v235, 0.0
    %239 = vrot.lane.b32.xlu0 %v236, 64
    %v240 = vpop.permute.xlu0 %239
    %v242 = vmul.f32 %v235, %v240
    %244 = vrot.lane.b32.xlu0 %v242, 32
    %v245 = vpop.permute.xlu0 %244
    %v247 = vadd.f32 %v237, %v245
    %v248 = vtanh.pop %v247
    %250 = vrot.lane.b32.xlu0 %v248, 64
    %v251 = vpop.permute.xlu0 %250
    %v253 = vmul.f32 %v235, %v251
    %vm254 = vcmp.gt.s32.totalorder %v41, 0
    %v255 = vsel %vm254, 1, 0
    %256 = vset.pattern.permute.xlu0 0
    %257 = vperm.xlu0 %256, %v255
    %v258 = vpop.permute.xlu0 %257
    %vm259 = vcmp.eq.s32.totalorder %v258, 1
    %v260 = vsel %vm259, %v253, 0.0
    %v261 = vsel %vm259, %v247, 0.0
    %263 = vrot.lane.b32.xlu0 %v260, 32
    %v264 = vpop.permute.xlu0 %263
    %266 = vst.msk [vmem:[#allocation2] sm:$0x3] %vm50, %v264
    %s267 = scalar_lea.vmem [#allocation2], 2
    %v268 = vld [vmem:[%s267] sm:$0x3]
    %v269 = vsel %vm76, %v264, 0
    %271 = vmatprep.subr.mxu0 0.0
    %272 = vmatpush1.msra.mxu0 0.0
    %273 = vmatprep.subr.mxu0 0.0
    %274 = vmatpush1.msra.mxu0 0.0
    %275 = vmatprep.subr.mxu0 0.0
    %276 = vmatpush1.msra.mxu0 0.0
    %277 = vmatprep.subr.mxu0 0.0
    %278 = vmatpush1.msra.mxu0 0.0
    %279 = vmatprep.subr.mxu0 0.0
    %280 = vmatpush1.msra.mxu0 0.0
    %281 = vmatprep.subr.mxu0 0.0
    %282 = vmatpush1.msra.mxu0 0.0
    %283 = vmatprep.subr.mxu0 0.0
    %284 = vmatpush1.msra.mxu0 0.0
    %285 = vmatprep.subr.mxu0 0.0
    %286 = vmatpush1.msra.mxu0 0.0
    %287 = vmatprep.subr.mxu0 0.0
    %288 = vmatpush1.msra.mxu0 0.0
    %289 = vmatprep.subr.mxu0 0.0
    %290 = vmatpush1.msra.mxu0 0.0
    %291 = vmatprep.subr.mxu0 0.0
    %292 = vmatpush1.msra.mxu0 0.0
    %293 = vmatprep.subr.mxu0 0.0
    %294 = vmatpush1.msra.mxu0 0.0
    %295 = vmatprep.subr.mxu0 0.0
    %296 = vmatpush1.msra.mxu0 %v73
    %297 = vmatprep.subr.mxu0 0.0
    %298 = vmatpush1.msra.mxu0 %v72
    %299 = vmatprep.subr.mxu0 0.0
    %300 = vmatpush1.msra.mxu0 %v71
    %301 = vmatprep.subr.mxu0 0.0
    %302 = vmatpush1.msra.mxu0 %v70
    %303 = vmatprep.subr.mxu0 0.0
    %304 = vmatpush2.msra.mxu0 0.0
    %305 = vmatprep.subr.mxu0 0.0
    %306 = vmatpush2.msra.mxu0 0.0
    %307 = vmatprep.subr.mxu0 0.0
    %308 = vmatpush2.msra.mxu0 0.0
    %309 = vmatprep.subr.mxu0 0.0
    %310 = vmatpush2.msra.mxu0 0.0
    %311 = vmatprep.subr.mxu0 0.0
    %312 = vmatpush2.msra.mxu0 0.0
    %313 = vmatprep.subr.mxu0 0.0
    %314 = vmatpush2.msra.mxu0 0.0
    %315 = vmatprep.subr.mxu0 0.0
    %316 = vmatpush2.msra.mxu0 0.0
    %317 = vmatprep.subr.mxu0 0.0
    %318 = vmatpush2.msra.mxu0 0.0
    %319 = vmatprep.subr.mxu0 0.0
    %320 = vmatpush2.msra.mxu0 0.0
    %321 = vmatprep.subr.mxu0 0.0
    %322 = vmatpush2.msra.mxu0 0.0
    %323 = vmatprep.subr.mxu0 0.0
    %324 = vmatpush2.msra.mxu0 0.0
    %325 = vmatprep.subr.mxu0 0.0
    %326 = vmatpush2.msra.mxu0 0.0
    %327 = vmatprep.subr.mxu0 0.0
    %328 = vmatpush2.msra.mxu0 0.0
    %329 = vmatprep.subr.mxu0 0.0
    %330 = vmatpush2.msra.mxu0 0.0
    %331 = vmatprep.subr.mxu0 0.0
    %332 = vmatpush2.msra.mxu0 0.0
    %333 = vmatprep.subr.mxu0 0.0
    %334 = vmatpush2.msra.mxu0 0.0
    %335 = vmatprep.mubr.f32.mxu0 0.0
    %336 = vmatmul.mubr.f32.gmra.mxu0 %v269
    %v337 = vpop.f32.mrf.mxu0
    %v338 = vadd.f32 0.0, %v337
    %v339 = vpop.f32.mrf.mxu0
    %340 = vdwg.mxu0
    %v342 = vsel %vm76, %v268, 0
    %344 = vmatprep.subr.mxu0 0.0
    %345 = vmatpush1.msra.mxu0 0.0
    %346 = vmatprep.subr.mxu0 0.0
    %347 = vmatpush1.msra.mxu0 0.0
    %348 = vmatprep.subr.mxu0 0.0
    %349 = vmatpush1.msra.mxu0 0.0
    %350 = vmatprep.subr.mxu0 0.0
    %351 = vmatpush1.msra.mxu0 0.0
    %352 = vmatprep.subr.mxu0 0.0
    %353 = vmatpush1.msra.mxu0 0.0
    %354 = vmatprep.subr.mxu0 0.0
    %355 = vmatpush1.msra.mxu0 0.0
    %356 = vmatprep.subr.mxu0 0.0
    %357 = vmatpush1.msra.mxu0 0.0
    %358 = vmatprep.subr.mxu0 0.0
    %359 = vmatpush1.msra.mxu0 0.0
    %360 = vmatprep.subr.mxu0 0.0
    %361 = vmatpush1.msra.mxu0 0.0
    %362 = vmatprep.subr.mxu0 0.0
    %363 = vmatpush1.msra.mxu0 0.0
    %364 = vmatprep.subr.mxu0 0.0
    %365 = vmatpush1.msra.mxu0 0.0
    %366 = vmatprep.subr.mxu0 0.0
    %367 = vmatpush1.msra.mxu0 0.0
    %368 = vmatprep.subr.mxu0 0.0
    %369 = vmatpush1.msra.mxu0 %v69
    %370 = vmatprep.subr.mxu0 0.0
    %371 = vmatpush1.msra.mxu0 %v68
    %372 = vmatprep.subr.mxu0 0.0
    %373 = vmatpush1.msra.mxu0 %v67
    %374 = vmatprep.subr.mxu0 0.0
    %375 = vmatpush1.msra.mxu0 %v66
    %376 = vmatprep.subr.mxu0 0.0
    %377 = vmatpush2.msra.mxu0 0.0
    %378 = vmatprep.subr.mxu0 0.0
    %379 = vmatpush2.msra.mxu0 0.0
    %380 = vmatprep.subr.mxu0 0.0
    %381 = vmatpush2.msra.mxu0 0.0
    %382 = vmatprep.subr.mxu0 0.0
    %383 = vmatpush2.msra.mxu0 0.0
    %384 = vmatprep.subr.mxu0 0.0
    %385 = vmatpush2.msra.mxu0 0.0
    %386 = vmatprep.subr.mxu0 0.0
    %387 = vmatpush2.msra.mxu0 0.0
    %388 = vmatprep.subr.mxu0 0.0
    %389 = vmatpush2.msra.mxu0 0.0
    %390 = vmatprep.subr.mxu0 0.0
    %391 = vmatpush2.msra.mxu0 0.0
    %392 = vmatprep.subr.mxu0 0.0
    %393 = vmatpush2.msra.mxu0 0.0
    %394 = vmatprep.subr.mxu0 0.0
    %395 = vmatpush2.msra.mxu0 0.0
    %396 = vmatprep.subr.mxu0 0.0
    %397 = vmatpush2.msra.mxu0 0.0
    %398 = vmatprep.subr.mxu0 0.0
    %399 = vmatpush2.msra.mxu0 0.0
    %400 = vmatprep.subr.mxu0 0.0
    %401 = vmatpush2.msra.mxu0 0.0
    %402 = vmatprep.subr.mxu0 0.0
    %403 = vmatpush2.msra.mxu0 0.0
    %404 = vmatprep.subr.mxu0 0.0
    %405 = vmatpush2.msra.mxu0 0.0
    %406 = vmatprep.subr.mxu0 0.0
    %407 = vmatpush2.msra.mxu0 0.0
    %408 = vmatprep.mubr.f32.mxu0 0.0
    %409 = vmatmul.mubr.f32.gmra.mxu0 %v342
    %v410 = vpop.f32.mrf.mxu0
    %v411 = vadd.f32 %v338, %v410
    %v412 = vpop.f32.mrf.mxu0
    %413 = vdwg.mxu0
    %v414 = vadd.f32 %v411, %v227
    %v415 = vxor.u32 %v414, 2147483648
    %v416 = vmul.f32 %v415, 1.442695
    %v417 = vpow.pop %v416
    %v418 = vadd.f32 %v417, 1.0
    %v419 = vrcp.pop %v418
    %v420 = vmul.f32 1.0, %v419
    %v421 = vtanh.pop %v414
    %v422 = vmul.f32 %v420, %v261
    %424 = vrot.lane.b32.xlu0 %v421, 64
    %v425 = vpop.permute.xlu0 %424
    %v427 = vmul.f32 %v420, %v425
    %429 = vrot.lane.b32.xlu0 %v427, 32
    %v430 = vpop.permute.xlu0 %429
    %v432 = vadd.f32 %v422, %v430
    %v433 = vtanh.pop %v432
    %435 = vrot.lane.b32.xlu0 %v433, 64
    %v436 = vpop.permute.xlu0 %435
    %v438 = vmul.f32 %v420, %v436
    %vm439 = vcmp.gt.s32.totalorder %v41, 1
    %v440 = vsel %vm439, 1, 0
    %441 = vset.pattern.permute.xlu0 0
    %442 = vperm.xlu0 %441, %v440
    %v443 = vpop.permute.xlu0 %442
    %vm444 = vcmp.eq.s32.totalorder %v443, 1
    %v445 = vsel %vm444, %v438, %v260
    %v446 = vsel %vm444, %v432, %v261
    %448 = vrot.lane.b32.xlu0 %v445, 32
    %v449 = vpop.permute.xlu0 %448
    %451 = vst.msk [vmem:[%s267] sm:$0x3] %vm50, %v449
    %s452 = scalar_lea.vmem [#allocation2], 4
    %v453 = vld [vmem:[%s452] sm:$0x3]
    %v454 = vsel %vm76, %v449, 0
    %456 = vmatprep.subr.mxu0 0.0
    %457 = vmatpush1.msra.mxu0 0.0
    %458 = vmatprep.subr.mxu0 0.0
    %459 = vmatpush1.msra.mxu0 0.0
    %460 = vmatprep.subr.mxu0 0.0
    %461 = vmatpush1.msra.mxu0 0.0
    %462 = vmatprep.subr.mxu0 0.0
    %463 = vmatpush1.msra.mxu0 0.0
    %464 = vmatprep.subr.mxu0 0.0
    %465 = vmatpush1.msra.mxu0 0.0
    %466 = vmatprep.subr.mxu0 0.0
    %467 = vmatpush1.msra.mxu0 0.0
    %468 = vmatprep.subr.mxu0 0.0
    %469 = vmatpush1.msra.mxu0 0.0
    %470 = vmatprep.subr.mxu0 0.0
    %471 = vmatpush1.msra.mxu0 0.0
    %472 = vmatprep.subr.mxu0 0.0
    %473 = vmatpush1.msra.mxu0 0.0
    %474 = vmatprep.subr.mxu0 0.0
    %475 = vmatpush1.msra.mxu0 0.0
    %476 = vmatprep.subr.mxu0 0.0
    %477 = vmatpush1.msra.mxu0 0.0
    %478 = vmatprep.subr.mxu0 0.0
    %479 = vmatpush1.msra.mxu0 0.0
    %480 = vmatprep.subr.mxu0 0.0
    %481 = vmatpush1.msra.mxu0 %v73
    %482 = vmatprep.subr.mxu0 0.0
    %483 = vmatpush1.msra.mxu0 %v72
    %484 = vmatprep.subr.mxu0 0.0
    %485 = vmatpush1.msra.mxu0 %v71
    %486 = vmatprep.subr.mxu0 0.0
    %487 = vmatpush1.msra.mxu0 %v70
    %488 = vmatprep.subr.mxu0 0.0
    %489 = vmatpush2.msra.mxu0 0.0
    %490 = vmatprep.subr.mxu0 0.0
    %491 = vmatpush2.msra.mxu0 0.0
    %492 = vmatprep.subr.mxu0 0.0
    %493 = vmatpush2.msra.mxu0 0.0
    %494 = vmatprep.subr.mxu0 0.0
    %495 = vmatpush2.msra.mxu0 0.0
    %496 = vmatprep.subr.mxu0 0.0
    %497 = vmatpush2.msra.mxu0 0.0
    %498 = vmatprep.subr.mxu0 0.0
    %499 = vmatpush2.msra.mxu0 0.0
    %500 = vmatprep.subr.mxu0 0.0
    %501 = vmatpush2.msra.mxu0 0.0
    %502 = vmatprep.subr.mxu0 0.0
    %503 = vmatpush2.msra.mxu0 0.0
    %504 = vmatprep.subr.mxu0 0.0
    %505 = vmatpush2.msra.mxu0 0.0
    %506 = vmatprep.subr.mxu0 0.0
    %507 = vmatpush2.msra.mxu0 0.0
    %508 = vmatprep.subr.mxu0 0.0
    %509 = vmatpush2.msra.mxu0 0.0
    %510 = vmatprep.subr.mxu0 0.0
    %511 = vmatpush2.msra.mxu0 0.0
    %512 = vmatprep.subr.mxu0 0.0
    %513 = vmatpush2.msra.mxu0 0.0
    %514 = vmatprep.subr.mxu0 0.0
    %515 = vmatpush2.msra.mxu0 0.0
    %516 = vmatprep.subr.mxu0 0.0
    %517 = vmatpush2.msra.mxu0 0.0
    %518 = vmatprep.subr.mxu0 0.0
    %519 = vmatpush2.msra.mxu0 0.0
    %520 = vmatprep.mubr.f32.mxu0 0.0
    %521 = vmatmul.mubr.f32.gmra.mxu0 %v454
    %v522 = vpop.f32.mrf.mxu0
    %v523 = vadd.f32 0.0, %v522
    %v524 = vpop.f32.mrf.mxu0
    %525 = vdwg.mxu0
    %v527 = vsel %vm76, %v453, 0
    %529 = vmatprep.subr.mxu0 0.0
    %530 = vmatpush1.msra.mxu0 0.0
    %531 = vmatprep.subr.mxu0 0.0
    %532 = vmatpush1.msra.mxu0 0.0
    %533 = vmatprep.subr.mxu0 0.0
    %534 = vmatpush1.msra.mxu0 0.0
    %535 = vmatprep.subr.mxu0 0.0
    %536 = vmatpush1.msra.mxu0 0.0
    %537 = vmatprep.subr.mxu0 0.0
    %538 = vmatpush1.msra.mxu0 0.0
    %539 = vmatprep.subr.mxu0 0.0
    %540 = vmatpush1.msra.mxu0 0.0
    %541 = vmatprep.subr.mxu0 0.0
    %542 = vmatpush1.msra.mxu0 0.0
    %543 = vmatprep.subr.mxu0 0.0
    %544 = vmatpush1.msra.mxu0 0.0
    %545 = vmatprep.subr.mxu0 0.0
    %546 = vmatpush1.msra.mxu0 0.0
    %547 = vmatprep.subr.mxu0 0.0
    %548 = vmatpush1.msra.mxu0 0.0
    %549 = vmatprep.subr.mxu0 0.0
    %550 = vmatpush1.msra.mxu0 0.0
    %551 = vmatprep.subr.mxu0 0.0
    %552 = vmatpush1.msra.mxu0 0.0
    %553 = vmatprep.subr.mxu0 0.0
    %554 = vmatpush1.msra.mxu0 %v69
    %555 = vmatprep.subr.mxu0 0.0
    %556 = vmatpush1.msra.mxu0 %v68
    %557 = vmatprep.subr.mxu0 0.0
    %558 = vmatpush1.msra.mxu0 %v67
    %559 = vmatprep.subr.mxu0 0.0
    %560 = vmatpush1.msra.mxu0 %v66
    %561 = vmatprep.subr.mxu0 0.0
    %562 = vmatpush2.msra.mxu0 0.0
    %563 = vmatprep.subr.mxu0 0.0
    %564 = vmatpush2.msra.mxu0 0.0
    %565 = vmatprep.subr.mxu0 0.0
    %566 = vmatpush2.msra.mxu0 0.0
    %567 = vmatprep.subr.mxu0 0.0
    %568 = vmatpush2.msra.mxu0 0.0
    %569 = vmatprep.subr.mxu0 0.0
    %570 = vmatpush2.msra.mxu0 0.0
    %571 = vmatprep.subr.mxu0 0.0
    %572 = vmatpush2.msra.mxu0 0.0
    %573 = vmatprep.subr.mxu0 0.0
    %574 = vmatpush2.msra.mxu0 0.0
    %575 = vmatprep.subr.mxu0 0.0
    %576 = vmatpush2.msra.mxu0 0.0
    %577 = vmatprep.subr.mxu0 0.0
    %578 = vmatpush2.msra.mxu0 0.0
    %579 = vmatprep.subr.mxu0 0.0
    %580 = vmatpush2.msra.mxu0 0.0
    %581 = vmatprep.subr.mxu0 0.0
    %582 = vmatpush2.msra.mxu0 0.0
    %583 = vmatprep.subr.mxu0 0.0
    %584 = vmatpush2.msra.mxu0 0.0
    %585 = vmatprep.subr.mxu0 0.0
    %586 = vmatpush2.msra.mxu0 0.0
    %587 = vmatprep.subr.mxu0 0.0
    %588 = vmatpush2.msra.mxu0 0.0
    %589 = vmatprep.subr.mxu0 0.0
    %590 = vmatpush2.msra.mxu0 0.0
    %591 = vmatprep.subr.mxu0 0.0
    %592 = vmatpush2.msra.mxu0 0.0
    %593 = vmatprep.mubr.f32.mxu0 0.0
    %594 = vmatmul.mubr.f32.gmra.mxu0 %v527
    %v595 = vpop.f32.mrf.mxu0
    %v596 = vadd.f32 %v523, %v595
    %v597 = vpop.f32.mrf.mxu0
    %598 = vdwg.mxu0
    %v599 = vadd.f32 %v596, %v227
    %v600 = vxor.u32 %v599, 2147483648
    %v601 = vmul.f32 %v600, 1.442695
    %v602 = vpow.pop %v601
    %v603 = vadd.f32 %v602, 1.0
    %v604 = vrcp.pop %v603
    %v605 = vmul.f32 1.0, %v604
    %v606 = vtanh.pop %v599
    %v607 = vmul.f32 %v605, %v446
    %609 = vrot.lane.b32.xlu0 %v606, 64
    %v610 = vpop.permute.xlu0 %609
    %v612 = vmul.f32 %v605, %v610
    %614 = vrot.lane.b32.xlu0 %v612, 32
    %v615 = vpop.permute.xlu0 %614
    %v617 = vadd.f32 %v607, %v615
    %v618 = vtanh.pop %v617
    %620 = vrot.lane.b32.xlu0 %v618, 64
    %v621 = vpop.permute.xlu0 %620
    %v623 = vmul.f32 %v605, %v621
    %vm624 = vcmp.gt.s32.totalorder %v41, 2
    %v625 = vsel %vm624, 1, 0
    %626 = vset.pattern.permute.xlu0 0
    %627 = vperm.xlu0 %626, %v625
    %v628 = vpop.permute.xlu0 %627
    %vm629 = vcmp.eq.s32.totalorder %v628, 1
    %v630 = vsel %vm629, %v623, %v445
    %v631 = vsel %vm629, %v617, %v446
    %633 = vrot.lane.b32.xlu0 %v630, 32
    %v634 = vpop.permute.xlu0 %633
    %636 = vst.msk [vmem:[%s452] sm:$0x3] %vm50, %v634
    %s637 = scalar_lea.vmem [#allocation2], 6
    %v638 = vld [vmem:[%s637] sm:$0x3]
    %v639 = vsel %vm76, %v634, 0
    %641 = vmatprep.subr.mxu0 0.0
    %642 = vmatpush1.msra.mxu0 0.0
    %643 = vmatprep.subr.mxu0 0.0
    %644 = vmatpush1.msra.mxu0 0.0
    %645 = vmatprep.subr.mxu0 0.0
    %646 = vmatpush1.msra.mxu0 0.0
    %647 = vmatprep.subr.mxu0 0.0
    %648 = vmatpush1.msra.mxu0 0.0
    %649 = vmatprep.subr.mxu0 0.0
    %650 = vmatpush1.msra.mxu0 0.0
    %651 = vmatprep.subr.mxu0 0.0
    %652 = vmatpush1.msra.mxu0 0.0
    %653 = vmatprep.subr.mxu0 0.0
    %654 = vmatpush1.msra.mxu0 0.0
    %655 = vmatprep.subr.mxu0 0.0
    %656 = vmatpush1.msra.mxu0 0.0
    %657 = vmatprep.subr.mxu0 0.0
    %658 = vmatpush1.msra.mxu0 0.0
    %659 = vmatprep.subr.mxu0 0.0
    %660 = vmatpush1.msra.mxu0 0.0
    %661 = vmatprep.subr.mxu0 0.0
    %662 = vmatpush1.msra.mxu0 0.0
    %663 = vmatprep.subr.mxu0 0.0
    %664 = vmatpush1.msra.mxu0 0.0
    %665 = vmatprep.subr.mxu0 0.0
    %666 = vmatpush1.msra.mxu0 %v73
    %667 = vmatprep.subr.mxu0 0.0
    %668 = vmatpush1.msra.mxu0 %v72
    %669 = vmatprep.subr.mxu0 0.0
    %670 = vmatpush1.msra.mxu0 %v71
    %671 = vmatprep.subr.mxu0 0.0
    %672 = vmatpush1.msra.mxu0 %v70
    %673 = vmatprep.subr.mxu0 0.0
    %674 = vmatpush2.msra.mxu0 0.0
    %675 = vmatprep.subr.mxu0 0.0
    %676 = vmatpush2.msra.mxu0 0.0
    %677 = vmatprep.subr.mxu0 0.0
    %678 = vmatpush2.msra.mxu0 0.0
    %679 = vmatprep.subr.mxu0 0.0
    %680 = vmatpush2.msra.mxu0 0.0
    %681 = vmatprep.subr.mxu0 0.0
    %682 = vmatpush2.msra.mxu0 0.0
    %683 = vmatprep.subr.mxu0 0.0
    %684 = vmatpush2.msra.mxu0 0.0
    %685 = vmatprep.subr.mxu0 0.0
    %686 = vmatpush2.msra.mxu0 0.0
    %687 = vmatprep.subr.mxu0 0.0
    %688 = vmatpush2.msra.mxu0 0.0
    %689 = vmatprep.subr.mxu0 0.0
    %690 = vmatpush2.msra.mxu0 0.0
    %691 = vmatprep.subr.mxu0 0.0
    %692 = vmatpush2.msra.mxu0 0.0
    %693 = vmatprep.subr.mxu0 0.0
    %694 = vmatpush2.msra.mxu0 0.0
    %695 = vmatprep.subr.mxu0 0.0
    %696 = vmatpush2.msra.mxu0 0.0
    %697 = vmatprep.subr.mxu0 0.0
    %698 = vmatpush2.msra.mxu0 0.0
    %699 = vmatprep.subr.mxu0 0.0
    %700 = vmatpush2.msra.mxu0 0.0
    %701 = vmatprep.subr.mxu0 0.0
    %702 = vmatpush2.msra.mxu0 0.0
    %703 = vmatprep.subr.mxu0 0.0
    %704 = vmatpush2.msra.mxu0 0.0
    %705 = vmatprep.mubr.f32.mxu0 0.0
    %706 = vmatmul.mubr.f32.gmra.mxu0 %v639
    %v707 = vpop.f32.mrf.mxu0
    %v708 = vadd.f32 0.0, %v707
    %v709 = vpop.f32.mrf.mxu0
    %710 = vdwg.mxu0
    %v712 = vsel %vm76, %v638, 0
    %714 = vmatprep.subr.mxu0 0.0
    %715 = vmatpush1.msra.mxu0 0.0
    %716 = vmatprep.subr.mxu0 0.0
    %717 = vmatpush1.msra.mxu0 0.0
    %718 = vmatprep.subr.mxu0 0.0
    %719 = vmatpush1.msra.mxu0 0.0
    %720 = vmatprep.subr.mxu0 0.0
    %721 = vmatpush1.msra.mxu0 0.0
    %722 = vmatprep.subr.mxu0 0.0
    %723 = vmatpush1.msra.mxu0 0.0
    %724 = vmatprep.subr.mxu0 0.0
    %725 = vmatpush1.msra.mxu0 0.0
    %726 = vmatprep.subr.mxu0 0.0
    %727 = vmatpush1.msra.mxu0 0.0
    %728 = vmatprep.subr.mxu0 0.0
    %729 = vmatpush1.msra.mxu0 0.0
    %730 = vmatprep.subr.mxu0 0.0
    %731 = vmatpush1.msra.mxu0 0.0
    %732 = vmatprep.subr.mxu0 0.0
    %733 = vmatpush1.msra.mxu0 0.0
    %734 = vmatprep.subr.mxu0 0.0
    %735 = vmatpush1.msra.mxu0 0.0
    %736 = vmatprep.subr.mxu0 0.0
    %737 = vmatpush1.msra.mxu0 0.0
    %738 = vmatprep.subr.mxu0 0.0
    %739 = vmatpush1.msra.mxu0 %v69
    %740 = vmatprep.subr.mxu0 0.0
    %741 = vmatpush1.msra.mxu0 %v68
    %742 = vmatprep.subr.mxu0 0.0
    %743 = vmatpush1.msra.mxu0 %v67
    %744 = vmatprep.subr.mxu0 0.0
    %745 = vmatpush1.msra.mxu0 %v66
    %746 = vmatprep.subr.mxu0 0.0
    %747 = vmatpush2.msra.mxu0 0.0
    %748 = vmatprep.subr.mxu0 0.0
    %749 = vmatpush2.msra.mxu0 0.0
    %750 = vmatprep.subr.mxu0 0.0
    %751 = vmatpush2.msra.mxu0 0.0
    %752 = vmatprep.subr.mxu0 0.0
    %753 = vmatpush2.msra.mxu0 0.0
    %754 = vmatprep.subr.mxu0 0.0
    %755 = vmatpush2.msra.mxu0 0.0
    %756 = vmatprep.subr.mxu0 0.0
    %757 = vmatpush2.msra.mxu0 0.0
    %758 = vmatprep.subr.mxu0 0.0
    %759 = vmatpush2.msra.mxu0 0.0
    %760 = vmatprep.subr.mxu0 0.0
    %761 = vmatpush2.msra.mxu0 0.0
    %762 = vmatprep.subr.mxu0 0.0
    %763 = vmatpush2.msra.mxu0 0.0
    %764 = vmatprep.subr.mxu0 0.0
    %765 = vmatpush2.msra.mxu0 0.0
    %766 = vmatprep.subr.mxu0 0.0
    %767 = vmatpush2.msra.mxu0 0.0
    %768 = vmatprep.subr.mxu0 0.0
    %769 = vmatpush2.msra.mxu0 0.0
    %770 = vmatprep.subr.mxu0 0.0
    %771 = vmatpush2.msra.mxu0 0.0
    %772 = vmatprep.subr.mxu0 0.0
    %773 = vmatpush2.msra.mxu0 0.0
    %774 = vmatprep.subr.mxu0 0.0
    %775 = vmatpush2.msra.mxu0 0.0
    %776 = vmatprep.subr.mxu0 0.0
    %777 = vmatpush2.msra.mxu0 0.0
    %778 = vmatprep.mubr.f32.mxu0 0.0
    %779 = vmatmul.mubr.f32.gmra.mxu0 %v712
    %v780 = vpop.f32.mrf.mxu0
    %v781 = vadd.f32 %v708, %v780
    %v782 = vpop.f32.mrf.mxu0
    %783 = vdwg.mxu0
    %v784 = vadd.f32 %v781, %v227
    %v785 = vxor.u32 %v784, 2147483648
    %v786 = vmul.f32 %v785, 1.442695
    %v787 = vpow.pop %v786
    %v788 = vadd.f32 %v787, 1.0
    %v789 = vrcp.pop %v788
    %v790 = vmul.f32 1.0, %v789
    %v791 = vtanh.pop %v784
    %v792 = vmul.f32 %v790, %v631
    %794 = vrot.lane.b32.xlu0 %v791, 64
    %v795 = vpop.permute.xlu0 %794
    %v797 = vmul.f32 %v790, %v795
    %799 = vrot.lane.b32.xlu0 %v797, 32
    %v800 = vpop.permute.xlu0 %799
    %v802 = vadd.f32 %v792, %v800
    %v803 = vtanh.pop %v802
    %805 = vrot.lane.b32.xlu0 %v803, 64
    %v806 = vpop.permute.xlu0 %805
    %v808 = vmul.f32 %v790, %v806
    %vm809 = vcmp.gt.s32.totalorder %v41, 3
    %v810 = vsel %vm809, 1, 0
    %811 = vset.pattern.permute.xlu0 0
    %812 = vperm.xlu0 %811, %v810
    %v813 = vpop.permute.xlu0 %812
    %vm814 = vcmp.eq.s32.totalorder %v813, 1
    %v815 = vsel %vm814, %v808, %v630
    %v816 = vsel %vm814, %v802, %v631
    %818 = vrot.lane.b32.xlu0 %v815, 32
    %v819 = vpop.permute.xlu0 %818
    %821 = vst.msk [vmem:[%s637] sm:$0x3] %vm50, %v819
    %s822 = scalar_lea.vmem [#allocation2], 8
    %v823 = vld [vmem:[%s822] sm:$0x3]
    %v824 = vsel %vm76, %v819, 0
    %826 = vmatprep.subr.mxu0 0.0
    %827 = vmatpush1.msra.mxu0 0.0
    %828 = vmatprep.subr.mxu0 0.0
    %829 = vmatpush1.msra.mxu0 0.0
    %830 = vmatprep.subr.mxu0 0.0
    %831 = vmatpush1.msra.mxu0 0.0
    %832 = vmatprep.subr.mxu0 0.0
    %833 = vmatpush1.msra.mxu0 0.0
    %834 = vmatprep.subr.mxu0 0.0
    %835 = vmatpush1.msra.mxu0 0.0
    %836 = vmatprep.subr.mxu0 0.0
    %837 = vmatpush1.msra.mxu0 0.0
    %838 = vmatprep.subr.mxu0 0.0
    %839 = vmatpush1.msra.mxu0 0.0
    %840 = vmatprep.subr.mxu0 0.0
    %841 = vmatpush1.msra.mxu0 0.0
    %842 = vmatprep.subr.mxu0 0.0
    %843 = vmatpush1.msra.mxu0 0.0
    %844 = vmatprep.subr.mxu0 0.0
    %845 = vmatpush1.msra.mxu0 0.0
    %846 = vmatprep.subr.mxu0 0.0
    %847 = vmatpush1.msra.mxu0 0.0
    %848 = vmatprep.subr.mxu0 0.0
    %849 = vmatpush1.msra.mxu0 0.0
    %850 = vmatprep.subr.mxu0 0.0
    %851 = vmatpush1.msra.mxu0 %v73
    %852 = vmatprep.subr.mxu0 0.0
    %853 = vmatpush1.msra.mxu0 %v72
    %854 = vmatprep.subr.mxu0 0.0
    %855 = vmatpush1.msra.mxu0 %v71
    %856 = vmatprep.subr.mxu0 0.0
    %857 = vmatpush1.msra.mxu0 %v70
    %858 = vmatprep.subr.mxu0 0.0
    %859 = vmatpush2.msra.mxu0 0.0
    %860 = vmatprep.subr.mxu0 0.0
    %861 = vmatpush2.msra.mxu0 0.0
    %862 = vmatprep.subr.mxu0 0.0
    %863 = vmatpush2.msra.mxu0 0.0
    %864 = vmatprep.subr.mxu0 0.0
    %865 = vmatpush2.msra.mxu0 0.0
    %866 = vmatprep.subr.mxu0 0.0
    %867 = vmatpush2.msra.mxu0 0.0
    %868 = vmatprep.subr.mxu0 0.0
    %869 = vmatpush2.msra.mxu0 0.0
    %870 = vmatprep.subr.mxu0 0.0
    %871 = vmatpush2.msra.mxu0 0.0
    %872 = vmatprep.subr.mxu0 0.0
    %873 = vmatpush2.msra.mxu0 0.0
    %874 = vmatprep.subr.mxu0 0.0
    %875 = vmatpush2.msra.mxu0 0.0
    %876 = vmatprep.subr.mxu0 0.0
    %877 = vmatpush2.msra.mxu0 0.0
    %878 = vmatprep.subr.mxu0 0.0
    %879 = vmatpush2.msra.mxu0 0.0
    %880 = vmatprep.subr.mxu0 0.0
    %881 = vmatpush2.msra.mxu0 0.0
    %882 = vmatprep.subr.mxu0 0.0
    %883 = vmatpush2.msra.mxu0 0.0
    %884 = vmatprep.subr.mxu0 0.0
    %885 = vmatpush2.msra.mxu0 0.0
    %886 = vmatprep.subr.mxu0 0.0
    %887 = vmatpush2.msra.mxu0 0.0
    %888 = vmatprep.subr.mxu0 0.0
    %889 = vmatpush2.msra.mxu0 0.0
    %890 = vmatprep.mubr.f32.mxu0 0.0
    %891 = vmatmul.mubr.f32.gmra.mxu0 %v824
    %v892 = vpop.f32.mrf.mxu0
    %v893 = vadd.f32 0.0, %v892
    %v894 = vpop.f32.mrf.mxu0
    %895 = vdwg.mxu0
    %v897 = vsel %vm76, %v823, 0
    %899 = vmatprep.subr.mxu0 0.0
    %900 = vmatpush1.msra.mxu0 0.0
    %901 = vmatprep.subr.mxu0 0.0
    %902 = vmatpush1.msra.mxu0 0.0
    %903 = vmatprep.subr.mxu0 0.0
    %904 = vmatpush1.msra.mxu0 0.0
    %905 = vmatprep.subr.mxu0 0.0
    %906 = vmatpush1.msra.mxu0 0.0
    %907 = vmatprep.subr.mxu0 0.0
    %908 = vmatpush1.msra.mxu0 0.0
    %909 = vmatprep.subr.mxu0 0.0
    %910 = vmatpush1.msra.mxu0 0.0
    %911 = vmatprep.subr.mxu0 0.0
    %912 = vmatpush1.msra.mxu0 0.0
    %913 = vmatprep.subr.mxu0 0.0
    %914 = vmatpush1.msra.mxu0 0.0
    %915 = vmatprep.subr.mxu0 0.0
    %916 = vmatpush1.msra.mxu0 0.0
    %917 = vmatprep.subr.mxu0 0.0
    %918 = vmatpush1.msra.mxu0 0.0
    %919 = vmatprep.subr.mxu0 0.0
    %920 = vmatpush1.msra.mxu0 0.0
    %921 = vmatprep.subr.mxu0 0.0
    %922 = vmatpush1.msra.mxu0 0.0
    %923 = vmatprep.subr.mxu0 0.0
    %924 = vmatpush1.msra.mxu0 %v69
    %925 = vmatprep.subr.mxu0 0.0
    %926 = vmatpush1.msra.mxu0 %v68
    %927 = vmatprep.subr.mxu0 0.0
    %928 = vmatpush1.msra.mxu0 %v67
    %929 = vmatprep.subr.mxu0 0.0
    %930 = vmatpush1.msra.mxu0 %v66
    %931 = vmatprep.subr.mxu0 0.0
    %932 = vmatpush2.msra.mxu0 0.0
    %933 = vmatprep.subr.mxu0 0.0
    %934 = vmatpush2.msra.mxu0 0.0
    %935 = vmatprep.subr.mxu0 0.0
    %936 = vmatpush2.msra.mxu0 0.0
    %937 = vmatprep.subr.mxu0 0.0
    %938 = vmatpush2.msra.mxu0 0.0
    %939 = vmatprep.subr.mxu0 0.0
    %940 = vmatpush2.msra.mxu0 0.0
    %941 = vmatprep.subr.mxu0 0.0
    %942 = vmatpush2.msra.mxu0 0.0
    %943 = vmatprep.subr.mxu0 0.0
    %944 = vmatpush2.msra.mxu0 0.0
    %945 = vmatprep.subr.mxu0 0.0
    %946 = vmatpush2.msra.mxu0 0.0
    %947 = vmatprep.subr.mxu0 0.0
    %948 = vmatpush2.msra.mxu0 0.0
    %949 = vmatprep.subr.mxu0 0.0
    %950 = vmatpush2.msra.mxu0 0.0
    %951 = vmatprep.subr.mxu0 0.0
    %952 = vmatpush2.msra.mxu0 0.0
    %953 = vmatprep.subr.mxu0 0.0
    %954 = vmatpush2.msra.mxu0 0.0
    %955 = vmatprep.subr.mxu0 0.0
    %956 = vmatpush2.msra.mxu0 0.0
    %957 = vmatprep.subr.mxu0 0.0
    %958 = vmatpush2.msra.mxu0 0.0
    %959 = vmatprep.subr.mxu0 0.0
    %960 = vmatpush2.msra.mxu0 0.0
    %961 = vmatprep.subr.mxu0 0.0
    %962 = vmatpush2.msra.mxu0 0.0
    %963 = vmatprep.mubr.f32.mxu0 0.0
    %964 = vmatmul.mubr.f32.gmra.mxu0 %v897
    %v965 = vpop.f32.mrf.mxu0
    %v966 = vadd.f32 %v893, %v965
    %v967 = vpop.f32.mrf.mxu0
    %968 = vdwg.mxu0
    %v969 = vadd.f32 %v966, %v227
    %v970 = vxor.u32 %v969, 2147483648
    %v971 = vmul.f32 %v970, 1.442695
    %v972 = vpow.pop %v971
    %v973 = vadd.f32 %v972, 1.0
    %v974 = vrcp.pop %v973
    %v975 = vmul.f32 1.0, %v974
    %v976 = vtanh.pop %v969
    %v977 = vmul.f32 %v975, %v816
    %979 = vrot.lane.b32.xlu0 %v976, 64
    %v980 = vpop.permute.xlu0 %979
    %v982 = vmul.f32 %v975, %v980
    %984 = vrot.lane.b32.xlu0 %v982, 32
    %v985 = vpop.permute.xlu0 %984
    %v987 = vadd.f32 %v977, %v985
    %v988 = vtanh.pop %v987
    %990 = vrot.lane.b32.xlu0 %v988, 64
    %v991 = vpop.permute.xlu0 %990
    %v993 = vmul.f32 %v975, %v991
    %vm994 = vcmp.gt.s32.totalorder %v41, 4
    %v995 = vsel %vm994, 1, 0
    %996 = vset.pattern.permute.xlu0 0
    %997 = vperm.xlu0 %996, %v995
    %v998 = vpop.permute.xlu0 %997
    %vm999 = vcmp.eq.s32.totalorder %v998, 1
    %v1000 = vsel %vm999, %v993, %v815
    %v1001 = vsel %vm999, %v987, %v816
    %1003 = vrot.lane.b32.xlu0 %v1000, 32
    %v1004 = vpop.permute.xlu0 %1003
    %1006 = vst.msk [vmem:[%s822] sm:$0x3] %vm50, %v1004
    %s1007 = scalar_lea.vmem [#allocation2], 10
    %v1008 = vld [vmem:[%s1007] sm:$0x3]
    %v1009 = vsel %vm76, %v1004, 0
    %1011 = vmatprep.subr.mxu0 0.0
    %1012 = vmatpush1.msra.mxu0 0.0
    %1013 = vmatprep.subr.mxu0 0.0
    %1014 = vmatpush1.msra.mxu0 0.0
    %1015 = vmatprep.subr.mxu0 0.0
    %1016 = vmatpush1.msra.mxu0 0.0
    %1017 = vmatprep.subr.mxu0 0.0
    %1018 = vmatpush1.msra.mxu0 0.0
    %1019 = vmatprep.subr.mxu0 0.0
    %1020 = vmatpush1.msra.mxu0 0.0
    %1021 = vmatprep.subr.mxu0 0.0
    %1022 = vmatpush1.msra.mxu0 0.0
    %1023 = vmatprep.subr.mxu0 0.0
    %1024 = vmatpush1.msra.mxu0 0.0
    %1025 = vmatprep.subr.mxu0 0.0
    %1026 = vmatpush1.msra.mxu0 0.0
    %1027 = vmatprep.subr.mxu0 0.0
    %1028 = vmatpush1.msra.mxu0 0.0
    %1029 = vmatprep.subr.mxu0 0.0
    %1030 = vmatpush1.msra.mxu0 0.0
    %1031 = vmatprep.subr.mxu0 0.0
    %1032 = vmatpush1.msra.mxu0 0.0
    %1033 = vmatprep.subr.mxu0 0.0
    %1034 = vmatpush1.msra.mxu0 0.0
    %1035 = vmatprep.subr.mxu0 0.0
    %1036 = vmatpush1.msra.mxu0 %v73
    %1037 = vmatprep.subr.mxu0 0.0
    %1038 = vmatpush1.msra.mxu0 %v72
    %1039 = vmatprep.subr.mxu0 0.0
    %1040 = vmatpush1.msra.mxu0 %v71
    %1041 = vmatprep.subr.mxu0 0.0
    %1042 = vmatpush1.msra.mxu0 %v70
    %1043 = vmatprep.subr.mxu0 0.0
    %1044 = vmatpush2.msra.mxu0 0.0
    %1045 = vmatprep.subr.mxu0 0.0
    %1046 = vmatpush2.msra.mxu0 0.0
    %1047 = vmatprep.subr.mxu0 0.0
    %1048 = vmatpush2.msra.mxu0 0.0
    %1049 = vmatprep.subr.mxu0 0.0
    %1050 = vmatpush2.msra.mxu0 0.0
    %1051 = vmatprep.subr.mxu0 0.0
    %1052 = vmatpush2.msra.mxu0 0.0
    %1053 = vmatprep.subr.mxu0 0.0
    %1054 = vmatpush2.msra.mxu0 0.0
    %1055 = vmatprep.subr.mxu0 0.0
    %1056 = vmatpush2.msra.mxu0 0.0
    %1057 = vmatprep.subr.mxu0 0.0
    %1058 = vmatpush2.msra.mxu0 0.0
    %1059 = vmatprep.subr.mxu0 0.0
    %1060 = vmatpush2.msra.mxu0 0.0
    %1061 = vmatprep.subr.mxu0 0.0
    %1062 = vmatpush2.msra.mxu0 0.0
    %1063 = vmatprep.subr.mxu0 0.0
    %1064 = vmatpush2.msra.mxu0 0.0
    %1065 = vmatprep.subr.mxu0 0.0
    %1066 = vmatpush2.msra.mxu0 0.0
    %1067 = vmatprep.subr.mxu0 0.0
    %1068 = vmatpush2.msra.mxu0 0.0
    %1069 = vmatprep.subr.mxu0 0.0
    %1070 = vmatpush2.msra.mxu0 0.0
    %1071 = vmatprep.subr.mxu0 0.0
    %1072 = vmatpush2.msra.mxu0 0.0
    %1073 = vmatprep.subr.mxu0 0.0
    %1074 = vmatpush2.msra.mxu0 0.0
    %1075 = vmatprep.mubr.f32.mxu0 0.0
    %1076 = vmatmul.mubr.f32.gmra.mxu0 %v1009
    %v1077 = vpop.f32.mrf.mxu0
    %v1078 = vadd.f32 0.0, %v1077
    %v1079 = vpop.f32.mrf.mxu0
    %1080 = vdwg.mxu0
    %v1082 = vsel %vm76, %v1008, 0
    %1084 = vmatprep.subr.mxu0 0.0
    %1085 = vmatpush1.msra.mxu0 0.0
    %1086 = vmatprep.subr.mxu0 0.0
    %1087 = vmatpush1.msra.mxu0 0.0
    %1088 = vmatprep.subr.mxu0 0.0
    %1089 = vmatpush1.msra.mxu0 0.0
    %1090 = vmatprep.subr.mxu0 0.0
    %1091 = vmatpush1.msra.mxu0 0.0
    %1092 = vmatprep.subr.mxu0 0.0
    %1093 = vmatpush1.msra.mxu0 0.0
    %1094 = vmatprep.subr.mxu0 0.0
    %1095 = vmatpush1.msra.mxu0 0.0
    %1096 = vmatprep.subr.mxu0 0.0
    %1097 = vmatpush1.msra.mxu0 0.0
    %1098 = vmatprep.subr.mxu0 0.0
    %1099 = vmatpush1.msra.mxu0 0.0
    %1100 = vmatprep.subr.mxu0 0.0
    %1101 = vmatpush1.msra.mxu0 0.0
    %1102 = vmatprep.subr.mxu0 0.0
    %1103 = vmatpush1.msra.mxu0 0.0
    %1104 = vmatprep.subr.mxu0 0.0
    %1105 = vmatpush1.msra.mxu0 0.0
    %1106 = vmatprep.subr.mxu0 0.0
    %1107 = vmatpush1.msra.mxu0 0.0
    %1108 = vmatprep.subr.mxu0 0.0
    %1109 = vmatpush1.msra.mxu0 %v69
    %1110 = vmatprep.subr.mxu0 0.0
    %1111 = vmatpush1.msra.mxu0 %v68
    %1112 = vmatprep.subr.mxu0 0.0
    %1113 = vmatpush1.msra.mxu0 %v67
    %1114 = vmatprep.subr.mxu0 0.0
    %1115 = vmatpush1.msra.mxu0 %v66
    %1116 = vmatprep.subr.mxu0 0.0
    %1117 = vmatpush2.msra.mxu0 0.0
    %1118 = vmatprep.subr.mxu0 0.0
    %1119 = vmatpush2.msra.mxu0 0.0
    %1120 = vmatprep.subr.mxu0 0.0
    %1121 = vmatpush2.msra.mxu0 0.0
    %1122 = vmatprep.subr.mxu0 0.0
    %1123 = vmatpush2.msra.mxu0 0.0
    %1124 = vmatprep.subr.mxu0 0.0
    %1125 = vmatpush2.msra.mxu0 0.0
    %1126 = vmatprep.subr.mxu0 0.0
    %1127 = vmatpush2.msra.mxu0 0.0
    %1128 = vmatprep.subr.mxu0 0.0
    %1129 = vmatpush2.msra.mxu0 0.0
    %1130 = vmatprep.subr.mxu0 0.0
    %1131 = vmatpush2.msra.mxu0 0.0
    %1132 = vmatprep.subr.mxu0 0.0
    %1133 = vmatpush2.msra.mxu0 0.0
    %1134 = vmatprep.subr.mxu0 0.0
    %1135 = vmatpush2.msra.mxu0 0.0
    %1136 = vmatprep.subr.mxu0 0.0
    %1137 = vmatpush2.msra.mxu0 0.0
    %1138 = vmatprep.subr.mxu0 0.0
    %1139 = vmatpush2.msra.mxu0 0.0
    %1140 = vmatprep.subr.mxu0 0.0
    %1141 = vmatpush2.msra.mxu0 0.0
    %1142 = vmatprep.subr.mxu0 0.0
    %1143 = vmatpush2.msra.mxu0 0.0
    %1144 = vmatprep.subr.mxu0 0.0
    %1145 = vmatpush2.msra.mxu0 0.0
    %1146 = vmatprep.subr.mxu0 0.0
    %1147 = vmatpush2.msra.mxu0 0.0
    %1148 = vmatprep.mubr.f32.mxu0 0.0
    %1149 = vmatmul.mubr.f32.gmra.mxu0 %v1082
    %v1150 = vpop.f32.mrf.mxu0
    %v1151 = vadd.f32 %v1078, %v1150
    %v1152 = vpop.f32.mrf.mxu0
    %1153 = vdwg.mxu0
    %v1154 = vadd.f32 %v1151, %v227
    %v1155 = vxor.u32 %v1154, 2147483648
    %v1156 = vmul.f32 %v1155, 1.442695
    %v1157 = vpow.pop %v1156
    %v1158 = vadd.f32 %v1157, 1.0
    %v1159 = vrcp.pop %v1158
    %v1160 = vmul.f32 1.0, %v1159
    %v1161 = vtanh.pop %v1154
    %v1162 = vmul.f32 %v1160, %v1001
    %1164 = vrot.lane.b32.xlu0 %v1161, 64
    %v1165 = vpop.permute.xlu0 %1164
    %v1167 = vmul.f32 %v1160, %v1165
    %1169 = vrot.lane.b32.xlu0 %v1167, 32
    %v1170 = vpop.permute.xlu0 %1169
    %v1172 = vadd.f32 %v1162, %v1170
    %v1173 = vtanh.pop %v1172
    %1175 = vrot.lane.b32.xlu0 %v1173, 64
    %v1176 = vpop.permute.xlu0 %1175
    %v1178 = vmul.f32 %v1160, %v1176
    %vm1179 = vcmp.gt.s32.totalorder %v41, 5
    %v1180 = vsel %vm1179, 1, 0
    %1181 = vset.pattern.permute.xlu0 0
    %1182 = vperm.xlu0 %1181, %v1180
    %v1183 = vpop.permute.xlu0 %1182
    %vm1184 = vcmp.eq.s32.totalorder %v1183, 1
    %v1185 = vsel %vm1184, %v1178, %v1000
    %v1186 = vsel %vm1184, %v1172, %v1001
    %1188 = vrot.lane.b32.xlu0 %v1185, 32
    %v1189 = vpop.permute.xlu0 %1188
    %1191 = vst.msk [vmem:[%s1007] sm:$0x3] %vm50, %v1189
    %s1192 = scalar_lea.vmem [#allocation2], 12
    %v1193 = vld [vmem:[%s1192] sm:$0x3]
    %v1194 = vsel %vm76, %v1189, 0
    %1196 = vmatprep.subr.mxu0 0.0
    %1197 = vmatpush1.msra.mxu0 0.0
    %1198 = vmatprep.subr.mxu0 0.0
    %1199 = vmatpush1.msra.mxu0 0.0
    %1200 = vmatprep.subr.mxu0 0.0
    %1201 = vmatpush1.msra.mxu0 0.0
    %1202 = vmatprep.subr.mxu0 0.0
    %1203 = vmatpush1.msra.mxu0 0.0
    %1204 = vmatprep.subr.mxu0 0.0
    %1205 = vmatpush1.msra.mxu0 0.0
    %1206 = vmatprep.subr.mxu0 0.0
    %1207 = vmatpush1.msra.mxu0 0.0
    %1208 = vmatprep.subr.mxu0 0.0
    %1209 = vmatpush1.msra.mxu0 0.0
    %1210 = vmatprep.subr.mxu0 0.0
    %1211 = vmatpush1.msra.mxu0 0.0
    %1212 = vmatprep.subr.mxu0 0.0
    %1213 = vmatpush1.msra.mxu0 0.0
    %1214 = vmatprep.subr.mxu0 0.0
    %1215 = vmatpush1.msra.mxu0 0.0
    %1216 = vmatprep.subr.mxu0 0.0
    %1217 = vmatpush1.msra.mxu0 0.0
    %1218 = vmatprep.subr.mxu0 0.0
    %1219 = vmatpush1.msra.mxu0 0.0
    %1220 = vmatprep.subr.mxu0 0.0
    %1221 = vmatpush1.msra.mxu0 %v73
    %1222 = vmatprep.subr.mxu0 0.0
    %1223 = vmatpush1.msra.mxu0 %v72
    %1224 = vmatprep.subr.mxu0 0.0
    %1225 = vmatpush1.msra.mxu0 %v71
    %1226 = vmatprep.subr.mxu0 0.0
    %1227 = vmatpush1.msra.mxu0 %v70
    %1228 = vmatprep.subr.mxu0 0.0
    %1229 = vmatpush2.msra.mxu0 0.0
    %1230 = vmatprep.subr.mxu0 0.0
    %1231 = vmatpush2.msra.mxu0 0.0
    %1232 = vmatprep.subr.mxu0 0.0
    %1233 = vmatpush2.msra.mxu0 0.0
    %1234 = vmatprep.subr.mxu0 0.0
    %1235 = vmatpush2.msra.mxu0 0.0
    %1236 = vmatprep.subr.mxu0 0.0
    %1237 = vmatpush2.msra.mxu0 0.0
    %1238 = vmatprep.subr.mxu0 0.0
    %1239 = vmatpush2.msra.mxu0 0.0
    %1240 = vmatprep.subr.mxu0 0.0
    %1241 = vmatpush2.msra.mxu0 0.0
    %1242 = vmatprep.subr.mxu0 0.0
    %1243 = vmatpush2.msra.mxu0 0.0
    %1244 = vmatprep.subr.mxu0 0.0
    %1245 = vmatpush2.msra.mxu0 0.0
    %1246 = vmatprep.subr.mxu0 0.0
    %1247 = vmatpush2.msra.mxu0 0.0
    %1248 = vmatprep.subr.mxu0 0.0
    %1249 = vmatpush2.msra.mxu0 0.0
    %1250 = vmatprep.subr.mxu0 0.0
    %1251 = vmatpush2.msra.mxu0 0.0
    %1252 = vmatprep.subr.mxu0 0.0
    %1253 = vmatpush2.msra.mxu0 0.0
    %1254 = vmatprep.subr.mxu0 0.0
    %1255 = vmatpush2.msra.mxu0 0.0
    %1256 = vmatprep.subr.mxu0 0.0
    %1257 = vmatpush2.msra.mxu0 0.0
    %1258 = vmatprep.subr.mxu0 0.0
    %1259 = vmatpush2.msra.mxu0 0.0
    %1260 = vmatprep.mubr.f32.mxu0 0.0
    %1261 = vmatmul.mubr.f32.gmra.mxu0 %v1194
    %v1262 = vpop.f32.mrf.mxu0
    %v1263 = vadd.f32 0.0, %v1262
    %v1264 = vpop.f32.mrf.mxu0
    %1265 = vdwg.mxu0
    %v1267 = vsel %vm76, %v1193, 0
    %1269 = vmatprep.subr.mxu0 0.0
    %1270 = vmatpush1.msra.mxu0 0.0
    %1271 = vmatprep.subr.mxu0 0.0
    %1272 = vmatpush1.msra.mxu0 0.0
    %1273 = vmatprep.subr.mxu0 0.0
    %1274 = vmatpush1.msra.mxu0 0.0
    %1275 = vmatprep.subr.mxu0 0.0
    %1276 = vmatpush1.msra.mxu0 0.0
    %1277 = vmatprep.subr.mxu0 0.0
    %1278 = vmatpush1.msra.mxu0 0.0
    %1279 = vmatprep.subr.mxu0 0.0
    %1280 = vmatpush1.msra.mxu0 0.0
    %1281 = vmatprep.subr.mxu0 0.0
    %1282 = vmatpush1.msra.mxu0 0.0
    %1283 = vmatprep.subr.mxu0 0.0
    %1284 = vmatpush1.msra.mxu0 0.0
    %1285 = vmatprep.subr.mxu0 0.0
    %1286 = vmatpush1.msra.mxu0 0.0
    %1287 = vmatprep.subr.mxu0 0.0
    %1288 = vmatpush1.msra.mxu0 0.0
    %1289 = vmatprep.subr.mxu0 0.0
    %1290 = vmatpush1.msra.mxu0 0.0
    %1291 = vmatprep.subr.mxu0 0.0
    %1292 = vmatpush1.msra.mxu0 0.0
    %1293 = vmatprep.subr.mxu0 0.0
    %1294 = vmatpush1.msra.mxu0 %v69
    %1295 = vmatprep.subr.mxu0 0.0
    %1296 = vmatpush1.msra.mxu0 %v68
    %1297 = vmatprep.subr.mxu0 0.0
    %1298 = vmatpush1.msra.mxu0 %v67
    %1299 = vmatprep.subr.mxu0 0.0
    %1300 = vmatpush1.msra.mxu0 %v66
    %1301 = vmatprep.subr.mxu0 0.0
    %1302 = vmatpush2.msra.mxu0 0.0
    %1303 = vmatprep.subr.mxu0 0.0
    %1304 = vmatpush2.msra.mxu0 0.0
    %1305 = vmatprep.subr.mxu0 0.0
    %1306 = vmatpush2.msra.mxu0 0.0
    %1307 = vmatprep.subr.mxu0 0.0
    %1308 = vmatpush2.msra.mxu0 0.0
    %1309 = vmatprep.subr.mxu0 0.0
    %1310 = vmatpush2.msra.mxu0 0.0
    %1311 = vmatprep.subr.mxu0 0.0
    %1312 = vmatpush2.msra.mxu0 0.0
    %1313 = vmatprep.subr.mxu0 0.0
    %1314 = vmatpush2.msra.mxu0 0.0
    %1315 = vmatprep.subr.mxu0 0.0
    %1316 = vmatpush2.msra.mxu0 0.0
    %1317 = vmatprep.subr.mxu0 0.0
    %1318 = vmatpush2.msra.mxu0 0.0
    %1319 = vmatprep.subr.mxu0 0.0
    %1320 = vmatpush2.msra.mxu0 0.0
    %1321 = vmatprep.subr.mxu0 0.0
    %1322 = vmatpush2.msra.mxu0 0.0
    %1323 = vmatprep.subr.mxu0 0.0
    %1324 = vmatpush2.msra.mxu0 0.0
    %1325 = vmatprep.subr.mxu0 0.0
    %1326 = vmatpush2.msra.mxu0 0.0
    %1327 = vmatprep.subr.mxu0 0.0
    %1328 = vmatpush2.msra.mxu0 0.0
    %1329 = vmatprep.subr.mxu0 0.0
    %1330 = vmatpush2.msra.mxu0 0.0
    %1331 = vmatprep.subr.mxu0 0.0
    %1332 = vmatpush2.msra.mxu0 0.0
    %1333 = vmatprep.mubr.f32.mxu0 0.0
    %1334 = vmatmul.mubr.f32.gmra.mxu0 %v1267
    %v1335 = vpop.f32.mrf.mxu0
    %v1336 = vadd.f32 %v1263, %v1335
    %v1337 = vpop.f32.mrf.mxu0
    %1338 = vdwg.mxu0
    %v1339 = vadd.f32 %v1336, %v227
    %v1340 = vxor.u32 %v1339, 2147483648
    %v1341 = vmul.f32 %v1340, 1.442695
    %v1342 = vpow.pop %v1341
    %v1343 = vadd.f32 %v1342, 1.0
    %v1344 = vrcp.pop %v1343
    %v1345 = vmul.f32 1.0, %v1344
    %v1346 = vtanh.pop %v1339
    %v1347 = vmul.f32 %v1345, %v1186
    %1349 = vrot.lane.b32.xlu0 %v1346, 64
    %v1350 = vpop.permute.xlu0 %1349
    %v1352 = vmul.f32 %v1345, %v1350
    %1354 = vrot.lane.b32.xlu0 %v1352, 32
    %v1355 = vpop.permute.xlu0 %1354
    %v1357 = vadd.f32 %v1347, %v1355
    %v1358 = vtanh.pop %v1357
    %1360 = vrot.lane.b32.xlu0 %v1358, 64
    %v1361 = vpop.permute.xlu0 %1360
    %v1363 = vmul.f32 %v1345, %v1361
    %vm1364 = vcmp.gt.s32.totalorder %v41, 6
    %v1365 = vsel %vm1364, 1, 0
    %1366 = vset.pattern.permute.xlu0 0
    %1367 = vperm.xlu0 %1366, %v1365
    %v1368 = vpop.permute.xlu0 %1367
    %vm1369 = vcmp.eq.s32.totalorder %v1368, 1
    %v1370 = vsel %vm1369, %v1363, %v1185
    %v1371 = vsel %vm1369, %v1357, %v1186
    %1373 = vrot.lane.b32.xlu0 %v1370, 32
    %v1374 = vpop.permute.xlu0 %1373
    %1376 = vst.msk [vmem:[%s1192] sm:$0x3] %vm50, %v1374
    %s1377 = scalar_lea.vmem [#allocation2], 14
    %v1378 = vld [vmem:[%s1377] sm:$0x3]
    %v1379 = vsel %vm76, %v1374, 0
    %1381 = vmatprep.subr.mxu0 0.0
    %1382 = vmatpush1.msra.mxu0 0.0
    %1383 = vmatprep.subr.mxu0 0.0
    %1384 = vmatpush1.msra.mxu0 0.0
    %1385 = vmatprep.subr.mxu0 0.0
    %1386 = vmatpush1.msra.mxu0 0.0
    %1387 = vmatprep.subr.mxu0 0.0
    %1388 = vmatpush1.msra.mxu0 0.0
    %1389 = vmatprep.subr.mxu0 0.0
    %1390 = vmatpush1.msra.mxu0 0.0
    %1391 = vmatprep.subr.mxu0 0.0
    %1392 = vmatpush1.msra.mxu0 0.0
    %1393 = vmatprep.subr.mxu0 0.0
    %1394 = vmatpush1.msra.mxu0 0.0
    %1395 = vmatprep.subr.mxu0 0.0
    %1396 = vmatpush1.msra.mxu0 0.0
    %1397 = vmatprep.subr.mxu0 0.0
    %1398 = vmatpush1.msra.mxu0 0.0
    %1399 = vmatprep.subr.mxu0 0.0
    %1400 = vmatpush1.msra.mxu0 0.0
    %1401 = vmatprep.subr.mxu0 0.0
    %1402 = vmatpush1.msra.mxu0 0.0
    %1403 = vmatprep.subr.mxu0 0.0
    %1404 = vmatpush1.msra.mxu0 0.0
    %1405 = vmatprep.subr.mxu0 0.0
    %1406 = vmatpush1.msra.mxu0 %v73
    %1407 = vmatprep.subr.mxu0 0.0
    %1408 = vmatpush1.msra.mxu0 %v72
    %1409 = vmatprep.subr.mxu0 0.0
    %1410 = vmatpush1.msra.mxu0 %v71
    %1411 = vmatprep.subr.mxu0 0.0
    %1412 = vmatpush1.msra.mxu0 %v70
    %1413 = vmatprep.subr.mxu0 0.0
    %1414 = vmatpush2.msra.mxu0 0.0
    %1415 = vmatprep.subr.mxu0 0.0
    %1416 = vmatpush2.msra.mxu0 0.0
    %1417 = vmatprep.subr.mxu0 0.0
    %1418 = vmatpush2.msra.mxu0 0.0
    %1419 = vmatprep.subr.mxu0 0.0
    %1420 = vmatpush2.msra.mxu0 0.0
    %1421 = vmatprep.subr.mxu0 0.0
    %1422 = vmatpush2.msra.mxu0 0.0
    %1423 = vmatprep.subr.mxu0 0.0
    %1424 = vmatpush2.msra.mxu0 0.0
    %1425 = vmatprep.subr.mxu0 0.0
    %1426 = vmatpush2.msra.mxu0 0.0
    %1427 = vmatprep.subr.mxu0 0.0
    %1428 = vmatpush2.msra.mxu0 0.0
    %1429 = vmatprep.subr.mxu0 0.0
    %1430 = vmatpush2.msra.mxu0 0.0
    %1431 = vmatprep.subr.mxu0 0.0
    %1432 = vmatpush2.msra.mxu0 0.0
    %1433 = vmatprep.subr.mxu0 0.0
    %1434 = vmatpush2.msra.mxu0 0.0
    %1435 = vmatprep.subr.mxu0 0.0
    %1436 = vmatpush2.msra.mxu0 0.0
    %1437 = vmatprep.subr.mxu0 0.0
    %1438 = vmatpush2.msra.mxu0 0.0
    %1439 = vmatprep.subr.mxu0 0.0
    %1440 = vmatpush2.msra.mxu0 0.0
    %1441 = vmatprep.subr.mxu0 0.0
    %1442 = vmatpush2.msra.mxu0 0.0
    %1443 = vmatprep.subr.mxu0 0.0
    %1444 = vmatpush2.msra.mxu0 0.0
    %1445 = vmatprep.mubr.f32.mxu0 0.0
    %1446 = vmatmul.mubr.f32.gmra.mxu0 %v1379
    %v1447 = vpop.f32.mrf.mxu0
    %v1448 = vadd.f32 0.0, %v1447
    %v1449 = vpop.f32.mrf.mxu0
    %1450 = vdwg.mxu0
    %v1452 = vsel %vm76, %v1378, 0
    %1454 = vmatprep.subr.mxu0 0.0
    %1455 = vmatpush1.msra.mxu0 0.0
    %1456 = vmatprep.subr.mxu0 0.0
    %1457 = vmatpush1.msra.mxu0 0.0
    %1458 = vmatprep.subr.mxu0 0.0
    %1459 = vmatpush1.msra.mxu0 0.0
    %1460 = vmatprep.subr.mxu0 0.0
    %1461 = vmatpush1.msra.mxu0 0.0
    %1462 = vmatprep.subr.mxu0 0.0
    %1463 = vmatpush1.msra.mxu0 0.0
    %1464 = vmatprep.subr.mxu0 0.0
    %1465 = vmatpush1.msra.mxu0 0.0
    %1466 = vmatprep.subr.mxu0 0.0
    %1467 = vmatpush1.msra.mxu0 0.0
    %1468 = vmatprep.subr.mxu0 0.0
    %1469 = vmatpush1.msra.mxu0 0.0
    %1470 = vmatprep.subr.mxu0 0.0
    %1471 = vmatpush1.msra.mxu0 0.0
    %1472 = vmatprep.subr.mxu0 0.0
    %1473 = vmatpush1.msra.mxu0 0.0
    %1474 = vmatprep.subr.mxu0 0.0
    %1475 = vmatpush1.msra.mxu0 0.0
    %1476 = vmatprep.subr.mxu0 0.0
    %1477 = vmatpush1.msra.mxu0 0.0
    %1478 = vmatprep.subr.mxu0 0.0
    %1479 = vmatpush1.msra.mxu0 %v69
    %1480 = vmatprep.subr.mxu0 0.0
    %1481 = vmatpush1.msra.mxu0 %v68
    %1482 = vmatprep.subr.mxu0 0.0
    %1483 = vmatpush1.msra.mxu0 %v67
    %1484 = vmatprep.subr.mxu0 0.0
    %1485 = vmatpush1.msra.mxu0 %v66
    %1486 = vmatprep.subr.mxu0 0.0
    %1487 = vmatpush2.msra.mxu0 0.0
    %1488 = vmatprep.subr.mxu0 0.0
    %1489 = vmatpush2.msra.mxu0 0.0
    %1490 = vmatprep.subr.mxu0 0.0
    %1491 = vmatpush2.msra.mxu0 0.0
    %1492 = vmatprep.subr.mxu0 0.0
    %1493 = vmatpush2.msra.mxu0 0.0
    %1494 = vmatprep.subr.mxu0 0.0
    %1495 = vmatpush2.msra.mxu0 0.0
    %1496 = vmatprep.subr.mxu0 0.0
    %1497 = vmatpush2.msra.mxu0 0.0
    %1498 = vmatprep.subr.mxu0 0.0
    %1499 = vmatpush2.msra.mxu0 0.0
    %1500 = vmatprep.subr.mxu0 0.0
    %1501 = vmatpush2.msra.mxu0 0.0
    %1502 = vmatprep.subr.mxu0 0.0
    %1503 = vmatpush2.msra.mxu0 0.0
    %1504 = vmatprep.subr.mxu0 0.0
    %1505 = vmatpush2.msra.mxu0 0.0
    %1506 = vmatprep.subr.mxu0 0.0
    %1507 = vmatpush2.msra.mxu0 0.0
    %1508 = vmatprep.subr.mxu0 0.0
    %1509 = vmatpush2.msra.mxu0 0.0
    %1510 = vmatprep.subr.mxu0 0.0
    %1511 = vmatpush2.msra.mxu0 0.0
    %1512 = vmatprep.subr.mxu0 0.0
    %1513 = vmatpush2.msra.mxu0 0.0
    %1514 = vmatprep.subr.mxu0 0.0
    %1515 = vmatpush2.msra.mxu0 0.0
    %1516 = vmatprep.subr.mxu0 0.0
    %1517 = vmatpush2.msra.mxu0 0.0
    %1518 = vmatprep.mubr.f32.mxu0 0.0
    %1519 = vmatmul.mubr.f32.gmra.mxu0 %v1452
    %v1520 = vpop.f32.mrf.mxu0
    %v1521 = vadd.f32 %v1448, %v1520
    %v1522 = vpop.f32.mrf.mxu0
    %1523 = vdwg.mxu0
    %v1524 = vadd.f32 %v1521, %v227
    %v1525 = vxor.u32 %v1524, 2147483648
    %v1526 = vmul.f32 %v1525, 1.442695
    %v1527 = vpow.pop %v1526
    %v1528 = vadd.f32 %v1527, 1.0
    %v1529 = vrcp.pop %v1528
    %v1530 = vmul.f32 1.0, %v1529
    %v1531 = vtanh.pop %v1524
    %v1532 = vmul.f32 %v1530, %v1371
    %1534 = vrot.lane.b32.xlu0 %v1531, 64
    %v1535 = vpop.permute.xlu0 %1534
    %v1537 = vmul.f32 %v1530, %v1535
    %1539 = vrot.lane.b32.xlu0 %v1537, 32
    %v1540 = vpop.permute.xlu0 %1539
    %v1542 = vadd.f32 %v1532, %v1540
    %v1543 = vtanh.pop %v1542
    %1545 = vrot.lane.b32.xlu0 %v1543, 64
    %v1546 = vpop.permute.xlu0 %1545
    %v1548 = vmul.f32 %v1530, %v1546
    %vm1549 = vcmp.gt.s32.totalorder %v41, 7
    %v1550 = vsel %vm1549, 1, 0
    %1551 = vset.pattern.permute.xlu0 0
    %1552 = vperm.xlu0 %1551, %v1550
    %v1553 = vpop.permute.xlu0 %1552
    %vm1554 = vcmp.eq.s32.totalorder %v1553, 1
    %v1555 = vsel %vm1554, %v1548, %v1370
    %1557 = vrot.lane.b32.xlu0 %v1555, 32
    %v1558 = vpop.permute.xlu0 %1557
    %1560 = vst.msk [vmem:[%s1377] sm:$0x3] %vm50, %v1558
    %v1561 = vld [vmem:[%s5] sm:$0xff]
    %v1562 = vld [vmem:[%s5 + $0x8] sm:$0xff]
    %v1563 = vld [vmem:[%s5 + $0x10] sm:$0xff]
    %v1564 = vld [vmem:[%s5 + $0x18] sm:$0xff]
    %v1565 = vsel %vm76, %v1558, 0
    %1567 = vmatprep.subr.mxu0 0.0
    %1568 = vmatpush1.msra.mxu0 0.0
    %1569 = vmatprep.subr.mxu0 0.0
    %1570 = vmatpush1.msra.mxu0 0.0
    %1571 = vmatprep.subr.mxu0 0.0
    %1572 = vmatpush1.msra.mxu0 0.0
    %1573 = vmatprep.subr.mxu0 0.0
    %1574 = vmatpush1.msra.mxu0 0.0
    %1575 = vmatprep.subr.mxu0 0.0
    %1576 = vmatpush1.msra.mxu0 0.0
    %1577 = vmatprep.subr.mxu0 0.0
    %1578 = vmatpush1.msra.mxu0 0.0
    %1579 = vmatprep.subr.mxu0 0.0
    %1580 = vmatpush1.msra.mxu0 0.0
    %1581 = vmatprep.subr.mxu0 0.0
    %1582 = vmatpush1.msra.mxu0 0.0
    %1583 = vmatprep.subr.mxu0 0.0
    %1584 = vmatpush1.msra.mxu0 0.0
    %1585 = vmatprep.subr.mxu0 0.0
    %1586 = vmatpush1.msra.mxu0 0.0
    %1587 = vmatprep.subr.mxu0 0.0
    %1588 = vmatpush1.msra.mxu0 0.0
    %1589 = vmatprep.subr.mxu0 0.0
    %1590 = vmatpush1.msra.mxu0 0.0
    %1591 = vmatprep.subr.mxu0 0.0
    %1592 = vmatpush1.msra.mxu0 %v1564
    %1593 = vmatprep.subr.mxu0 0.0
    %1594 = vmatpush1.msra.mxu0 %v1563
    %1595 = vmatprep.subr.mxu0 0.0
    %1596 = vmatpush1.msra.mxu0 %v1562
    %1597 = vmatprep.subr.mxu0 0.0
    %1598 = vmatpush1.msra.mxu0 %v1561
    %1599 = vmatprep.subr.mxu0 0.0
    %1600 = vmatpush2.msra.mxu0 0.0
    %1601 = vmatprep.subr.mxu0 0.0
    %1602 = vmatpush2.msra.mxu0 0.0
    %1603 = vmatprep.subr.mxu0 0.0
    %1604 = vmatpush2.msra.mxu0 0.0
    %1605 = vmatprep.subr.mxu0 0.0
    %1606 = vmatpush2.msra.mxu0 0.0
    %1607 = vmatprep.subr.mxu0 0.0
    %1608 = vmatpush2.msra.mxu0 0.0
    %1609 = vmatprep.subr.mxu0 0.0
    %1610 = vmatpush2.msra.mxu0 0.0
    %1611 = vmatprep.subr.mxu0 0.0
    %1612 = vmatpush2.msra.mxu0 0.0
    %1613 = vmatprep.subr.mxu0 0.0
    %1614 = vmatpush2.msra.mxu0 0.0
    %1615 = vmatprep.subr.mxu0 0.0
    %1616 = vmatpush2.msra.mxu0 0.0
    %1617 = vmatprep.subr.mxu0 0.0
    %1618 = vmatpush2.msra.mxu0 0.0
    %1619 = vmatprep.subr.mxu0 0.0
    %1620 = vmatpush2.msra.mxu0 0.0
    %1621 = vmatprep.subr.mxu0 0.0
    %1622 = vmatpush2.msra.mxu0 0.0
    %1623 = vmatprep.subr.mxu0 0.0
    %1624 = vmatpush2.msra.mxu0 0.0
    %1625 = vmatprep.subr.mxu0 0.0
    %1626 = vmatpush2.msra.mxu0 0.0
    %1627 = vmatprep.subr.mxu0 0.0
    %1628 = vmatpush2.msra.mxu0 0.0
    %1629 = vmatprep.subr.mxu0 0.0
    %1630 = vmatpush2.msra.mxu0 0.0
    %1631 = vmatprep.mubr.f32.mxu0 0.0
    %1632 = vmatmul.mubr.f32.gmra.mxu0 %v1565
    %v1633 = vpop.f32.mrf.mxu0
    %v1634 = vadd.f32 0.0, %v1633
    %v1635 = vpop.f32.mrf.mxu0
    %1636 = vdwg.mxu0
    %v1637 = vadd.f32 %v64, %v1634
    %s1638 = scalar_lea.vmem %s2, 32
    %v1639 = vld [vmem:[%s1638] sm:$0xff]
    %v1640 = vld [vmem:[%s1638 + $0x8] sm:$0xff]
    %v1641 = vld [vmem:[%s1638 + $0x10] sm:$0xff]
    %v1642 = vld [vmem:[%s1638 + $0x18] sm:$0xff]
    %s1643 = scalar_lea.vmem [#allocation3], 32
    %v1644 = vld [vmem:[%s1643] sm:$0xff]
    %v1645 = vld [vmem:[%s1643 + $0x8] sm:$0xff]
    %v1646 = vld [vmem:[%s1643 + $0x10] sm:$0xff]
    %v1647 = vld [vmem:[%s1643 + $0x18] sm:$0xff]
    %s1648 = scalar_lea.vmem %s4, 1
    %v1649 = vld [vmem:[%s1648] sm:$0x1]
    %v1650 = vld [vmem:[#allocation2] sm:$0x3]
    %1651 = vmatprep.subr.mxu0 0.0
    %1652 = vmatpush1.msra.mxu0 0.0
    %1653 = vmatprep.subr.mxu0 0.0
    %1654 = vmatpush1.msra.mxu0 0.0
    %1655 = vmatprep.subr.mxu0 0.0
    %1656 = vmatpush1.msra.mxu0 0.0
    %1657 = vmatprep.subr.mxu0 0.0
    %1658 = vmatpush1.msra.mxu0 0.0
    %1659 = vmatprep.subr.mxu0 0.0
    %1660 = vmatpush1.msra.mxu0 0.0
    %1661 = vmatprep.subr.mxu0 0.0
    %1662 = vmatpush1.msra.mxu0 0.0
    %1663 = vmatprep.subr.mxu0 0.0
    %1664 = vmatpush1.msra.mxu0 0.0
    %1665 = vmatprep.subr.mxu0 0.0
    %1666 = vmatpush1.msra.mxu0 0.0
    %1667 = vmatprep.subr.mxu0 0.0
    %1668 = vmatpush1.msra.mxu0 0.0
    %1669 = vmatprep.subr.mxu0 0.0
    %1670 = vmatpush1.msra.mxu0 0.0
    %1671 = vmatprep.subr.mxu0 0.0
    %1672 = vmatpush1.msra.mxu0 0.0
    %1673 = vmatprep.subr.mxu0 0.0
    %1674 = vmatpush1.msra.mxu0 0.0
    %1675 = vmatprep.subr.mxu0 0.0
    %1676 = vmatpush1.msra.mxu0 %v1647
    %1677 = vmatprep.subr.mxu0 0.0
    %1678 = vmatpush1.msra.mxu0 %v1646
    %1679 = vmatprep.subr.mxu0 0.0
    %1680 = vmatpush1.msra.mxu0 %v1645
    %1681 = vmatprep.subr.mxu0 0.0
    %1682 = vmatpush1.msra.mxu0 %v1644
    %1683 = vmatprep.subr.mxu0 0.0
    %1684 = vmatpush2.msra.mxu0 0.0
    %1685 = vmatprep.subr.mxu0 0.0
    %1686 = vmatpush2.msra.mxu0 0.0
    %1687 = vmatprep.subr.mxu0 0.0
    %1688 = vmatpush2.msra.mxu0 0.0
    %1689 = vmatprep.subr.mxu0 0.0
    %1690 = vmatpush2.msra.mxu0 0.0
    %1691 = vmatprep.subr.mxu0 0.0
    %1692 = vmatpush2.msra.mxu0 0.0
    %1693 = vmatprep.subr.mxu0 0.0
    %1694 = vmatpush2.msra.mxu0 0.0
    %1695 = vmatprep.subr.mxu0 0.0
    %1696 = vmatpush2.msra.mxu0 0.0
    %1697 = vmatprep.subr.mxu0 0.0
    %1698 = vmatpush2.msra.mxu0 0.0
    %1699 = vmatprep.subr.mxu0 0.0
    %1700 = vmatpush2.msra.mxu0 0.0
    %1701 = vmatprep.subr.mxu0 0.0
    %1702 = vmatpush2.msra.mxu0 0.0
    %1703 = vmatprep.subr.mxu0 0.0
    %1704 = vmatpush2.msra.mxu0 0.0
    %1705 = vmatprep.subr.mxu0 0.0
    %1706 = vmatpush2.msra.mxu0 0.0
    %1707 = vmatprep.subr.mxu0 0.0
    %1708 = vmatpush2.msra.mxu0 0.0
    %1709 = vmatprep.subr.mxu0 0.0
    %1710 = vmatpush2.msra.mxu0 0.0
    %1711 = vmatprep.subr.mxu0 0.0
    %1712 = vmatpush2.msra.mxu0 0.0
    %1713 = vmatprep.subr.mxu0 0.0
    %1714 = vmatpush2.msra.mxu0 0.0
    %1715 = vmatprep.mubr.f32.mxu0 0.0
    %1716 = vmatmul.mubr.f32.gmra.mxu0 %v78
    %v1717 = vpop.f32.mrf.mxu0
    %v1718 = vadd.f32 0.0, %v1717
    %v1719 = vpop.f32.mrf.mxu0
    %1720 = vdwg.mxu0
    %v1722 = vsel %vm76, %v1650, 0
    %1724 = vmatprep.subr.mxu0 0.0
    %1725 = vmatpush1.msra.mxu0 0.0
    %1726 = vmatprep.subr.mxu0 0.0
    %1727 = vmatpush1.msra.mxu0 0.0
    %1728 = vmatprep.subr.mxu0 0.0
    %1729 = vmatpush1.msra.mxu0 0.0
    %1730 = vmatprep.subr.mxu0 0.0
    %1731 = vmatpush1.msra.mxu0 0.0
    %1732 = vmatprep.subr.mxu0 0.0
    %1733 = vmatpush1.msra.mxu0 0.0
    %1734 = vmatprep.subr.mxu0 0.0
    %1735 = vmatpush1.msra.mxu0 0.0
    %1736 = vmatprep.subr.mxu0 0.0
    %1737 = vmatpush1.msra.mxu0 0.0
    %1738 = vmatprep.subr.mxu0 0.0
    %1739 = vmatpush1.msra.mxu0 0.0
    %1740 = vmatprep.subr.mxu0 0.0
    %1741 = vmatpush1.msra.mxu0 0.0
    %1742 = vmatprep.subr.mxu0 0.0
    %1743 = vmatpush1.msra.mxu0 0.0
    %1744 = vmatprep.subr.mxu0 0.0
    %1745 = vmatpush1.msra.mxu0 0.0
    %1746 = vmatprep.subr.mxu0 0.0
    %1747 = vmatpush1.msra.mxu0 0.0
    %1748 = vmatprep.subr.mxu0 0.0
    %1749 = vmatpush1.msra.mxu0 %v1642
    %1750 = vmatprep.subr.mxu0 0.0
    %1751 = vmatpush1.msra.mxu0 %v1641
    %1752 = vmatprep.subr.mxu0 0.0
    %1753 = vmatpush1.msra.mxu0 %v1640
    %1754 = vmatprep.subr.mxu0 0.0
    %1755 = vmatpush1.msra.mxu0 %v1639
    %1756 = vmatprep.subr.mxu0 0.0
    %1757 = vmatpush2.msra.mxu0 0.0
    %1758 = vmatprep.subr.mxu0 0.0
    %1759 = vmatpush2.msra.mxu0 0.0
    %1760 = vmatprep.subr.mxu0 0.0
    %1761 = vmatpush2.msra.mxu0 0.0
    %1762 = vmatprep.subr.mxu0 0.0
    %1763 = vmatpush2.msra.mxu0 0.0
    %1764 = vmatprep.subr.mxu0 0.0
    %1765 = vmatpush2.msra.mxu0 0.0
    %1766 = vmatprep.subr.mxu0 0.0
    %1767 = vmatpush2.msra.mxu0 0.0
    %1768 = vmatprep.subr.mxu0 0.0
    %1769 = vmatpush2.msra.mxu0 0.0
    %1770 = vmatprep.subr.mxu0 0.0
    %1771 = vmatpush2.msra.mxu0 0.0
    %1772 = vmatprep.subr.mxu0 0.0
    %1773 = vmatpush2.msra.mxu0 0.0
    %1774 = vmatprep.subr.mxu0 0.0
    %1775 = vmatpush2.msra.mxu0 0.0
    %1776 = vmatprep.subr.mxu0 0.0
    %1777 = vmatpush2.msra.mxu0 0.0
    %1778 = vmatprep.subr.mxu0 0.0
    %1779 = vmatpush2.msra.mxu0 0.0
    %1780 = vmatprep.subr.mxu0 0.0
    %1781 = vmatpush2.msra.mxu0 0.0
    %1782 = vmatprep.subr.mxu0 0.0
    %1783 = vmatpush2.msra.mxu0 0.0
    %1784 = vmatprep.subr.mxu0 0.0
    %1785 = vmatpush2.msra.mxu0 0.0
    %1786 = vmatprep.subr.mxu0 0.0
    %1787 = vmatpush2.msra.mxu0 0.0
    %1788 = vmatprep.mubr.f32.mxu0 0.0
    %1789 = vmatmul.mubr.f32.gmra.mxu0 %v1722
    %v1790 = vpop.f32.mrf.mxu0
    %v1791 = vadd.f32 %v1718, %v1790
    %v1792 = vpop.f32.mrf.mxu0
    %1793 = vdwg.mxu0
    %v1795 = vlaneseq
    %v1796 = vshrl.u32 %v1795, 7
    %v1797 = vsub.s32 0, %v1796
    %v1798 = vrot.slane %v1649, %v1797
    %v1800 = vadd.f32 %v1791, %v1798
    %v1801 = vxor.u32 %v1800, 2147483648
    %v1802 = vmul.f32 %v1801, 1.442695
    %v1803 = vpow.pop %v1802
    %v1804 = vadd.f32 %v1803, 1.0
    %v1805 = vrcp.pop %v1804
    %v1806 = vmul.f32 1.0, %v1805
    %v1807 = vtanh.pop %v1800
    %v1808 = vmul.f32 %v1806, 0.0
    %1810 = vrot.lane.b32.xlu0 %v1807, 64
    %v1811 = vpop.permute.xlu0 %1810
    %v1813 = vmul.f32 %v1806, %v1811
    %1815 = vrot.lane.b32.xlu0 %v1813, 32
    %v1816 = vpop.permute.xlu0 %1815
    %v1818 = vadd.f32 %v1808, %v1816
    %v1819 = vtanh.pop %v1818
    %1821 = vrot.lane.b32.xlu0 %v1819, 64
    %v1822 = vpop.permute.xlu0 %1821
    %v1824 = vmul.f32 %v1806, %v1822
    %v1825 = vsel %vm259, %v1824, 0.0
    %v1826 = vsel %vm259, %v1818, 0.0
    %1828 = vrot.lane.b32.xlu0 %v1825, 32
    %v1829 = vpop.permute.xlu0 %1828
    %1831 = vst.msk [vmem:[#allocation2] sm:$0x3] %vm50, %v1829
    %v1832 = vld [vmem:[%s267] sm:$0x3]
    %v1833 = vsel %vm76, %v1829, 0
    %1835 = vmatprep.subr.mxu0 0.0
    %1836 = vmatpush1.msra.mxu0 0.0
    %1837 = vmatprep.subr.mxu0 0.0
    %1838 = vmatpush1.msra.mxu0 0.0
    %1839 = vmatprep.subr.mxu0 0.0
    %1840 = vmatpush1.msra.mxu0 0.0
    %1841 = vmatprep.subr.mxu0 0.0
    %1842 = vmatpush1.msra.mxu0 0.0
    %1843 = vmatprep.subr.mxu0 0.0
    %1844 = vmatpush1.msra.mxu0 0.0
    %1845 = vmatprep.subr.mxu0 0.0
    %1846 = vmatpush1.msra.mxu0 0.0
    %1847 = vmatprep.subr.mxu0 0.0
    %1848 = vmatpush1.msra.mxu0 0.0
    %1849 = vmatprep.subr.mxu0 0.0
    %1850 = vmatpush1.msra.mxu0 0.0
    %1851 = vmatprep.subr.mxu0 0.0
    %1852 = vmatpush1.msra.mxu0 0.0
    %1853 = vmatprep.subr.mxu0 0.0
    %1854 = vmatpush1.msra.mxu0 0.0
    %1855 = vmatprep.subr.mxu0 0.0
    %1856 = vmatpush1.msra.mxu0 0.0
    %1857 = vmatprep.subr.mxu0 0.0
    %1858 = vmatpush1.msra.mxu0 0.0
    %1859 = vmatprep.subr.mxu0 0.0
    %1860 = vmatpush1.msra.mxu0 %v1647
    %1861 = vmatprep.subr.mxu0 0.0
    %1862 = vmatpush1.msra.mxu0 %v1646
    %1863 = vmatprep.subr.mxu0 0.0
    %1864 = vmatpush1.msra.mxu0 %v1645
    %1865 = vmatprep.subr.mxu0 0.0
    %1866 = vmatpush1.msra.mxu0 %v1644
    %1867 = vmatprep.subr.mxu0 0.0
    %1868 = vmatpush2.msra.mxu0 0.0
    %1869 = vmatprep.subr.mxu0 0.0
    %1870 = vmatpush2.msra.mxu0 0.0
    %1871 = vmatprep.subr.mxu0 0.0
    %1872 = vmatpush2.msra.mxu0 0.0
    %1873 = vmatprep.subr.mxu0 0.0
    %1874 = vmatpush2.msra.mxu0 0.0
    %1875 = vmatprep.subr.mxu0 0.0
    %1876 = vmatpush2.msra.mxu0 0.0
    %1877 = vmatprep.subr.mxu0 0.0
    %1878 = vmatpush2.msra.mxu0 0.0
    %1879 = vmatprep.subr.mxu0 0.0
    %1880 = vmatpush2.msra.mxu0 0.0
    %1881 = vmatprep.subr.mxu0 0.0
    %1882 = vmatpush2.msra.mxu0 0.0
    %1883 = vmatprep.subr.mxu0 0.0
    %1884 = vmatpush2.msra.mxu0 0.0
    %1885 = vmatprep.subr.mxu0 0.0
    %1886 = vmatpush2.msra.mxu0 0.0
    %1887 = vmatprep.subr.mxu0 0.0
    %1888 = vmatpush2.msra.mxu0 0.0
    %1889 = vmatprep.subr.mxu0 0.0
    %1890 = vmatpush2.msra.mxu0 0.0
    %1891 = vmatprep.subr.mxu0 0.0
    %1892 = vmatpush2.msra.mxu0 0.0
    %1893 = vmatprep.subr.mxu0 0.0
    %1894 = vmatpush2.msra.mxu0 0.0
    %1895 = vmatprep.subr.mxu0 0.0
    %1896 = vmatpush2.msra.mxu0 0.0
    %1897 = vmatprep.subr.mxu0 0.0
    %1898 = vmatpush2.msra.mxu0 0.0
    %1899 = vmatprep.mubr.f32.mxu0 0.0
    %1900 = vmatmul.mubr.f32.gmra.mxu0 %v1833
    %v1901 = vpop.f32.mrf.mxu0
    %v1902 = vadd.f32 0.0, %v1901
    %v1903 = vpop.f32.mrf.mxu0
    %1904 = vdwg.mxu0
    %v1906 = vsel %vm76, %v1832, 0
    %1908 = vmatprep.subr.mxu0 0.0
    %1909 = vmatpush1.msra.mxu0 0.0
    %1910 = vmatprep.subr.mxu0 0.0
    %1911 = vmatpush1.msra.mxu0 0.0
    %1912 = vmatprep.subr.mxu0 0.0
    %1913 = vmatpush1.msra.mxu0 0.0
    %1914 = vmatprep.subr.mxu0 0.0
    %1915 = vmatpush1.msra.mxu0 0.0
    %1916 = vmatprep.subr.mxu0 0.0
    %1917 = vmatpush1.msra.mxu0 0.0
    %1918 = vmatprep.subr.mxu0 0.0
    %1919 = vmatpush1.msra.mxu0 0.0
    %1920 = vmatprep.subr.mxu0 0.0
    %1921 = vmatpush1.msra.mxu0 0.0
    %1922 = vmatprep.subr.mxu0 0.0
    %1923 = vmatpush1.msra.mxu0 0.0
    %1924 = vmatprep.subr.mxu0 0.0
    %1925 = vmatpush1.msra.mxu0 0.0
    %1926 = vmatprep.subr.mxu0 0.0
    %1927 = vmatpush1.msra.mxu0 0.0
    %1928 = vmatprep.subr.mxu0 0.0
    %1929 = vmatpush1.msra.mxu0 0.0
    %1930 = vmatprep.subr.mxu0 0.0
    %1931 = vmatpush1.msra.mxu0 0.0
    %1932 = vmatprep.subr.mxu0 0.0
    %1933 = vmatpush1.msra.mxu0 %v1642
    %1934 = vmatprep.subr.mxu0 0.0
    %1935 = vmatpush1.msra.mxu0 %v1641
    %1936 = vmatprep.subr.mxu0 0.0
    %1937 = vmatpush1.msra.mxu0 %v1640
    %1938 = vmatprep.subr.mxu0 0.0
    %1939 = vmatpush1.msra.mxu0 %v1639
    %1940 = vmatprep.subr.mxu0 0.0
    %1941 = vmatpush2.msra.mxu0 0.0
    %1942 = vmatprep.subr.mxu0 0.0
    %1943 = vmatpush2.msra.mxu0 0.0
    %1944 = vmatprep.subr.mxu0 0.0
    %1945 = vmatpush2.msra.mxu0 0.0
    %1946 = vmatprep.subr.mxu0 0.0
    %1947 = vmatpush2.msra.mxu0 0.0
    %1948 = vmatprep.subr.mxu0 0.0
    %1949 = vmatpush2.msra.mxu0 0.0
    %1950 = vmatprep.subr.mxu0 0.0
    %1951 = vmatpush2.msra.mxu0 0.0
    %1952 = vmatprep.subr.mxu0 0.0
    %1953 = vmatpush2.msra.mxu0 0.0
    %1954 = vmatprep.subr.mxu0 0.0
    %1955 = vmatpush2.msra.mxu0 0.0
    %1956 = vmatprep.subr.mxu0 0.0
    %1957 = vmatpush2.msra.mxu0 0.0
    %1958 = vmatprep.subr.mxu0 0.0
    %1959 = vmatpush2.msra.mxu0 0.0
    %1960 = vmatprep.subr.mxu0 0.0
    %1961 = vmatpush2.msra.mxu0 0.0
    %1962 = vmatprep.subr.mxu0 0.0
    %1963 = vmatpush2.msra.mxu0 0.0
    %1964 = vmatprep.subr.mxu0 0.0
    %1965 = vmatpush2.msra.mxu0 0.0
    %1966 = vmatprep.subr.mxu0 0.0
    %1967 = vmatpush2.msra.mxu0 0.0
    %1968 = vmatprep.subr.mxu0 0.0
    %1969 = vmatpush2.msra.mxu0 0.0
    %1970 = vmatprep.subr.mxu0 0.0
    %1971 = vmatpush2.msra.mxu0 0.0
    %1972 = vmatprep.mubr.f32.mxu0 0.0
    %1973 = vmatmul.mubr.f32.gmra.mxu0 %v1906
    %v1974 = vpop.f32.mrf.mxu0
    %v1975 = vadd.f32 %v1902, %v1974
    %v1976 = vpop.f32.mrf.mxu0
    %1977 = vdwg.mxu0
    %v1978 = vadd.f32 %v1975, %v1798
    %v1979 = vxor.u32 %v1978, 2147483648
    %v1980 = vmul.f32 %v1979, 1.442695
    %v1981 = vpow.pop %v1980
    %v1982 = vadd.f32 %v1981, 1.0
    %v1983 = vrcp.pop %v1982
    %v1984 = vmul.f32 1.0, %v1983
    %v1985 = vtanh.pop %v1978
    %v1986 = vmul.f32 %v1984, %v1826
    %1988 = vrot.lane.b32.xlu0 %v1985, 64
    %v1989 = vpop.permute.xlu0 %1988
    %v1991 = vmul.f32 %v1984, %v1989
    %1993 = vrot.lane.b32.xlu0 %v1991, 32
    %v1994 = vpop.permute.xlu0 %1993
    %v1996 = vadd.f32 %v1986, %v1994
    %v1997 = vtanh.pop %v1996
    %1999 = vrot.lane.b32.xlu0 %v1997, 64
    %v2000 = vpop.permute.xlu0 %1999
    %v2002 = vmul.f32 %v1984, %v2000
    %v2003 = vsel %vm444, %v2002, %v1825
    %v2004 = vsel %vm444, %v1996, %v1826
    %2006 = vrot.lane.b32.xlu0 %v2003, 32
    %v2007 = vpop.permute.xlu0 %2006
    %2009 = vst.msk [vmem:[%s267] sm:$0x3] %vm50, %v2007
    %v2010 = vld [vmem:[%s452] sm:$0x3]
    %v2011 = vsel %vm76, %v2007, 0
    %2013 = vmatprep.subr.mxu0 0.0
    %2014 = vmatpush1.msra.mxu0 0.0
    %2015 = vmatprep.subr.mxu0 0.0
    %2016 = vmatpush1.msra.mxu0 0.0
    %2017 = vmatprep.subr.mxu0 0.0
    %2018 = vmatpush1.msra.mxu0 0.0
    %2019 = vmatprep.subr.mxu0 0.0
    %2020 = vmatpush1.msra.mxu0 0.0
    %2021 = vmatprep.subr.mxu0 0.0
    %2022 = vmatpush1.msra.mxu0 0.0
    %2023 = vmatprep.subr.mxu0 0.0
    %2024 = vmatpush1.msra.mxu0 0.0
    %2025 = vmatprep.subr.mxu0 0.0
    %2026 = vmatpush1.msra.mxu0 0.0
    %2027 = vmatprep.subr.mxu0 0.0
    %2028 = vmatpush1.msra.mxu0 0.0
    %2029 = vmatprep.subr.mxu0 0.0
    %2030 = vmatpush1.msra.mxu0 0.0
    %2031 = vmatprep.subr.mxu0 0.0
    %2032 = vmatpush1.msra.mxu0 0.0
    %2033 = vmatprep.subr.mxu0 0.0
    %2034 = vmatpush1.msra.mxu0 0.0
    %2035 = vmatprep.subr.mxu0 0.0
    %2036 = vmatpush1.msra.mxu0 0.0
    %2037 = vmatprep.subr.mxu0 0.0
    %2038 = vmatpush1.msra.mxu0 %v1647
    %2039 = vmatprep.subr.mxu0 0.0
    %2040 = vmatpush1.msra.mxu0 %v1646
    %2041 = vmatprep.subr.mxu0 0.0
    %2042 = vmatpush1.msra.mxu0 %v1645
    %2043 = vmatprep.subr.mxu0 0.0
    %2044 = vmatpush1.msra.mxu0 %v1644
    %2045 = vmatprep.subr.mxu0 0.0
    %2046 = vmatpush2.msra.mxu0 0.0
    %2047 = vmatprep.subr.mxu0 0.0
    %2048 = vmatpush2.msra.mxu0 0.0
    %2049 = vmatprep.subr.mxu0 0.0
    %2050 = vmatpush2.msra.mxu0 0.0
    %2051 = vmatprep.subr.mxu0 0.0
    %2052 = vmatpush2.msra.mxu0 0.0
    %2053 = vmatprep.subr.mxu0 0.0
    %2054 = vmatpush2.msra.mxu0 0.0
    %2055 = vmatprep.subr.mxu0 0.0
    %2056 = vmatpush2.msra.mxu0 0.0
    %2057 = vmatprep.subr.mxu0 0.0
    %2058 = vmatpush2.msra.mxu0 0.0
    %2059 = vmatprep.subr.mxu0 0.0
    %2060 = vmatpush2.msra.mxu0 0.0
    %2061 = vmatprep.subr.mxu0 0.0
    %2062 = vmatpush2.msra.mxu0 0.0
    %2063 = vmatprep.subr.mxu0 0.0
    %2064 = vmatpush2.msra.mxu0 0.0
    %2065 = vmatprep.subr.mxu0 0.0
    %2066 = vmatpush2.msra.mxu0 0.0
    %2067 = vmatprep.subr.mxu0 0.0
    %2068 = vmatpush2.msra.mxu0 0.0
    %2069 = vmatprep.subr.mxu0 0.0
    %2070 = vmatpush2.msra.mxu0 0.0
    %2071 = vmatprep.subr.mxu0 0.0
    %2072 = vmatpush2.msra.mxu0 0.0
    %2073 = vmatprep.subr.mxu0 0.0
    %2074 = vmatpush2.msra.mxu0 0.0
    %2075 = vmatprep.subr.mxu0 0.0
    %2076 = vmatpush2.msra.mxu0 0.0
    %2077 = vmatprep.mubr.f32.mxu0 0.0
    %2078 = vmatmul.mubr.f32.gmra.mxu0 %v2011
    %v2079 = vpop.f32.mrf.mxu0
    %v2080 = vadd.f32 0.0, %v2079
    %v2081 = vpop.f32.mrf.mxu0
    %2082 = vdwg.mxu0
    %v2084 = vsel %vm76, %v2010, 0
    %2086 = vmatprep.subr.mxu0 0.0
    %2087 = vmatpush1.msra.mxu0 0.0
    %2088 = vmatprep.subr.mxu0 0.0
    %2089 = vmatpush1.msra.mxu0 0.0
    %2090 = vmatprep.subr.mxu0 0.0
    %2091 = vmatpush1.msra.mxu0 0.0
    %2092 = vmatprep.subr.mxu0 0.0
    %2093 = vmatpush1.msra.mxu0 0.0
    %2094 = vmatprep.subr.mxu0 0.0
    %2095 = vmatpush1.msra.mxu0 0.0
    %2096 = vmatprep.subr.mxu0 0.0
    %2097 = vmatpush1.msra.mxu0 0.0
    %2098 = vmatprep.subr.mxu0 0.0
    %2099 = vmatpush1.msra.mxu0 0.0
    %2100 = vmatprep.subr.mxu0 0.0
    %2101 = vmatpush1.msra.mxu0 0.0
    %2102 = vmatprep.subr.mxu0 0.0
    %2103 = vmatpush1.msra.mxu0 0.0
    %2104 = vmatprep.subr.mxu0 0.0
    %2105 = vmatpush1.msra.mxu0 0.0
    %2106 = vmatprep.subr.mxu0 0.0
    %2107 = vmatpush1.msra.mxu0 0.0
    %2108 = vmatprep.subr.mxu0 0.0
    %2109 = vmatpush1.msra.mxu0 0.0
    %2110 = vmatprep.subr.mxu0 0.0
    %2111 = vmatpush1.msra.mxu0 %v1642
    %2112 = vmatprep.subr.mxu0 0.0
    %2113 = vmatpush1.msra.mxu0 %v1641
    %2114 = vmatprep.subr.mxu0 0.0
    %2115 = vmatpush1.msra.mxu0 %v1640
    %2116 = vmatprep.subr.mxu0 0.0
    %2117 = vmatpush1.msra.mxu0 %v1639
    %2118 = vmatprep.subr.mxu0 0.0
    %2119 = vmatpush2.msra.mxu0 0.0
    %2120 = vmatprep.subr.mxu0 0.0
    %2121 = vmatpush2.msra.mxu0 0.0
    %2122 = vmatprep.subr.mxu0 0.0
    %2123 = vmatpush2.msra.mxu0 0.0
    %2124 = vmatprep.subr.mxu0 0.0
    %2125 = vmatpush2.msra.mxu0 0.0
    %2126 = vmatprep.subr.mxu0 0.0
    %2127 = vmatpush2.msra.mxu0 0.0
    %2128 = vmatprep.subr.mxu0 0.0
    %2129 = vmatpush2.msra.mxu0 0.0
    %2130 = vmatprep.subr.mxu0 0.0
    %2131 = vmatpush2.msra.mxu0 0.0
    %2132 = vmatprep.subr.mxu0 0.0
    %2133 = vmatpush2.msra.mxu0 0.0
    %2134 = vmatprep.subr.mxu0 0.0
    %2135 = vmatpush2.msra.mxu0 0.0
    %2136 = vmatprep.subr.mxu0 0.0
    %2137 = vmatpush2.msra.mxu0 0.0
    %2138 = vmatprep.subr.mxu0 0.0
    %2139 = vmatpush2.msra.mxu0 0.0
    %2140 = vmatprep.subr.mxu0 0.0
    %2141 = vmatpush2.msra.mxu0 0.0
    %2142 = vmatprep.subr.mxu0 0.0
    %2143 = vmatpush2.msra.mxu0 0.0
    %2144 = vmatprep.subr.mxu0 0.0
    %2145 = vmatpush2.msra.mxu0 0.0
    %2146 = vmatprep.subr.mxu0 0.0
    %2147 = vmatpush2.msra.mxu0 0.0
    %2148 = vmatprep.subr.mxu0 0.0
    %2149 = vmatpush2.msra.mxu0 0.0
    %2150 = vmatprep.mubr.f32.mxu0 0.0
    %2151 = vmatmul.mubr.f32.gmra.mxu0 %v2084
    %v2152 = vpop.f32.mrf.mxu0
    %v2153 = vadd.f32 %v2080, %v2152
    %v2154 = vpop.f32.mrf.mxu0
    %2155 = vdwg.mxu0
    %v2156 = vadd.f32 %v2153, %v1798
    %v2157 = vxor.u32 %v2156, 2147483648
    %v2158 = vmul.f32 %v2157, 1.442695
    %v2159 = vpow.pop %v2158
    %v2160 = vadd.f32 %v2159, 1.0
    %v2161 = vrcp.pop %v2160
    %v2162 = vmul.f32 1.0, %v2161
    %v2163 = vtanh.pop %v2156
    %v2164 = vmul.f32 %v2162, %v2004
    %2166 = vrot.lane.b32.xlu0 %v2163, 64
    %v2167 = vpop.permute.xlu0 %2166
    %v2169 = vmul.f32 %v2162, %v2167
    %2171 = vrot.lane.b32.xlu0 %v2169, 32
    %v2172 = vpop.permute.xlu0 %2171
    %v2174 = vadd.f32 %v2164, %v2172
    %v2175 = vtanh.pop %v2174
    %2177 = vrot.lane.b32.xlu0 %v2175, 64
    %v2178 = vpop.permute.xlu0 %2177
    %v2180 = vmul.f32 %v2162, %v2178
    %v2181 = vsel %vm629, %v2180, %v2003
    %v2182 = vsel %vm629, %v2174, %v2004
    %2184 = vrot.lane.b32.xlu0 %v2181, 32
    %v2185 = vpop.permute.xlu0 %2184
    %2187 = vst.msk [vmem:[%s452] sm:$0x3] %vm50, %v2185
    %v2188 = vld [vmem:[%s637] sm:$0x3]
    %v2189 = vsel %vm76, %v2185, 0
    %2191 = vmatprep.subr.mxu0 0.0
    %2192 = vmatpush1.msra.mxu0 0.0
    %2193 = vmatprep.subr.mxu0 0.0
    %2194 = vmatpush1.msra.mxu0 0.0
    %2195 = vmatprep.subr.mxu0 0.0
    %2196 = vmatpush1.msra.mxu0 0.0
    %2197 = vmatprep.subr.mxu0 0.0
    %2198 = vmatpush1.msra.mxu0 0.0
    %2199 = vmatprep.subr.mxu0 0.0
    %2200 = vmatpush1.msra.mxu0 0.0
    %2201 = vmatprep.subr.mxu0 0.0
    %2202 = vmatpush1.msra.mxu0 0.0
    %2203 = vmatprep.subr.mxu0 0.0
    %2204 = vmatpush1.msra.mxu0 0.0
    %2205 = vmatprep.subr.mxu0 0.0
    %2206 = vmatpush1.msra.mxu0 0.0
    %2207 = vmatprep.subr.mxu0 0.0
    %2208 = vmatpush1.msra.mxu0 0.0
    %2209 = vmatprep.subr.mxu0 0.0
    %2210 = vmatpush1.msra.mxu0 0.0
    %2211 = vmatprep.subr.mxu0 0.0
    %2212 = vmatpush1.msra.mxu0 0.0
    %2213 = vmatprep.subr.mxu0 0.0
    %2214 = vmatpush1.msra.mxu0 0.0
    %2215 = vmatprep.subr.mxu0 0.0
    %2216 = vmatpush1.msra.mxu0 %v1647
    %2217 = vmatprep.subr.mxu0 0.0
    %2218 = vmatpush1.msra.mxu0 %v1646
    %2219 = vmatprep.subr.mxu0 0.0
    %2220 = vmatpush1.msra.mxu0 %v1645
    %2221 = vmatprep.subr.mxu0 0.0
    %2222 = vmatpush1.msra.mxu0 %v1644
    %2223 = vmatprep.subr.mxu0 0.0
    %2224 = vmatpush2.msra.mxu0 0.0
    %2225 = vmatprep.subr.mxu0 0.0
    %2226 = vmatpush2.msra.mxu0 0.0
    %2227 = vmatprep.subr.mxu0 0.0
    %2228 = vmatpush2.msra.mxu0 0.0
    %2229 = vmatprep.subr.mxu0 0.0
    %2230 = vmatpush2.msra.mxu0 0.0
    %2231 = vmatprep.subr.mxu0 0.0
    %2232 = vmatpush2.msra.mxu0 0.0
    %2233 = vmatprep.subr.mxu0 0.0
    %2234 = vmatpush2.msra.mxu0 0.0
    %2235 = vmatprep.subr.mxu0 0.0
    %2236 = vmatpush2.msra.mxu0 0.0
    %2237 = vmatprep.subr.mxu0 0.0
    %2238 = vmatpush2.msra.mxu0 0.0
    %2239 = vmatprep.subr.mxu0 0.0
    %2240 = vmatpush2.msra.mxu0 0.0
    %2241 = vmatprep.subr.mxu0 0.0
    %2242 = vmatpush2.msra.mxu0 0.0
    %2243 = vmatprep.subr.mxu0 0.0
    %2244 = vmatpush2.msra.mxu0 0.0
    %2245 = vmatprep.subr.mxu0 0.0
    %2246 = vmatpush2.msra.mxu0 0.0
    %2247 = vmatprep.subr.mxu0 0.0
    %2248 = vmatpush2.msra.mxu0 0.0
    %2249 = vmatprep.subr.mxu0 0.0
    %2250 = vmatpush2.msra.mxu0 0.0
    %2251 = vmatprep.subr.mxu0 0.0
    %2252 = vmatpush2.msra.mxu0 0.0
    %2253 = vmatprep.subr.mxu0 0.0
    %2254 = vmatpush2.msra.mxu0 0.0
    %2255 = vmatprep.mubr.f32.mxu0 0.0
    %2256 = vmatmul.mubr.f32.gmra.mxu0 %v2189
    %v2257 = vpop.f32.mrf.mxu0
    %v2258 = vadd.f32 0.0, %v2257
    %v2259 = vpop.f32.mrf.mxu0
    %2260 = vdwg.mxu0
    %v2262 = vsel %vm76, %v2188, 0
    %2264 = vmatprep.subr.mxu0 0.0
    %2265 = vmatpush1.msra.mxu0 0.0
    %2266 = vmatprep.subr.mxu0 0.0
    %2267 = vmatpush1.msra.mxu0 0.0
    %2268 = vmatprep.subr.mxu0 0.0
    %2269 = vmatpush1.msra.mxu0 0.0
    %2270 = vmatprep.subr.mxu0 0.0
    %2271 = vmatpush1.msra.mxu0 0.0
    %2272 = vmatprep.subr.mxu0 0.0
    %2273 = vmatpush1.msra.mxu0 0.0
    %2274 = vmatprep.subr.mxu0 0.0
    %2275 = vmatpush1.msra.mxu0 0.0
    %2276 = vmatprep.subr.mxu0 0.0
    %2277 = vmatpush1.msra.mxu0 0.0
    %2278 = vmatprep.subr.mxu0 0.0
    %2279 = vmatpush1.msra.mxu0 0.0
    %2280 = vmatprep.subr.mxu0 0.0
    %2281 = vmatpush1.msra.mxu0 0.0
    %2282 = vmatprep.subr.mxu0 0.0
    %2283 = vmatpush1.msra.mxu0 0.0
    %2284 = vmatprep.subr.mxu0 0.0
    %2285 = vmatpush1.msra.mxu0 0.0
    %2286 = vmatprep.subr.mxu0 0.0
    %2287 = vmatpush1.msra.mxu0 0.0
    %2288 = vmatprep.subr.mxu0 0.0
    %2289 = vmatpush1.msra.mxu0 %v1642
    %2290 = vmatprep.subr.mxu0 0.0
    %2291 = vmatpush1.msra.mxu0 %v1641
    %2292 = vmatprep.subr.mxu0 0.0
    %2293 = vmatpush1.msra.mxu0 %v1640
    %2294 = vmatprep.subr.mxu0 0.0
    %2295 = vmatpush1.msra.mxu0 %v1639
    %2296 = vmatprep.subr.mxu0 0.0
    %2297 = vmatpush2.msra.mxu0 0.0
    %2298 = vmatprep.subr.mxu0 0.0
    %2299 = vmatpush2.msra.mxu0 0.0
    %2300 = vmatprep.subr.mxu0 0.0
    %2301 = vmatpush2.msra.mxu0 0.0
    %2302 = vmatprep.subr.mxu0 0.0
    %2303 = vmatpush2.msra.mxu0 0.0
    %2304 = vmatprep.subr.mxu0 0.0
    %2305 = vmatpush2.msra.mxu0 0.0
    %2306 = vmatprep.subr.mxu0 0.0
    %2307 = vmatpush2.msra.mxu0 0.0
    %2308 = vmatprep.subr.mxu0 0.0
    %2309 = vmatpush2.msra.mxu0 0.0
    %2310 = vmatprep.subr.mxu0 0.0
    %2311 = vmatpush2.msra.mxu0 0.0
    %2312 = vmatprep.subr.mxu0 0.0
    %2313 = vmatpush2.msra.mxu0 0.0
    %2314 = vmatprep.subr.mxu0 0.0
    %2315 = vmatpush2.msra.mxu0 0.0
    %2316 = vmatprep.subr.mxu0 0.0
    %2317 = vmatpush2.msra.mxu0 0.0
    %2318 = vmatprep.subr.mxu0 0.0
    %2319 = vmatpush2.msra.mxu0 0.0
    %2320 = vmatprep.subr.mxu0 0.0
    %2321 = vmatpush2.msra.mxu0 0.0
    %2322 = vmatprep.subr.mxu0 0.0
    %2323 = vmatpush2.msra.mxu0 0.0
    %2324 = vmatprep.subr.mxu0 0.0
    %2325 = vmatpush2.msra.mxu0 0.0
    %2326 = vmatprep.subr.mxu0 0.0
    %2327 = vmatpush2.msra.mxu0 0.0
    %2328 = vmatprep.mubr.f32.mxu0 0.0
    %2329 = vmatmul.mubr.f32.gmra.mxu0 %v2262
    %v2330 = vpop.f32.mrf.mxu0
    %v2331 = vadd.f32 %v2258, %v2330
    %v2332 = vpop.f32.mrf.mxu0
    %2333 = vdwg.mxu0
    %v2334 = vadd.f32 %v2331, %v1798
    %v2335 = vxor.u32 %v2334, 2147483648
    %v2336 = vmul.f32 %v2335, 1.442695
    %v2337 = vpow.pop %v2336
    %v2338 = vadd.f32 %v2337, 1.0
    %v2339 = vrcp.pop %v2338
    %v2340 = vmul.f32 1.0, %v2339
    %v2341 = vtanh.pop %v2334
    %v2342 = vmul.f32 %v2340, %v2182
    %2344 = vrot.lane.b32.xlu0 %v2341, 64
    %v2345 = vpop.permute.xlu0 %2344
    %v2347 = vmul.f32 %v2340, %v2345
    %2349 = vrot.lane.b32.xlu0 %v2347, 32
    %v2350 = vpop.permute.xlu0 %2349
    %v2352 = vadd.f32 %v2342, %v2350
    %v2353 = vtanh.pop %v2352
    %2355 = vrot.lane.b32.xlu0 %v2353, 64
    %v2356 = vpop.permute.xlu0 %2355
    %v2358 = vmul.f32 %v2340, %v2356
    %v2359 = vsel %vm814, %v2358, %v2181
    %v2360 = vsel %vm814, %v2352, %v2182
    %2362 = vrot.lane.b32.xlu0 %v2359, 32
    %v2363 = vpop.permute.xlu0 %2362
    %2365 = vst.msk [vmem:[%s637] sm:$0x3] %vm50, %v2363
    %v2366 = vld [vmem:[%s822] sm:$0x3]
    %v2367 = vsel %vm76, %v2363, 0
    %2369 = vmatprep.subr.mxu0 0.0
    %2370 = vmatpush1.msra.mxu0 0.0
    %2371 = vmatprep.subr.mxu0 0.0
    %2372 = vmatpush1.msra.mxu0 0.0
    %2373 = vmatprep.subr.mxu0 0.0
    %2374 = vmatpush1.msra.mxu0 0.0
    %2375 = vmatprep.subr.mxu0 0.0
    %2376 = vmatpush1.msra.mxu0 0.0
    %2377 = vmatprep.subr.mxu0 0.0
    %2378 = vmatpush1.msra.mxu0 0.0
    %2379 = vmatprep.subr.mxu0 0.0
    %2380 = vmatpush1.msra.mxu0 0.0
    %2381 = vmatprep.subr.mxu0 0.0
    %2382 = vmatpush1.msra.mxu0 0.0
    %2383 = vmatprep.subr.mxu0 0.0
    %2384 = vmatpush1.msra.mxu0 0.0
    %2385 = vmatprep.subr.mxu0 0.0
    %2386 = vmatpush1.msra.mxu0 0.0
    %2387 = vmatprep.subr.mxu0 0.0
    %2388 = vmatpush1.msra.mxu0 0.0
    %2389 = vmatprep.subr.mxu0 0.0
    %2390 = vmatpush1.msra.mxu0 0.0
    %2391 = vmatprep.subr.mxu0 0.0
    %2392 = vmatpush1.msra.mxu0 0.0
    %2393 = vmatprep.subr.mxu0 0.0
    %2394 = vmatpush1.msra.mxu0 %v1647
    %2395 = vmatprep.subr.mxu0 0.0
    %2396 = vmatpush1.msra.mxu0 %v1646
    %2397 = vmatprep.subr.mxu0 0.0
    %2398 = vmatpush1.msra.mxu0 %v1645
    %2399 = vmatprep.subr.mxu0 0.0
    %2400 = vmatpush1.msra.mxu0 %v1644
    %2401 = vmatprep.subr.mxu0 0.0
    %2402 = vmatpush2.msra.mxu0 0.0
    %2403 = vmatprep.subr.mxu0 0.0
    %2404 = vmatpush2.msra.mxu0 0.0
    %2405 = vmatprep.subr.mxu0 0.0
    %2406 = vmatpush2.msra.mxu0 0.0
    %2407 = vmatprep.subr.mxu0 0.0
    %2408 = vmatpush2.msra.mxu0 0.0
    %2409 = vmatprep.subr.mxu0 0.0
    %2410 = vmatpush2.msra.mxu0 0.0
    %2411 = vmatprep.subr.mxu0 0.0
    %2412 = vmatpush2.msra.mxu0 0.0
    %2413 = vmatprep.subr.mxu0 0.0
    %2414 = vmatpush2.msra.mxu0 0.0
    %2415 = vmatprep.subr.mxu0 0.0
    %2416 = vmatpush2.msra.mxu0 0.0
    %2417 = vmatprep.subr.mxu0 0.0
    %2418 = vmatpush2.msra.mxu0 0.0
    %2419 = vmatprep.subr.mxu0 0.0
    %2420 = vmatpush2.msra.mxu0 0.0
    %2421 = vmatprep.subr.mxu0 0.0
    %2422 = vmatpush2.msra.mxu0 0.0
    %2423 = vmatprep.subr.mxu0 0.0
    %2424 = vmatpush2.msra.mxu0 0.0
    %2425 = vmatprep.subr.mxu0 0.0
    %2426 = vmatpush2.msra.mxu0 0.0
    %2427 = vmatprep.subr.mxu0 0.0
    %2428 = vmatpush2.msra.mxu0 0.0
    %2429 = vmatprep.subr.mxu0 0.0
    %2430 = vmatpush2.msra.mxu0 0.0
    %2431 = vmatprep.subr.mxu0 0.0
    %2432 = vmatpush2.msra.mxu0 0.0
    %2433 = vmatprep.mubr.f32.mxu0 0.0
    %2434 = vmatmul.mubr.f32.gmra.mxu0 %v2367
    %v2435 = vpop.f32.mrf.mxu0
    %v2436 = vadd.f32 0.0, %v2435
    %v2437 = vpop.f32.mrf.mxu0
    %2438 = vdwg.mxu0
    %v2440 = vsel %vm76, %v2366, 0
    %2442 = vmatprep.subr.mxu0 0.0
    %2443 = vmatpush1.msra.mxu0 0.0
    %2444 = vmatprep.subr.mxu0 0.0
    %2445 = vmatpush1.msra.mxu0 0.0
    %2446 = vmatprep.subr.mxu0 0.0
    %2447 = vmatpush1.msra.mxu0 0.0
    %2448 = vmatprep.subr.mxu0 0.0
    %2449 = vmatpush1.msra.mxu0 0.0
    %2450 = vmatprep.subr.mxu0 0.0
    %2451 = vmatpush1.msra.mxu0 0.0
    %2452 = vmatprep.subr.mxu0 0.0
    %2453 = vmatpush1.msra.mxu0 0.0
    %2454 = vmatprep.subr.mxu0 0.0
    %2455 = vmatpush1.msra.mxu0 0.0
    %2456 = vmatprep.subr.mxu0 0.0
    %2457 = vmatpush1.msra.mxu0 0.0
    %2458 = vmatprep.subr.mxu0 0.0
    %2459 = vmatpush1.msra.mxu0 0.0
    %2460 = vmatprep.subr.mxu0 0.0
    %2461 = vmatpush1.msra.mxu0 0.0
    %2462 = vmatprep.subr.mxu0 0.0
    %2463 = vmatpush1.msra.mxu0 0.0
    %2464 = vmatprep.subr.mxu0 0.0
    %2465 = vmatpush1.msra.mxu0 0.0
    %2466 = vmatprep.subr.mxu0 0.0
    %2467 = vmatpush1.msra.mxu0 %v1642
    %2468 = vmatprep.subr.mxu0 0.0
    %2469 = vmatpush1.msra.mxu0 %v1641
    %2470 = vmatprep.subr.mxu0 0.0
    %2471 = vmatpush1.msra.mxu0 %v1640
    %2472 = vmatprep.subr.mxu0 0.0
    %2473 = vmatpush1.msra.mxu0 %v1639
    %2474 = vmatprep.subr.mxu0 0.0
    %2475 = vmatpush2.msra.mxu0 0.0
    %2476 = vmatprep.subr.mxu0 0.0
    %2477 = vmatpush2.msra.mxu0 0.0
    %2478 = vmatprep.subr.mxu0 0.0
    %2479 = vmatpush2.msra.mxu0 0.0
    %2480 = vmatprep.subr.mxu0 0.0
    %2481 = vmatpush2.msra.mxu0 0.0
    %2482 = vmatprep.subr.mxu0 0.0
    %2483 = vmatpush2.msra.mxu0 0.0
    %2484 = vmatprep.subr.mxu0 0.0
    %2485 = vmatpush2.msra.mxu0 0.0
    %2486 = vmatprep.subr.mxu0 0.0
    %2487 = vmatpush2.msra.mxu0 0.0
    %2488 = vmatprep.subr.mxu0 0.0
    %2489 = vmatpush2.msra.mxu0 0.0
    %2490 = vmatprep.subr.mxu0 0.0
    %2491 = vmatpush2.msra.mxu0 0.0
    %2492 = vmatprep.subr.mxu0 0.0
    %2493 = vmatpush2.msra.mxu0 0.0
    %2494 = vmatprep.subr.mxu0 0.0
    %2495 = vmatpush2.msra.mxu0 0.0
    %2496 = vmatprep.subr.mxu0 0.0
    %2497 = vmatpush2.msra.mxu0 0.0
    %2498 = vmatprep.subr.mxu0 0.0
    %2499 = vmatpush2.msra.mxu0 0.0
    %2500 = vmatprep.subr.mxu0 0.0
    %2501 = vmatpush2.msra.mxu0 0.0
    %2502 = vmatprep.subr.mxu0 0.0
    %2503 = vmatpush2.msra.mxu0 0.0
    %2504 = vmatprep.subr.mxu0 0.0
    %2505 = vmatpush2.msra.mxu0 0.0
    %2506 = vmatprep.mubr.f32.mxu0 0.0
    %2507 = vmatmul.mubr.f32.gmra.mxu0 %v2440
    %v2508 = vpop.f32.mrf.mxu0
    %v2509 = vadd.f32 %v2436, %v2508
    %v2510 = vpop.f32.mrf.mxu0
    %2511 = vdwg.mxu0
    %v2512 = vadd.f32 %v2509, %v1798
    %v2513 = vxor.u32 %v2512, 2147483648
    %v2514 = vmul.f32 %v2513, 1.442695
    %v2515 = vpow.pop %v2514
    %v2516 = vadd.f32 %v2515, 1.0
    %v2517 = vrcp.pop %v2516
    %v2518 = vmul.f32 1.0, %v2517
    %v2519 = vtanh.pop %v2512
    %v2520 = vmul.f32 %v2518, %v2360
    %2522 = vrot.lane.b32.xlu0 %v2519, 64
    %v2523 = vpop.permute.xlu0 %2522
    %v2525 = vmul.f32 %v2518, %v2523
    %2527 = vrot.lane.b32.xlu0 %v2525, 32
    %v2528 = vpop.permute.xlu0 %2527
    %v2530 = vadd.f32 %v2520, %v2528
    %v2531 = vtanh.pop %v2530
    %2533 = vrot.lane.b32.xlu0 %v2531, 64
    %v2534 = vpop.permute.xlu0 %2533
    %v2536 = vmul.f32 %v2518, %v2534
    %v2537 = vsel %vm999, %v2536, %v2359
    %v2538 = vsel %vm999, %v2530, %v2360
    %2540 = vrot.lane.b32.xlu0 %v2537, 32
    %v2541 = vpop.permute.xlu0 %2540
    %2543 = vst.msk [vmem:[%s822] sm:$0x3] %vm50, %v2541
    %v2544 = vld [vmem:[%s1007] sm:$0x3]
    %v2545 = vsel %vm76, %v2541, 0
    %2547 = vmatprep.subr.mxu0 0.0
    %2548 = vmatpush1.msra.mxu0 0.0
    %2549 = vmatprep.subr.mxu0 0.0
    %2550 = vmatpush1.msra.mxu0 0.0
    %2551 = vmatprep.subr.mxu0 0.0
    %2552 = vmatpush1.msra.mxu0 0.0
    %2553 = vmatprep.subr.mxu0 0.0
    %2554 = vmatpush1.msra.mxu0 0.0
    %2555 = vmatprep.subr.mxu0 0.0
    %2556 = vmatpush1.msra.mxu0 0.0
    %2557 = vmatprep.subr.mxu0 0.0
    %2558 = vmatpush1.msra.mxu0 0.0
    %2559 = vmatprep.subr.mxu0 0.0
    %2560 = vmatpush1.msra.mxu0 0.0
    %2561 = vmatprep.subr.mxu0 0.0
    %2562 = vmatpush1.msra.mxu0 0.0
    %2563 = vmatprep.subr.mxu0 0.0
    %2564 = vmatpush1.msra.mxu0 0.0
    %2565 = vmatprep.subr.mxu0 0.0
    %2566 = vmatpush1.msra.mxu0 0.0
    %2567 = vmatprep.subr.mxu0 0.0
    %2568 = vmatpush1.msra.mxu0 0.0
    %2569 = vmatprep.subr.mxu0 0.0
    %2570 = vmatpush1.msra.mxu0 0.0
    %2571 = vmatprep.subr.mxu0 0.0
    %2572 = vmatpush1.msra.mxu0 %v1647
    %2573 = vmatprep.subr.mxu0 0.0
    %2574 = vmatpush1.msra.mxu0 %v1646
    %2575 = vmatprep.subr.mxu0 0.0
    %2576 = vmatpush1.msra.mxu0 %v1645
    %2577 = vmatprep.subr.mxu0 0.0
    %2578 = vmatpush1.msra.mxu0 %v1644
    %2579 = vmatprep.subr.mxu0 0.0
    %2580 = vmatpush2.msra.mxu0 0.0
    %2581 = vmatprep.subr.mxu0 0.0
    %2582 = vmatpush2.msra.mxu0 0.0
    %2583 = vmatprep.subr.mxu0 0.0
    %2584 = vmatpush2.msra.mxu0 0.0
    %2585 = vmatprep.subr.mxu0 0.0
    %2586 = vmatpush2.msra.mxu0 0.0
    %2587 = vmatprep.subr.mxu0 0.0
    %2588 = vmatpush2.msra.mxu0 0.0
    %2589 = vmatprep.subr.mxu0 0.0
    %2590 = vmatpush2.msra.mxu0 0.0
    %2591 = vmatprep.subr.mxu0 0.0
    %2592 = vmatpush2.msra.mxu0 0.0
    %2593 = vmatprep.subr.mxu0 0.0
    %2594 = vmatpush2.msra.mxu0 0.0
    %2595 = vmatprep.subr.mxu0 0.0
    %2596 = vmatpush2.msra.mxu0 0.0
    %2597 = vmatprep.subr.mxu0 0.0
    %2598 = vmatpush2.msra.mxu0 0.0
    %2599 = vmatprep.subr.mxu0 0.0
    %2600 = vmatpush2.msra.mxu0 0.0
    %2601 = vmatprep.subr.mxu0 0.0
    %2602 = vmatpush2.msra.mxu0 0.0
    %2603 = vmatprep.subr.mxu0 0.0
    %2604 = vmatpush2.msra.mxu0 0.0
    %2605 = vmatprep.subr.mxu0 0.0
    %2606 = vmatpush2.msra.mxu0 0.0
    %2607 = vmatprep.subr.mxu0 0.0
    %2608 = vmatpush2.msra.mxu0 0.0
    %2609 = vmatprep.subr.mxu0 0.0
    %2610 = vmatpush2.msra.mxu0 0.0
    %2611 = vmatprep.mubr.f32.mxu0 0.0
    %2612 = vmatmul.mubr.f32.gmra.mxu0 %v2545
    %v2613 = vpop.f32.mrf.mxu0
    %v2614 = vadd.f32 0.0, %v2613
    %v2615 = vpop.f32.mrf.mxu0
    %2616 = vdwg.mxu0
    %v2618 = vsel %vm76, %v2544, 0
    %2620 = vmatprep.subr.mxu0 0.0
    %2621 = vmatpush1.msra.mxu0 0.0
    %2622 = vmatprep.subr.mxu0 0.0
    %2623 = vmatpush1.msra.mxu0 0.0
    %2624 = vmatprep.subr.mxu0 0.0
    %2625 = vmatpush1.msra.mxu0 0.0
    %2626 = vmatprep.subr.mxu0 0.0
    %2627 = vmatpush1.msra.mxu0 0.0
    %2628 = vmatprep.subr.mxu0 0.0
    %2629 = vmatpush1.msra.mxu0 0.0
    %2630 = vmatprep.subr.mxu0 0.0
    %2631 = vmatpush1.msra.mxu0 0.0
    %2632 = vmatprep.subr.mxu0 0.0
    %2633 = vmatpush1.msra.mxu0 0.0
    %2634 = vmatprep.subr.mxu0 0.0
    %2635 = vmatpush1.msra.mxu0 0.0
    %2636 = vmatprep.subr.mxu0 0.0
    %2637 = vmatpush1.msra.mxu0 0.0
    %2638 = vmatprep.subr.mxu0 0.0
    %2639 = vmatpush1.msra.mxu0 0.0
    %2640 = vmatprep.subr.mxu0 0.0
    %2641 = vmatpush1.msra.mxu0 0.0
    %2642 = vmatprep.subr.mxu0 0.0
    %2643 = vmatpush1.msra.mxu0 0.0
    %2644 = vmatprep.subr.mxu0 0.0
    %2645 = vmatpush1.msra.mxu0 %v1642
    %2646 = vmatprep.subr.mxu0 0.0
    %2647 = vmatpush1.msra.mxu0 %v1641
    %2648 = vmatprep.subr.mxu0 0.0
    %2649 = vmatpush1.msra.mxu0 %v1640
    %2650 = vmatprep.subr.mxu0 0.0
    %2651 = vmatpush1.msra.mxu0 %v1639
    %2652 = vmatprep.subr.mxu0 0.0
    %2653 = vmatpush2.msra.mxu0 0.0
    %2654 = vmatprep.subr.mxu0 0.0
    %2655 = vmatpush2.msra.mxu0 0.0
    %2656 = vmatprep.subr.mxu0 0.0
    %2657 = vmatpush2.msra.mxu0 0.0
    %2658 = vmatprep.subr.mxu0 0.0
    %2659 = vmatpush2.msra.mxu0 0.0
    %2660 = vmatprep.subr.mxu0 0.0
    %2661 = vmatpush2.msra.mxu0 0.0
    %2662 = vmatprep.subr.mxu0 0.0
    %2663 = vmatpush2.msra.mxu0 0.0
    %2664 = vmatprep.subr.mxu0 0.0
    %2665 = vmatpush2.msra.mxu0 0.0
    %2666 = vmatprep.subr.mxu0 0.0
    %2667 = vmatpush2.msra.mxu0 0.0
    %2668 = vmatprep.subr.mxu0 0.0
    %2669 = vmatpush2.msra.mxu0 0.0
    %2670 = vmatprep.subr.mxu0 0.0
    %2671 = vmatpush2.msra.mxu0 0.0
    %2672 = vmatprep.subr.mxu0 0.0
    %2673 = vmatpush2.msra.mxu0 0.0
    %2674 = vmatprep.subr.mxu0 0.0
    %2675 = vmatpush2.msra.mxu0 0.0
    %2676 = vmatprep.subr.mxu0 0.0
    %2677 = vmatpush2.msra.mxu0 0.0
    %2678 = vmatprep.subr.mxu0 0.0
    %2679 = vmatpush2.msra.mxu0 0.0
    %2680 = vmatprep.subr.mxu0 0.0
    %2681 = vmatpush2.msra.mxu0 0.0
    %2682 = vmatprep.subr.mxu0 0.0
    %2683 = vmatpush2.msra.mxu0 0.0
    %2684 = vmatprep.mubr.f32.mxu0 0.0
    %2685 = vmatmul.mubr.f32.gmra.mxu0 %v2618
    %v2686 = vpop.f32.mrf.mxu0
    %v2687 = vadd.f32 %v2614, %v2686
    %v2688 = vpop.f32.mrf.mxu0
    %2689 = vdwg.mxu0
    %v2690 = vadd.f32 %v2687, %v1798
    %v2691 = vxor.u32 %v2690, 2147483648
    %v2692 = vmul.f32 %v2691, 1.442695
    %v2693 = vpow.pop %v2692
    %v2694 = vadd.f32 %v2693, 1.0
    %v2695 = vrcp.pop %v2694
    %v2696 = vmul.f32 1.0, %v2695
    %v2697 = vtanh.pop %v2690
    %v2698 = vmul.f32 %v2696, %v2538
    %2700 = vrot.lane.b32.xlu0 %v2697, 64
    %v2701 = vpop.permute.xlu0 %2700
    %v2703 = vmul.f32 %v2696, %v2701
    %2705 = vrot.lane.b32.xlu0 %v2703, 32
    %v2706 = vpop.permute.xlu0 %2705
    %v2708 = vadd.f32 %v2698, %v2706
    %v2709 = vtanh.pop %v2708
    %2711 = vrot.lane.b32.xlu0 %v2709, 64
    %v2712 = vpop.permute.xlu0 %2711
    %v2714 = vmul.f32 %v2696, %v2712
    %v2715 = vsel %vm1184, %v2714, %v2537
    %v2716 = vsel %vm1184, %v2708, %v2538
    %2718 = vrot.lane.b32.xlu0 %v2715, 32
    %v2719 = vpop.permute.xlu0 %2718
    %2721 = vst.msk [vmem:[%s1007] sm:$0x3] %vm50, %v2719
    %v2722 = vld [vmem:[%s1192] sm:$0x3]
    %v2723 = vsel %vm76, %v2719, 0
    %2725 = vmatprep.subr.mxu0 0.0
    %2726 = vmatpush1.msra.mxu0 0.0
    %2727 = vmatprep.subr.mxu0 0.0
    %2728 = vmatpush1.msra.mxu0 0.0
    %2729 = vmatprep.subr.mxu0 0.0
    %2730 = vmatpush1.msra.mxu0 0.0
    %2731 = vmatprep.subr.mxu0 0.0
    %2732 = vmatpush1.msra.mxu0 0.0
    %2733 = vmatprep.subr.mxu0 0.0
    %2734 = vmatpush1.msra.mxu0 0.0
    %2735 = vmatprep.subr.mxu0 0.0
    %2736 = vmatpush1.msra.mxu0 0.0
    %2737 = vmatprep.subr.mxu0 0.0
    %2738 = vmatpush1.msra.mxu0 0.0
    %2739 = vmatprep.subr.mxu0 0.0
    %2740 = vmatpush1.msra.mxu0 0.0
    %2741 = vmatprep.subr.mxu0 0.0
    %2742 = vmatpush1.msra.mxu0 0.0
    %2743 = vmatprep.subr.mxu0 0.0
    %2744 = vmatpush1.msra.mxu0 0.0
    %2745 = vmatprep.subr.mxu0 0.0
    %2746 = vmatpush1.msra.mxu0 0.0
    %2747 = vmatprep.subr.mxu0 0.0
    %2748 = vmatpush1.msra.mxu0 0.0
    %2749 = vmatprep.subr.mxu0 0.0
    %2750 = vmatpush1.msra.mxu0 %v1647
    %2751 = vmatprep.subr.mxu0 0.0
    %2752 = vmatpush1.msra.mxu0 %v1646
    %2753 = vmatprep.subr.mxu0 0.0
    %2754 = vmatpush1.msra.mxu0 %v1645
    %2755 = vmatprep.subr.mxu0 0.0
    %2756 = vmatpush1.msra.mxu0 %v1644
    %2757 = vmatprep.subr.mxu0 0.0
    %2758 = vmatpush2.msra.mxu0 0.0
    %2759 = vmatprep.subr.mxu0 0.0
    %2760 = vmatpush2.msra.mxu0 0.0
    %2761 = vmatprep.subr.mxu0 0.0
    %2762 = vmatpush2.msra.mxu0 0.0
    %2763 = vmatprep.subr.mxu0 0.0
    %2764 = vmatpush2.msra.mxu0 0.0
    %2765 = vmatprep.subr.mxu0 0.0
    %2766 = vmatpush2.msra.mxu0 0.0
    %2767 = vmatprep.subr.mxu0 0.0
    %2768 = vmatpush2.msra.mxu0 0.0
    %2769 = vmatprep.subr.mxu0 0.0
    %2770 = vmatpush2.msra.mxu0 0.0
    %2771 = vmatprep.subr.mxu0 0.0
    %2772 = vmatpush2.msra.mxu0 0.0
    %2773 = vmatprep.subr.mxu0 0.0
    %2774 = vmatpush2.msra.mxu0 0.0
    %2775 = vmatprep.subr.mxu0 0.0
    %2776 = vmatpush2.msra.mxu0 0.0
    %2777 = vmatprep.subr.mxu0 0.0
    %2778 = vmatpush2.msra.mxu0 0.0
    %2779 = vmatprep.subr.mxu0 0.0
    %2780 = vmatpush2.msra.mxu0 0.0
    %2781 = vmatprep.subr.mxu0 0.0
    %2782 = vmatpush2.msra.mxu0 0.0
    %2783 = vmatprep.subr.mxu0 0.0
    %2784 = vmatpush2.msra.mxu0 0.0
    %2785 = vmatprep.subr.mxu0 0.0
    %2786 = vmatpush2.msra.mxu0 0.0
    %2787 = vmatprep.subr.mxu0 0.0
    %2788 = vmatpush2.msra.mxu0 0.0
    %2789 = vmatprep.mubr.f32.mxu0 0.0
    %2790 = vmatmul.mubr.f32.gmra.mxu0 %v2723
    %v2791 = vpop.f32.mrf.mxu0
    %v2792 = vadd.f32 0.0, %v2791
    %v2793 = vpop.f32.mrf.mxu0
    %2794 = vdwg.mxu0
    %v2796 = vsel %vm76, %v2722, 0
    %2798 = vmatprep.subr.mxu0 0.0
    %2799 = vmatpush1.msra.mxu0 0.0
    %2800 = vmatprep.subr.mxu0 0.0
    %2801 = vmatpush1.msra.mxu0 0.0
    %2802 = vmatprep.subr.mxu0 0.0
    %2803 = vmatpush1.msra.mxu0 0.0
    %2804 = vmatprep.subr.mxu0 0.0
    %2805 = vmatpush1.msra.mxu0 0.0
    %2806 = vmatprep.subr.mxu0 0.0
    %2807 = vmatpush1.msra.mxu0 0.0
    %2808 = vmatprep.subr.mxu0 0.0
    %2809 = vmatpush1.msra.mxu0 0.0
    %2810 = vmatprep.subr.mxu0 0.0
    %2811 = vmatpush1.msra.mxu0 0.0
    %2812 = vmatprep.subr.mxu0 0.0
    %2813 = vmatpush1.msra.mxu0 0.0
    %2814 = vmatprep.subr.mxu0 0.0
    %2815 = vmatpush1.msra.mxu0 0.0
    %2816 = vmatprep.subr.mxu0 0.0
    %2817 = vmatpush1.msra.mxu0 0.0
    %2818 = vmatprep.subr.mxu0 0.0
    %2819 = vmatpush1.msra.mxu0 0.0
    %2820 = vmatprep.subr.mxu0 0.0
    %2821 = vmatpush1.msra.mxu0 0.0
    %2822 = vmatprep.subr.mxu0 0.0
    %2823 = vmatpush1.msra.mxu0 %v1642
    %2824 = vmatprep.subr.mxu0 0.0
    %2825 = vmatpush1.msra.mxu0 %v1641
    %2826 = vmatprep.subr.mxu0 0.0
    %2827 = vmatpush1.msra.mxu0 %v1640
    %2828 = vmatprep.subr.mxu0 0.0
    %2829 = vmatpush1.msra.mxu0 %v1639
    %2830 = vmatprep.subr.mxu0 0.0
    %2831 = vmatpush2.msra.mxu0 0.0
    %2832 = vmatprep.subr.mxu0 0.0
    %2833 = vmatpush2.msra.mxu0 0.0
    %2834 = vmatprep.subr.mxu0 0.0
    %2835 = vmatpush2.msra.mxu0 0.0
    %2836 = vmatprep.subr.mxu0 0.0
    %2837 = vmatpush2.msra.mxu0 0.0
    %2838 = vmatprep.subr.mxu0 0.0
    %2839 = vmatpush2.msra.mxu0 0.0
    %2840 = vmatprep.subr.mxu0 0.0
    %2841 = vmatpush2.msra.mxu0 0.0
    %2842 = vmatprep.subr.mxu0 0.0
    %2843 = vmatpush2.msra.mxu0 0.0
    %2844 = vmatprep.subr.mxu0 0.0
    %2845 = vmatpush2.msra.mxu0 0.0
    %2846 = vmatprep.subr.mxu0 0.0
    %2847 = vmatpush2.msra.mxu0 0.0
    %2848 = vmatprep.subr.mxu0 0.0
    %2849 = vmatpush2.msra.mxu0 0.0
    %2850 = vmatprep.subr.mxu0 0.0
    %2851 = vmatpush2.msra.mxu0 0.0
    %2852 = vmatprep.subr.mxu0 0.0
    %2853 = vmatpush2.msra.mxu0 0.0
    %2854 = vmatprep.subr.mxu0 0.0
    %2855 = vmatpush2.msra.mxu0 0.0
    %2856 = vmatprep.subr.mxu0 0.0
    %2857 = vmatpush2.msra.mxu0 0.0
    %2858 = vmatprep.subr.mxu0 0.0
    %2859 = vmatpush2.msra.mxu0 0.0
    %2860 = vmatprep.subr.mxu0 0.0
    %2861 = vmatpush2.msra.mxu0 0.0
    %2862 = vmatprep.mubr.f32.mxu0 0.0
    %2863 = vmatmul.mubr.f32.gmra.mxu0 %v2796
    %v2864 = vpop.f32.mrf.mxu0
    %v2865 = vadd.f32 %v2792, %v2864
    %v2866 = vpop.f32.mrf.mxu0
    %2867 = vdwg.mxu0
    %v2868 = vadd.f32 %v2865, %v1798
    %v2869 = vxor.u32 %v2868, 2147483648
    %v2870 = vmul.f32 %v2869, 1.442695
    %v2871 = vpow.pop %v2870
    %v2872 = vadd.f32 %v2871, 1.0
    %v2873 = vrcp.pop %v2872
    %v2874 = vmul.f32 1.0, %v2873
    %v2875 = vtanh.pop %v2868
    %v2876 = vmul.f32 %v2874, %v2716
    %2878 = vrot.lane.b32.xlu0 %v2875, 64
    %v2879 = vpop.permute.xlu0 %2878
    %v2881 = vmul.f32 %v2874, %v2879
    %2883 = vrot.lane.b32.xlu0 %v2881, 32
    %v2884 = vpop.permute.xlu0 %2883
    %v2886 = vadd.f32 %v2876, %v2884
    %v2887 = vtanh.pop %v2886
    %2889 = vrot.lane.b32.xlu0 %v2887, 64
    %v2890 = vpop.permute.xlu0 %2889
    %v2892 = vmul.f32 %v2874, %v2890
    %v2893 = vsel %vm1369, %v2892, %v2715
    %v2894 = vsel %vm1369, %v2886, %v2716
    %2896 = vrot.lane.b32.xlu0 %v2893, 32
    %v2897 = vpop.permute.xlu0 %2896
    %2899 = vst.msk [vmem:[%s1192] sm:$0x3] %vm50, %v2897
    %v2900 = vld [vmem:[%s1377] sm:$0x3]
    %v2901 = vsel %vm76, %v2897, 0
    %2903 = vmatprep.subr.mxu0 0.0
    %2904 = vmatpush1.msra.mxu0 0.0
    %2905 = vmatprep.subr.mxu0 0.0
    %2906 = vmatpush1.msra.mxu0 0.0
    %2907 = vmatprep.subr.mxu0 0.0
    %2908 = vmatpush1.msra.mxu0 0.0
    %2909 = vmatprep.subr.mxu0 0.0
    %2910 = vmatpush1.msra.mxu0 0.0
    %2911 = vmatprep.subr.mxu0 0.0
    %2912 = vmatpush1.msra.mxu0 0.0
    %2913 = vmatprep.subr.mxu0 0.0
    %2914 = vmatpush1.msra.mxu0 0.0
    %2915 = vmatprep.subr.mxu0 0.0
    %2916 = vmatpush1.msra.mxu0 0.0
    %2917 = vmatprep.subr.mxu0 0.0
    %2918 = vmatpush1.msra.mxu0 0.0
    %2919 = vmatprep.subr.mxu0 0.0
    %2920 = vmatpush1.msra.mxu0 0.0
    %2921 = vmatprep.subr.mxu0 0.0
    %2922 = vmatpush1.msra.mxu0 0.0
    %2923 = vmatprep.subr.mxu0 0.0
    %2924 = vmatpush1.msra.mxu0 0.0
    %2925 = vmatprep.subr.mxu0 0.0
    %2926 = vmatpush1.msra.mxu0 0.0
    %2927 = vmatprep.subr.mxu0 0.0
    %2928 = vmatpush1.msra.mxu0 %v1647
    %2929 = vmatprep.subr.mxu0 0.0
    %2930 = vmatpush1.msra.mxu0 %v1646
    %2931 = vmatprep.subr.mxu0 0.0
    %2932 = vmatpush1.msra.mxu0 %v1645
    %2933 = vmatprep.subr.mxu0 0.0
    %2934 = vmatpush1.msra.mxu0 %v1644
    %2935 = vmatprep.subr.mxu0 0.0
    %2936 = vmatpush2.msra.mxu0 0.0
    %2937 = vmatprep.subr.mxu0 0.0
    %2938 = vmatpush2.msra.mxu0 0.0
    %2939 = vmatprep.subr.mxu0 0.0
    %2940 = vmatpush2.msra.mxu0 0.0
    %2941 = vmatprep.subr.mxu0 0.0
    %2942 = vmatpush2.msra.mxu0 0.0
    %2943 = vmatprep.subr.mxu0 0.0
    %2944 = vmatpush2.msra.mxu0 0.0
    %2945 = vmatprep.subr.mxu0 0.0
    %2946 = vmatpush2.msra.mxu0 0.0
    %2947 = vmatprep.subr.mxu0 0.0
    %2948 = vmatpush2.msra.mxu0 0.0
    %2949 = vmatprep.subr.mxu0 0.0
    %2950 = vmatpush2.msra.mxu0 0.0
    %2951 = vmatprep.subr.mxu0 0.0
    %2952 = vmatpush2.msra.mxu0 0.0
    %2953 = vmatprep.subr.mxu0 0.0
    %2954 = vmatpush2.msra.mxu0 0.0
    %2955 = vmatprep.subr.mxu0 0.0
    %2956 = vmatpush2.msra.mxu0 0.0
    %2957 = vmatprep.subr.mxu0 0.0
    %2958 = vmatpush2.msra.mxu0 0.0
    %2959 = vmatprep.subr.mxu0 0.0
    %2960 = vmatpush2.msra.mxu0 0.0
    %2961 = vmatprep.subr.mxu0 0.0
    %2962 = vmatpush2.msra.mxu0 0.0
    %2963 = vmatprep.subr.mxu0 0.0
    %2964 = vmatpush2.msra.mxu0 0.0
    %2965 = vmatprep.subr.mxu0 0.0
    %2966 = vmatpush2.msra.mxu0 0.0
    %2967 = vmatprep.mubr.f32.mxu0 0.0
    %2968 = vmatmul.mubr.f32.gmra.mxu0 %v2901
    %v2969 = vpop.f32.mrf.mxu0
    %v2970 = vadd.f32 0.0, %v2969
    %v2971 = vpop.f32.mrf.mxu0
    %2972 = vdwg.mxu0
    %v2974 = vsel %vm76, %v2900, 0
    %2976 = vmatprep.subr.mxu0 0.0
    %2977 = vmatpush1.msra.mxu0 0.0
    %2978 = vmatprep.subr.mxu0 0.0
    %2979 = vmatpush1.msra.mxu0 0.0
    %2980 = vmatprep.subr.mxu0 0.0
    %2981 = vmatpush1.msra.mxu0 0.0
    %2982 = vmatprep.subr.mxu0 0.0
    %2983 = vmatpush1.msra.mxu0 0.0
    %2984 = vmatprep.subr.mxu0 0.0
    %2985 = vmatpush1.msra.mxu0 0.0
    %2986 = vmatprep.subr.mxu0 0.0
    %2987 = vmatpush1.msra.mxu0 0.0
    %2988 = vmatprep.subr.mxu0 0.0
    %2989 = vmatpush1.msra.mxu0 0.0
    %2990 = vmatprep.subr.mxu0 0.0
    %2991 = vmatpush1.msra.mxu0 0.0
    %2992 = vmatprep.subr.mxu0 0.0
    %2993 = vmatpush1.msra.mxu0 0.0
    %2994 = vmatprep.subr.mxu0 0.0
    %2995 = vmatpush1.msra.mxu0 0.0
    %2996 = vmatprep.subr.mxu0 0.0
    %2997 = vmatpush1.msra.mxu0 0.0
    %2998 = vmatprep.subr.mxu0 0.0
    %2999 = vmatpush1.msra.mxu0 0.0
    %3000 = vmatprep.subr.mxu0 0.0
    %3001 = vmatpush1.msra.mxu0 %v1642
    %3002 = vmatprep.subr.mxu0 0.0
    %3003 = vmatpush1.msra.mxu0 %v1641
    %3004 = vmatprep.subr.mxu0 0.0
    %3005 = vmatpush1.msra.mxu0 %v1640
    %3006 = vmatprep.subr.mxu0 0.0
    %3007 = vmatpush1.msra.mxu0 %v1639
    %3008 = vmatprep.subr.mxu0 0.0
    %3009 = vmatpush2.msra.mxu0 0.0
    %3010 = vmatprep.subr.mxu0 0.0
    %3011 = vmatpush2.msra.mxu0 0.0
    %3012 = vmatprep.subr.mxu0 0.0
    %3013 = vmatpush2.msra.mxu0 0.0
    %3014 = vmatprep.subr.mxu0 0.0
    %3015 = vmatpush2.msra.mxu0 0.0
    %3016 = vmatprep.subr.mxu0 0.0
    %3017 = vmatpush2.msra.mxu0 0.0
    %3018 = vmatprep.subr.mxu0 0.0
    %3019 = vmatpush2.msra.mxu0 0.0
    %3020 = vmatprep.subr.mxu0 0.0
    %3021 = vmatpush2.msra.mxu0 0.0
    %3022 = vmatprep.subr.mxu0 0.0
    %3023 = vmatpush2.msra.mxu0 0.0
    %3024 = vmatprep.subr.mxu0 0.0
    %3025 = vmatpush2.msra.mxu0 0.0
    %3026 = vmatprep.subr.mxu0 0.0
    %3027 = vmatpush2.msra.mxu0 0.0
    %3028 = vmatprep.subr.mxu0 0.0
    %3029 = vmatpush2.msra.mxu0 0.0
    %3030 = vmatprep.subr.mxu0 0.0
    %3031 = vmatpush2.msra.mxu0 0.0
    %3032 = vmatprep.subr.mxu0 0.0
    %3033 = vmatpush2.msra.mxu0 0.0
    %3034 = vmatprep.subr.mxu0 0.0
    %3035 = vmatpush2.msra.mxu0 0.0
    %3036 = vmatprep.subr.mxu0 0.0
    %3037 = vmatpush2.msra.mxu0 0.0
    %3038 = vmatprep.subr.mxu0 0.0
    %3039 = vmatpush2.msra.mxu0 0.0
    %3040 = vmatprep.mubr.f32.mxu0 0.0
    %3041 = vmatmul.mubr.f32.gmra.mxu0 %v2974
    %v3042 = vpop.f32.mrf.mxu0
    %v3043 = vadd.f32 %v2970, %v3042
    %v3044 = vpop.f32.mrf.mxu0
    %3045 = vdwg.mxu0
    %v3046 = vadd.f32 %v3043, %v1798
    %v3047 = vxor.u32 %v3046, 2147483648
    %v3048 = vmul.f32 %v3047, 1.442695
    %v3049 = vpow.pop %v3048
    %v3050 = vadd.f32 %v3049, 1.0
    %v3051 = vrcp.pop %v3050
    %v3052 = vmul.f32 1.0, %v3051
    %v3053 = vtanh.pop %v3046
    %v3054 = vmul.f32 %v3052, %v2894
    %3056 = vrot.lane.b32.xlu0 %v3053, 64
    %v3057 = vpop.permute.xlu0 %3056
    %v3059 = vmul.f32 %v3052, %v3057
    %3061 = vrot.lane.b32.xlu0 %v3059, 32
    %v3062 = vpop.permute.xlu0 %3061
    %v3064 = vadd.f32 %v3054, %v3062
    %v3065 = vtanh.pop %v3064
    %3067 = vrot.lane.b32.xlu0 %v3065, 64
    %v3068 = vpop.permute.xlu0 %3067
    %v3070 = vmul.f32 %v3052, %v3068
    %v3071 = vsel %vm1554, %v3070, %v2893
    %3073 = vrot.lane.b32.xlu0 %v3071, 32
    %v3074 = vpop.permute.xlu0 %3073
    %3076 = vst.msk [vmem:[%s1377] sm:$0x3] %vm50, %v3074
    %s3077 = scalar_lea.vmem %s5, 32
    %v3078 = vld [vmem:[%s3077] sm:$0xff]
    %v3079 = vld [vmem:[%s3077 + $0x8] sm:$0xff]
    %v3080 = vld [vmem:[%s3077 + $0x10] sm:$0xff]
    %v3081 = vld [vmem:[%s3077 + $0x18] sm:$0xff]
    %v3082 = vsel %vm76, %v3074, 0
    %3084 = vmatprep.subr.mxu0 0.0
    %3085 = vmatpush1.msra.mxu0 0.0
    %3086 = vmatprep.subr.mxu0 0.0
    %3087 = vmatpush1.msra.mxu0 0.0
    %3088 = vmatprep.subr.mxu0 0.0
    %3089 = vmatpush1.msra.mxu0 0.0
    %3090 = vmatprep.subr.mxu0 0.0
    %3091 = vmatpush1.msra.mxu0 0.0
    %3092 = vmatprep.subr.mxu0 0.0
    %3093 = vmatpush1.msra.mxu0 0.0
    %3094 = vmatprep.subr.mxu0 0.0
    %3095 = vmatpush1.msra.mxu0 0.0
    %3096 = vmatprep.subr.mxu0 0.0
    %3097 = vmatpush1.msra.mxu0 0.0
    %3098 = vmatprep.subr.mxu0 0.0
    %3099 = vmatpush1.msra.mxu0 0.0
    %3100 = vmatprep.subr.mxu0 0.0
    %3101 = vmatpush1.msra.mxu0 0.0
    %3102 = vmatprep.subr.mxu0 0.0
    %3103 = vmatpush1.msra.mxu0 0.0
    %3104 = vmatprep.subr.mxu0 0.0
    %3105 = vmatpush1.msra.mxu0 0.0
    %3106 = vmatprep.subr.mxu0 0.0
    %3107 = vmatpush1.msra.mxu0 0.0
    %3108 = vmatprep.subr.mxu0 0.0
    %3109 = vmatpush1.msra.mxu0 %v3081
    %3110 = vmatprep.subr.mxu0 0.0
    %3111 = vmatpush1.msra.mxu0 %v3080
    %3112 = vmatprep.subr.mxu0 0.0
    %3113 = vmatpush1.msra.mxu0 %v3079
    %3114 = vmatprep.subr.mxu0 0.0
    %3115 = vmatpush1.msra.mxu0 %v3078
    %3116 = vmatprep.subr.mxu0 0.0
    %3117 = vmatpush2.msra.mxu0 0.0
    %3118 = vmatprep.subr.mxu0 0.0
    %3119 = vmatpush2.msra.mxu0 0.0
    %3120 = vmatprep.subr.mxu0 0.0
    %3121 = vmatpush2.msra.mxu0 0.0
    %3122 = vmatprep.subr.mxu0 0.0
    %3123 = vmatpush2.msra.mxu0 0.0
    %3124 = vmatprep.subr.mxu0 0.0
    %3125 = vmatpush2.msra.mxu0 0.0
    %3126 = vmatprep.subr.mxu0 0.0
    %3127 = vmatpush2.msra.mxu0 0.0
    %3128 = vmatprep.subr.mxu0 0.0
    %3129 = vmatpush2.msra.mxu0 0.0
    %3130 = vmatprep.subr.mxu0 0.0
    %3131 = vmatpush2.msra.mxu0 0.0
    %3132 = vmatprep.subr.mxu0 0.0
    %3133 = vmatpush2.msra.mxu0 0.0
    %3134 = vmatprep.subr.mxu0 0.0
    %3135 = vmatpush2.msra.mxu0 0.0
    %3136 = vmatprep.subr.mxu0 0.0
    %3137 = vmatpush2.msra.mxu0 0.0
    %3138 = vmatprep.subr.mxu0 0.0
    %3139 = vmatpush2.msra.mxu0 0.0
    %3140 = vmatprep.subr.mxu0 0.0
    %3141 = vmatpush2.msra.mxu0 0.0
    %3142 = vmatprep.subr.mxu0 0.0
    %3143 = vmatpush2.msra.mxu0 0.0
    %3144 = vmatprep.subr.mxu0 0.0
    %3145 = vmatpush2.msra.mxu0 0.0
    %3146 = vmatprep.subr.mxu0 0.0
    %3147 = vmatpush2.msra.mxu0 0.0
    %3148 = vmatprep.mubr.f32.mxu0 0.0
    %3149 = vmatmul.mubr.f32.gmra.mxu0 %v3082
    %v3150 = vpop.f32.mrf.mxu0
    %v3151 = vadd.f32 0.0, %v3150
    %v3152 = vpop.f32.mrf.mxu0
    %3153 = vdwg.mxu0
    %v3154 = vadd.f32 %v1637, %v3151
    %vm3155 = vcmask 33792
    %3156 = vst.msk [vmem:[#allocation6] sm:$0x3] %vm3155, %v3154
    // Predicated region
    $region34: #{tpu_custom_call.1} parent=1 // pred_check
      _
    $region35: #{tpu_custom_call.1} parent=1 // pred_check_branch
      %3158 = sbr.rel (0) target = $region37
    $region36: #{tpu_custom_call.1} parent=1 // pred_region
      %s3160 = ssub.s32 32, 32
      %3161 = vsyncadd [#allocation5], %s3160
      %s3163 = sshll.u32 [#allocation6], 4
      %s3164 = int_to_ptr.vmem [resolvable:$true] %s3163
      %3166 = dma.vmem_to_hbm [thread:$0]  %s3164, 32, %s7, [#allocation5]
    $region37: #{tpu_custom_call.1} parent=1 // pred_fallthru
      _
    // Predicated region
    $region38: #{tpu_custom_call.1} parent=1 // pred_check
      _
    $region39: #{tpu_custom_call.1} parent=1 // pred_check_branch
      %3168 = sbr.rel (0) target = $region41
    $region40: #{tpu_custom_call.1} parent=1 // pred_region
      %3169 = dma.done [#allocation5], 32
    $region41: #{tpu_custom_call.1} parent=1 // pred_fallthru
      _
    %3170 = vsyncpa [#allocation4], 1
    %3171 = vsyncpa [#allocation5], 1

</llo_original>
